<compile_context>
chip_gen: v7x
topology: tpu7x:2x2x1
jax: 0.10.0
libtpu: 0.0.40
codegen_flags: <defaults>
</compile_context>

<pallas_src>
import functools

import jax
import jax.numpy as jnp
from jax.experimental import pallas as pl
from jax.experimental.pallas import tpu as pltpu


def _round_up(x, m):
    return (x + m - 1) // m * m


# ---------------------------------------------------------------------------
# Fused kernel (one grid step == one batch sample)
# ---------------------------------------------------------------------------
def _down_fused_kernel(xp00_ref, xp01_ref, xp10_ref, xp11_ref,
                       w0_ref, b0_ref, w1_ref, b1_ref, w2_ref, b2_ref,
                       g_ref, bt_ref, o_ref, padA_ref, padB_ref,
                       *, ho, wo, eps):
    p = ho * wo
    phases = ((xp00_ref, xp01_ref), (xp10_ref, xp11_ref))

    def conv_taps(load_tap, w_ref, b_ref):
        # 3x3 conv as 9 shifted bf16 MXU dots, f32 accumulation, bias + ReLU.
        cp = w_ref.shape[-1]
        acc = jnp.zeros((p, cp), jnp.float32)
        for dy in range(3):
            for dx in range(3):
                lhs = load_tap(dy, dx)                       # (ho, wo, cin) bf16
                lhs = lhs.reshape(p, lhs.shape[-1])
                acc = acc + jnp.dot(lhs, w_ref[dy, dx],
                                    preferred_element_type=jnp.float32)
        return jnp.maximum(acc + b_ref[...], 0.0)

    def reflect_pad_into(pad_ref, h2d):
        # nn.ReflectionPad2d(1) into a VMEM scratch buffer.
        h3d = h2d.reshape(ho, wo, h2d.shape[-1]).astype(pad_ref.dtype)
        pad_ref[1:ho + 1, 1:wo + 1, :] = h3d
        pad_ref[0:1, 1:wo + 1, :] = h3d[1:2]
        pad_ref[ho + 1:ho + 2, 1:wo + 1, :] = h3d[ho - 2:ho - 1]
        pad_ref[:, 0:1, :] = pad_ref[:, 2:3, :]
        pad_ref[:, wo + 1:wo + 2, :] = pad_ref[:, wo - 1:wo, :]

    # --- stage 0: 3x3 stride-2 conv on the reflection-padded input ----------
    # Input arrives as 4 stride phases; tap (dy, dx) of the strided conv is a
    # contiguous slice of phase (dy%2, dx%2) at offset (dy//2, dx//2).
    def tap0(dy, dx):
        ph = phases[dy % 2][dx % 2]
        return ph[dy // 2:dy // 2 + ho, dx // 2:dx // 2 + wo, :]

    h = conv_taps(tap0, w0_ref, b0_ref)

    # --- stage 1: reflection pad (VMEM) + 3x3 conv + ReLU --------------------
    reflect_pad_into(padA_ref, h)

    def tapA(dy, dx):
        return padA_ref[dy:dy + ho, dx:dx + wo, :].astype(jnp.bfloat16)

    h = conv_taps(tapA, w1_ref, b1_ref)

    # --- stage 2: reflection pad (VMEM) + 3x3 conv + ReLU --------------------
    reflect_pad_into(padB_ref, h)

    def tapB(dy, dx):
        return padB_ref[dy:dy + ho, dx:dx + wo, :].astype(jnp.bfloat16)

    h = conv_taps(tapB, w2_ref, b2_ref)

    # --- stage 3: InstanceNorm2d(affine=True), per-(sample, channel) stats ---
    mean = jnp.mean(h, axis=0, keepdims=True)                       # (1, cp)
    var = jnp.mean(jnp.square(h - mean), axis=0, keepdims=True)     # biased
    y = (h - mean) * jax.lax.rsqrt(var + eps)
    y = y * g_ref[...] + bt_ref[...]
    o_ref[...] = y.reshape(ho, wo, -1).astype(o_ref.dtype)


# ---------------------------------------------------------------------------
# pallas_call wrapper
# ---------------------------------------------------------------------------
def _down_pallas_call(phases, w0, b0, w1, b1, w2, b2, gamma, beta,
                      ho, wo, eps):
    n, hq, wq, cin = phases[0].shape
    cp = w0.shape[-1]
    kernel = functools.partial(_down_fused_kernel, ho=ho, wo=wo, eps=eps)

    phase_spec = pl.BlockSpec((pl.Squeezed(), hq, wq, cin),
                              lambda i: (i, 0, 0, 0))

    def whole(a):
        return pl.BlockSpec(a.shape, lambda i, _nd=a.ndim: (0,) * _nd)

    p = ho * wo
    flops = 2 * n * p * 9 * cp * (cin + 2 * cp)
    bytes_accessed = (4 * n * hq * wq * cin * 2                 # bf16 phases
                      + (w0.size + w1.size + w2.size) * 2        # bf16 weights
                      + n * p * cp * 4)                          # f32 output

    return pl.pallas_call(
        kernel,
        out_shape=jax.ShapeDtypeStruct((n, ho, wo, cp), jnp.float32),
        grid=(n,),
        in_specs=[phase_spec] * 4 + [whole(a) for a in
                                     (w0, b0, w1, b1, w2, b2, gamma, beta)],
        out_specs=pl.BlockSpec((pl.Squeezed(), ho, wo, cp),
                               lambda i: (i, 0, 0, 0)),
        scratch_shapes=[pltpu.VMEM((ho + 2, wo + 2, cp), jnp.float32),
                        pltpu.VMEM((ho + 2, wo + 2, cp), jnp.float32)],
        compiler_params=pltpu.CompilerParams(
            dimension_semantics=("parallel",)),
        cost_estimate=pl.CostEstimate(flops=flops,
                                      transcendentals=2 * n * cp,
                                      bytes_accessed=bytes_accessed),
    )(*phases, w0, b0, w1, b1, w2, b2, gamma, beta)


# ---------------------------------------------------------------------------
# Plain-JAX glue: layout, reflection pad of the raw input, weight repacking
# ---------------------------------------------------------------------------
def _prep_w(w_oihw, cin_pad, cout_pad):
    # PyTorch (Cout, Cin, 3, 3) -> (3, 3, Cin_pad, Cout_pad) bf16, zero padded.
    cout, cin, _, _ = w_oihw.shape
    w = jnp.transpose(w_oihw, (2, 3, 1, 0))
    w = jnp.pad(w, ((0, 0), (0, 0), (0, cin_pad - cin), (0, cout_pad - cout)))
    return w.astype(jnp.bfloat16)


def _prep_c(v, cpad):
    v = v.reshape(1, -1).astype(jnp.float32)
    return jnp.pad(v, ((0, 0), (0, cpad - v.shape[1])))


def down_forward(x_nchw, params, eps=1e-5):
    """Forward pass of `down`. Input/output are NCHW (PyTorch convention)."""
    w0, b0, w1, b1, w2, b2, gamma, beta = params
    n, cin, h, w = x_nchw.shape
    if h % 2 or w % 2 or h < 4 or w < 4:
        raise ValueError("down_forward expects even H, W >= 4")
    ho, wo = h // 2, w // 2
    cout = w0.shape[0]
    cp = _round_up(cout, 128)               # lane-dense channel padding

    x = jnp.transpose(x_nchw, (0, 2, 3, 1))                    # NCHW -> NHWC
    xp = jnp.pad(x, ((0, 0), (1, 1), (1, 1), (0, 0)), mode="reflect")
    xp = xp.astype(jnp.bfloat16)
    # Split the padded input into its 4 stride-2 phases (same total bytes as
    # xp) so the kernel only needs contiguous, unstrided slices.
    phases = [xp[:, r::2, c::2, :] for r in (0, 1) for c in (0, 1)]

    w0m = _prep_w(w0, cin, cp)
    w1m = _prep_w(w1, cp, cp)
    w2m = _prep_w(w2, cp, cp)
    b0m, b1m, b2m = (_prep_c(b, cp) for b in (b0, b1, b2))
    gm, bm = _prep_c(gamma, cp), _prep_c(beta, cp)

    out = _down_pallas_call(phases, w0m, b0m, w1m, b1m, w2m, b2m, gm, bm,
                            ho, wo, eps)
    out = out[..., :cout]                                      # drop lane pad
    return jnp.transpose(out, (0, 3, 1, 2))                    # NHWC -> NCHW


def init_params(key, in_ch, out_ch):
    ks = jax.random.split(key, 6)
    w0 = jax.random.normal(ks[0], (out_ch, in_ch, 3, 3), jnp.float32) * 0.1
    b0 = jax.random.normal(ks[1], (out_ch,), jnp.float32) * 0.1
    w1 = jax.random.normal(ks[2], (out_ch, out_ch, 3, 3), jnp.float32) * 0.1
    b1 = jax.random.normal(ks[3], (out_ch,), jnp.float32) * 0.1
    w2 = jax.random.normal(ks[4], (out_ch, out_ch, 3, 3), jnp.float32) * 0.1
    b2 = jax.random.normal(ks[5], (out_ch,), jnp.float32) * 0.1
    gamma = jnp.ones((out_ch,), jnp.float32)   # InstanceNorm2d affine init
    beta = jnp.zeros((out_ch,), jnp.float32)
    return (w0, b0, w1, b1, w2, b2, gamma, beta)


if __name__ == "__main__":
    n, in_ch, out_ch, h, w = 2, 4, 8, 16, 16
    key = jax.random.PRNGKey(0)
    kx, kp = jax.random.split(key)
    x = jax.random.normal(kx, (n, in_ch, h, w), jnp.float32)
    params = init_params(kp, in_ch, out_ch)

    fwd = jax.jit(down_forward)
    out = fwd(x, params)
    jax.block_until_ready(out)

    assert out.shape == (n, out_ch, h // 2, w // 2), out.shape
    assert out.dtype == jnp.float32
    assert bool(jnp.all(jnp.isfinite(out)))
    print("KERNEL_OK")
</pallas_src>

<mosaic_0001>
module attributes {stable_mosaic.version = 11 : i64} {
  func.func @_down_fused_kernel(%arg0: i32, %arg1: memref<1x9x9x4xbf16, #tpu.memory_space<vmem>>, %arg2: memref<1x9x9x4xbf16, #tpu.memory_space<vmem>>, %arg3: memref<1x9x9x4xbf16, #tpu.memory_space<vmem>>, %arg4: memref<1x9x9x4xbf16, #tpu.memory_space<vmem>>, %arg5: memref<3x3x4x128xbf16, #tpu.memory_space<vmem>>, %arg6: memref<1x128xf32, #tpu.memory_space<vmem>>, %arg7: memref<3x3x128x128xbf16, #tpu.memory_space<vmem>>, %arg8: memref<1x128xf32, #tpu.memory_space<vmem>>, %arg9: memref<3x3x128x128xbf16, #tpu.memory_space<vmem>>, %arg10: memref<1x128xf32, #tpu.memory_space<vmem>>, %arg11: memref<1x128xf32, #tpu.memory_space<vmem>>, %arg12: memref<1x128xf32, #tpu.memory_space<vmem>>, %arg13: memref<1x8x8x128xf32, #tpu.memory_space<vmem>>, %arg14: memref<10x10x128xf32, #tpu.memory_space<vmem>>, %arg15: memref<10x10x128xf32, #tpu.memory_space<vmem>>) attributes {dimension_semantics = [#tpu.dimension_semantics<parallel>], iteration_bounds = array<i64: 2>, scalar_prefetch = 0 : i64, scratch_operands = 2 : i64, tpu.core_type = #tpu.core_type<tc>, window_params = [{transform_indices = @transform_0, window_bounds = array<i64: 1, 9, 9, 4>}, {transform_indices = @transform_1, window_bounds = array<i64: 1, 9, 9, 4>}, {transform_indices = @transform_2, window_bounds = array<i64: 1, 9, 9, 4>}, {transform_indices = @transform_3, window_bounds = array<i64: 1, 9, 9, 4>}, {pipeline_mode = #tpu.pipeline_mode<synchronous>, transform_indices = @transform_4, window_bounds = array<i64: 3, 3, 4, 128>}, {pipeline_mode = #tpu.pipeline_mode<synchronous>, transform_indices = @transform_5, window_bounds = array<i64: 1, 128>}, {pipeline_mode = #tpu.pipeline_mode<synchronous>, transform_indices = @transform_6, window_bounds = array<i64: 3, 3, 128, 128>}, {pipeline_mode = #tpu.pipeline_mode<synchronous>, transform_indices = @transform_7, window_bounds = array<i64: 1, 128>}, {pipeline_mode = #tpu.pipeline_mode<synchronous>, transform_indices = @transform_8, window_bounds = array<i64: 3, 3, 128, 128>}, {pipeline_mode = #tpu.pipeline_mode<synchronous>, transform_indices = @transform_9, window_bounds = array<i64: 1, 128>}, {pipeline_mode = #tpu.pipeline_mode<synchronous>, transform_indices = @transform_10, window_bounds = array<i64: 1, 128>}, {pipeline_mode = #tpu.pipeline_mode<synchronous>, transform_indices = @transform_11, window_bounds = array<i64: 1, 128>}, {transform_indices = @transform_12, window_bounds = array<i64: 1, 8, 8, 128>}]} {
    %cst = arith.constant 0.000000e+00 : f32
    %0 = vector.broadcast %cst : f32 to vector<64x128xf32>
    %c0 = arith.constant 0 : index
    %c0_0 = arith.constant 0 : index
    %c0_1 = arith.constant 0 : index
    %c0_2 = arith.constant 0 : index
    %1 = vector.load %arg1[%c0, %c0_0, %c0_1, %c0_2] : memref<1x9x9x4xbf16, #tpu.memory_space<vmem>>, vector<1x8x8x4xbf16>
    %2 = vector.shape_cast %1 : vector<1x8x8x4xbf16> to vector<8x8x4xbf16>
    %3 = vector.shape_cast %2 : vector<8x8x4xbf16> to vector<64x4xbf16>
    %c0_3 = arith.constant 0 : index
    %c0_4 = arith.constant 0 : index
    %c0_5 = arith.constant 0 : index
    %c0_6 = arith.constant 0 : index
    %4 = vector.load %arg5[%c0_3, %c0_4, %c0_5, %c0_6] : memref<3x3x4x128xbf16, #tpu.memory_space<vmem>>, vector<1x1x4x128xbf16>
    %5 = vector.shape_cast %4 : vector<1x1x4x128xbf16> to vector<4x128xbf16>
    %cst_7 = arith.constant dense<0.000000e+00> : vector<64x128xf32>
    %6 = tpu.matmul %3, %5, %cst_7 {dimension_numbers = #tpu.dot_dimension_numbers<[1], [0], [0], [1], [0, 0, 1, 1], [], []>} : vector<64x4xbf16>, vector<4x128xbf16>, vector<64x128xf32> -> vector<64x128xf32>
    %7 = arith.addf %0, %6 : vector<64x128xf32>
    %c0_8 = arith.constant 0 : index
    %c0_9 = arith.constant 0 : index
    %c0_10 = arith.constant 0 : index
    %c0_11 = arith.constant 0 : index
    %8 = vector.load %arg2[%c0_8, %c0_9, %c0_10, %c0_11] : memref<1x9x9x4xbf16, #tpu.memory_space<vmem>>, vector<1x8x8x4xbf16>
    %9 = vector.shape_cast %8 : vector<1x8x8x4xbf16> to vector<8x8x4xbf16>
    %10 = vector.shape_cast %9 : vector<8x8x4xbf16> to vector<64x4xbf16>
    %c0_12 = arith.constant 0 : index
    %c1 = arith.constant 1 : index
    %c0_13 = arith.constant 0 : index
    %c0_14 = arith.constant 0 : index
    %11 = vector.load %arg5[%c0_12, %c1, %c0_13, %c0_14] : memref<3x3x4x128xbf16, #tpu.memory_space<vmem>>, vector<1x1x4x128xbf16>
    %12 = vector.shape_cast %11 : vector<1x1x4x128xbf16> to vector<4x128xbf16>
    %cst_15 = arith.constant dense<0.000000e+00> : vector<64x128xf32>
    %13 = tpu.matmul %10, %12, %cst_15 {dimension_numbers = #tpu.dot_dimension_numbers<[1], [0], [0], [1], [0, 0, 1, 1], [], []>} : vector<64x4xbf16>, vector<4x128xbf16>, vector<64x128xf32> -> vector<64x128xf32>
    %14 = arith.addf %7, %13 : vector<64x128xf32>
    %c0_16 = arith.constant 0 : index
    %c0_17 = arith.constant 0 : index
    %c1_18 = arith.constant 1 : index
    %c0_19 = arith.constant 0 : index
    %15 = vector.load %arg1[%c0_16, %c0_17, %c1_18, %c0_19] : memref<1x9x9x4xbf16, #tpu.memory_space<vmem>>, vector<1x8x8x4xbf16>
    %16 = vector.shape_cast %15 : vector<1x8x8x4xbf16> to vector<8x8x4xbf16>
    %17 = vector.shape_cast %16 : vector<8x8x4xbf16> to vector<64x4xbf16>
    %c0_20 = arith.constant 0 : index
    %c2 = arith.constant 2 : index
    %c0_21 = arith.constant 0 : index
    %c0_22 = arith.constant 0 : index
    %18 = vector.load %arg5[%c0_20, %c2, %c0_21, %c0_22] : memref<3x3x4x128xbf16, #tpu.memory_space<vmem>>, vector<1x1x4x128xbf16>
    %19 = vector.shape_cast %18 : vector<1x1x4x128xbf16> to vector<4x128xbf16>
    %cst_23 = arith.constant dense<0.000000e+00> : vector<64x128xf32>
    %20 = tpu.matmul %17, %19, %cst_23 {dimension_numbers = #tpu.dot_dimension_numbers<[1], [0], [0], [1], [0, 0, 1, 1], [], []>} : vector<64x4xbf16>, vector<4x128xbf16>, vector<64x128xf32> -> vector<64x128xf32>
    %21 = arith.addf %14, %20 : vector<64x128xf32>
    %c0_24 = arith.constant 0 : index
    %c0_25 = arith.constant 0 : index
    %c0_26 = arith.constant 0 : index
    %c0_27 = arith.constant 0 : index
    %22 = vector.load %arg3[%c0_24, %c0_25, %c0_26, %c0_27] : memref<1x9x9x4xbf16, #tpu.memory_space<vmem>>, vector<1x8x8x4xbf16>
    %23 = vector.shape_cast %22 : vector<1x8x8x4xbf16> to vector<8x8x4xbf16>
    %24 = vector.shape_cast %23 : vector<8x8x4xbf16> to vector<64x4xbf16>
    %c1_28 = arith.constant 1 : index
    %c0_29 = arith.constant 0 : index
    %c0_30 = arith.constant 0 : index
    %c0_31 = arith.constant 0 : index
    %25 = vector.load %arg5[%c1_28, %c0_29, %c0_30, %c0_31] : memref<3x3x4x128xbf16, #tpu.memory_space<vmem>>, vector<1x1x4x128xbf16>
    %26 = vector.shape_cast %25 : vector<1x1x4x128xbf16> to vector<4x128xbf16>
    %cst_32 = arith.constant dense<0.000000e+00> : vector<64x128xf32>
    %27 = tpu.matmul %24, %26, %cst_32 {dimension_numbers = #tpu.dot_dimension_numbers<[1], [0], [0], [1], [0, 0, 1, 1], [], []>} : vector<64x4xbf16>, vector<4x128xbf16>, vector<64x128xf32> -> vector<64x128xf32>
    %28 = arith.addf %21, %27 : vector<64x128xf32>
    %c0_33 = arith.constant 0 : index
    %c0_34 = arith.constant 0 : index
    %c0_35 = arith.constant 0 : index
    %c0_36 = arith.constant 0 : index
    %29 = vector.load %arg4[%c0_33, %c0_34, %c0_35, %c0_36] : memref<1x9x9x4xbf16, #tpu.memory_space<vmem>>, vector<1x8x8x4xbf16>
    %30 = vector.shape_cast %29 : vector<1x8x8x4xbf16> to vector<8x8x4xbf16>
    %31 = vector.shape_cast %30 : vector<8x8x4xbf16> to vector<64x4xbf16>
    %c1_37 = arith.constant 1 : index
    %c1_38 = arith.constant 1 : index
    %c0_39 = arith.constant 0 : index
    %c0_40 = arith.constant 0 : index
    %32 = vector.load %arg5[%c1_37, %c1_38, %c0_39, %c0_40] : memref<3x3x4x128xbf16, #tpu.memory_space<vmem>>, vector<1x1x4x128xbf16>
    %33 = vector.shape_cast %32 : vector<1x1x4x128xbf16> to vector<4x128xbf16>
    %cst_41 = arith.constant dense<0.000000e+00> : vector<64x128xf32>
    %34 = tpu.matmul %31, %33, %cst_41 {dimension_numbers = #tpu.dot_dimension_numbers<[1], [0], [0], [1], [0, 0, 1, 1], [], []>} : vector<64x4xbf16>, vector<4x128xbf16>, vector<64x128xf32> -> vector<64x128xf32>
    %35 = arith.addf %28, %34 : vector<64x128xf32>
    %c0_42 = arith.constant 0 : index
    %c0_43 = arith.constant 0 : index
    %c1_44 = arith.constant 1 : index
    %c0_45 = arith.constant 0 : index
    %36 = vector.load %arg3[%c0_42, %c0_43, %c1_44, %c0_45] : memref<1x9x9x4xbf16, #tpu.memory_space<vmem>>, vector<1x8x8x4xbf16>
    %37 = vector.shape_cast %36 : vector<1x8x8x4xbf16> to vector<8x8x4xbf16>
    %38 = vector.shape_cast %37 : vector<8x8x4xbf16> to vector<64x4xbf16>
    %c1_46 = arith.constant 1 : index
    %c2_47 = arith.constant 2 : index
    %c0_48 = arith.constant 0 : index
    %c0_49 = arith.constant 0 : index
    %39 = vector.load %arg5[%c1_46, %c2_47, %c0_48, %c0_49] : memref<3x3x4x128xbf16, #tpu.memory_space<vmem>>, vector<1x1x4x128xbf16>
    %40 = vector.shape_cast %39 : vector<1x1x4x128xbf16> to vector<4x128xbf16>
    %cst_50 = arith.constant dense<0.000000e+00> : vector<64x128xf32>
    %41 = tpu.matmul %38, %40, %cst_50 {dimension_numbers = #tpu.dot_dimension_numbers<[1], [0], [0], [1], [0, 0, 1, 1], [], []>} : vector<64x4xbf16>, vector<4x128xbf16>, vector<64x128xf32> -> vector<64x128xf32>
    %42 = arith.addf %35, %41 : vector<64x128xf32>
    %c0_51 = arith.constant 0 : index
    %c1_52 = arith.constant 1 : index
    %c0_53 = arith.constant 0 : index
    %c0_54 = arith.constant 0 : index
    %43 = vector.load %arg1[%c0_51, %c1_52, %c0_53, %c0_54] : memref<1x9x9x4xbf16, #tpu.memory_space<vmem>>, vector<1x8x8x4xbf16>
    %44 = vector.shape_cast %43 : vector<1x8x8x4xbf16> to vector<8x8x4xbf16>
    %45 = vector.shape_cast %44 : vector<8x8x4xbf16> to vector<64x4xbf16>
    %c2_55 = arith.constant 2 : index
    %c0_56 = arith.constant 0 : index
    %c0_57 = arith.constant 0 : index
    %c0_58 = arith.constant 0 : index
    %46 = vector.load %arg5[%c2_55, %c0_56, %c0_57, %c0_58] : memref<3x3x4x128xbf16, #tpu.memory_space<vmem>>, vector<1x1x4x128xbf16>
    %47 = vector.shape_cast %46 : vector<1x1x4x128xbf16> to vector<4x128xbf16>
    %cst_59 = arith.constant dense<0.000000e+00> : vector<64x128xf32>
    %48 = tpu.matmul %45, %47, %cst_59 {dimension_numbers = #tpu.dot_dimension_numbers<[1], [0], [0], [1], [0, 0, 1, 1], [], []>} : vector<64x4xbf16>, vector<4x128xbf16>, vector<64x128xf32> -> vector<64x128xf32>
    %49 = arith.addf %42, %48 : vector<64x128xf32>
    %c0_60 = arith.constant 0 : index
    %c1_61 = arith.constant 1 : index
    %c0_62 = arith.constant 0 : index
    %c0_63 = arith.constant 0 : index
    %50 = vector.load %arg2[%c0_60, %c1_61, %c0_62, %c0_63] : memref<1x9x9x4xbf16, #tpu.memory_space<vmem>>, vector<1x8x8x4xbf16>
    %51 = vector.shape_cast %50 : vector<1x8x8x4xbf16> to vector<8x8x4xbf16>
    %52 = vector.shape_cast %51 : vector<8x8x4xbf16> to vector<64x4xbf16>
    %c2_64 = arith.constant 2 : index
    %c1_65 = arith.constant 1 : index
    %c0_66 = arith.constant 0 : index
    %c0_67 = arith.constant 0 : index
    %53 = vector.load %arg5[%c2_64, %c1_65, %c0_66, %c0_67] : memref<3x3x4x128xbf16, #tpu.memory_space<vmem>>, vector<1x1x4x128xbf16>
    %54 = vector.shape_cast %53 : vector<1x1x4x128xbf16> to vector<4x128xbf16>
    %cst_68 = arith.constant dense<0.000000e+00> : vector<64x128xf32>
    %55 = tpu.matmul %52, %54, %cst_68 {dimension_numbers = #tpu.dot_dimension_numbers<[1], [0], [0], [1], [0, 0, 1, 1], [], []>} : vector<64x4xbf16>, vector<4x128xbf16>, vector<64x128xf32> -> vector<64x128xf32>
    %56 = arith.addf %49, %55 : vector<64x128xf32>
    %c0_69 = arith.constant 0 : index
    %c1_70 = arith.constant 1 : index
    %c1_71 = arith.constant 1 : index
    %c0_72 = arith.constant 0 : index
    %57 = vector.load %arg1[%c0_69, %c1_70, %c1_71, %c0_72] : memref<1x9x9x4xbf16, #tpu.memory_space<vmem>>, vector<1x8x8x4xbf16>
    %58 = vector.shape_cast %57 : vector<1x8x8x4xbf16> to vector<8x8x4xbf16>
    %59 = vector.shape_cast %58 : vector<8x8x4xbf16> to vector<64x4xbf16>
    %c2_73 = arith.constant 2 : index
    %c2_74 = arith.constant 2 : index
    %c0_75 = arith.constant 0 : index
    %c0_76 = arith.constant 0 : index
    %60 = vector.load %arg5[%c2_73, %c2_74, %c0_75, %c0_76] : memref<3x3x4x128xbf16, #tpu.memory_space<vmem>>, vector<1x1x4x128xbf16>
    %61 = vector.shape_cast %60 : vector<1x1x4x128xbf16> to vector<4x128xbf16>
    %cst_77 = arith.constant dense<0.000000e+00> : vector<64x128xf32>
    %62 = tpu.matmul %59, %61, %cst_77 {dimension_numbers = #tpu.dot_dimension_numbers<[1], [0], [0], [1], [0, 0, 1, 1], [], []>} : vector<64x4xbf16>, vector<4x128xbf16>, vector<64x128xf32> -> vector<64x128xf32>
    %63 = arith.addf %56, %62 : vector<64x128xf32>
    %c0_78 = arith.constant 0 : index
    %c0_79 = arith.constant 0 : index
    %64 = vector.load %arg6[%c0_78, %c0_79] : memref<1x128xf32, #tpu.memory_space<vmem>>, vector<1x128xf32>
    %65 = vector.broadcast %64 : vector<1x128xf32> to vector<64x128xf32>
    %66 = arith.addf %63, %65 : vector<64x128xf32>
    %cst_80 = arith.constant 0.000000e+00 : f32
    %67 = vector.broadcast %cst_80 : f32 to vector<64x128xf32>
    %68 = arith.maximumf %66, %67 : vector<64x128xf32>
    %69 = vector.shape_cast %68 : vector<64x128xf32> to vector<8x8x128xf32>
    %c1_81 = arith.constant 1 : index
    %c1_82 = arith.constant 1 : index
    %c0_83 = arith.constant 0 : index
    %70 = vector.load %arg14[%c1_81, %c1_82, %c0_83] : memref<10x10x128xf32, #tpu.memory_space<vmem>>, vector<8x8x128xf32>
    tpu.vector_store %arg14[%c1_81, %c1_82, %c0_83], %69 {strides = array<i32>} : memref<10x10x128xf32, #tpu.memory_space<vmem>>, vector<8x8x128xf32>,
    %71 = vector.extract_strided_slice %69 {offsets = [1, 0, 0], sizes = [1, 8, 128], strides = [1, 1, 1]} : vector<8x8x128xf32> to vector<1x8x128xf32>
    %c0_84 = arith.constant 0 : index
    %c1_85 = arith.constant 1 : index
    %c0_86 = arith.constant 0 : index
    %72 = vector.load %arg14[%c0_84, %c1_85, %c0_86] : memref<10x10x128xf32, #tpu.memory_space<vmem>>, vector<1x8x128xf32>
    tpu.vector_store %arg14[%c0_84, %c1_85, %c0_86], %71 {strides = array<i32>} : memref<10x10x128xf32, #tpu.memory_space<vmem>>, vector<1x8x128xf32>,
    %73 = vector.extract_strided_slice %69 {offsets = [6, 0, 0], sizes = [1, 8, 128], strides = [1, 1, 1]} : vector<8x8x128xf32> to vector<1x8x128xf32>
    %c9 = arith.constant 9 : index
    %c1_87 = arith.constant 1 : index
    %c0_88 = arith.constant 0 : index
    %74 = vector.load %arg14[%c9, %c1_87, %c0_88] : memref<10x10x128xf32, #tpu.memory_space<vmem>>, vector<1x8x128xf32>
    tpu.vector_store %arg14[%c9, %c1_87, %c0_88], %73 {strides = array<i32>} : memref<10x10x128xf32, #tpu.memory_space<vmem>>, vector<1x8x128xf32>,
    %c0_89 = arith.constant 0 : index
    %c2_90 = arith.constant 2 : index
    %c0_91 = arith.constant 0 : index
    %75 = vector.load %arg14[%c0_89, %c2_90, %c0_91] : memref<10x10x128xf32, #tpu.memory_space<vmem>>, vector<10x1x128xf32>
    %c0_92 = arith.constant 0 : index
    %c0_93 = arith.constant 0 : index
    %c0_94 = arith.constant 0 : index
    %76 = vector.load %arg14[%c0_92, %c0_93, %c0_94] : memref<10x10x128xf32, #tpu.memory_space<vmem>>, vector<10x1x128xf32>
    tpu.vector_store %arg14[%c0_92, %c0_93, %c0_94], %75 {strides = array<i32>} : memref<10x10x128xf32, #tpu.memory_space<vmem>>, vector<10x1x128xf32>,
    %c0_95 = arith.constant 0 : index
    %c7 = arith.constant 7 : index
    %c0_96 = arith.constant 0 : index
    %77 = vector.load %arg14[%c0_95, %c7, %c0_96] : memref<10x10x128xf32, #tpu.memory_space<vmem>>, vector<10x1x128xf32>
    %c0_97 = arith.constant 0 : index
    %c9_98 = arith.constant 9 : index
    %c0_99 = arith.constant 0 : index
    %78 = vector.load %arg14[%c0_97, %c9_98, %c0_99] : memref<10x10x128xf32, #tpu.memory_space<vmem>>, vector<10x1x128xf32>
    tpu.vector_store %arg14[%c0_97, %c9_98, %c0_99], %77 {strides = array<i32>} : memref<10x10x128xf32, #tpu.memory_space<vmem>>, vector<10x1x128xf32>,
    %cst_100 = arith.constant 0.000000e+00 : f32
    %79 = vector.broadcast %cst_100 : f32 to vector<64x128xf32>
    %c0_101 = arith.constant 0 : index
    %c0_102 = arith.constant 0 : index
    %c0_103 = arith.constant 0 : index
    %80 = vector.load %arg14[%c0_101, %c0_102, %c0_103] : memref<10x10x128xf32, #tpu.memory_space<vmem>>, vector<8x8x128xf32>
    %81 = arith.truncf %80 : vector<8x8x128xf32> to vector<8x8x128xbf16>
    %82 = vector.shape_cast %81 : vector<8x8x128xbf16> to vector<64x128xbf16>
    %c0_104 = arith.constant 0 : index
    %c0_105 = arith.constant 0 : index
    %c0_106 = arith.constant 0 : index
    %c0_107 = arith.constant 0 : index
    %83 = vector.load %arg7[%c0_104, %c0_105, %c0_106, %c0_107] : memref<3x3x128x128xbf16, #tpu.memory_space<vmem>>, vector<1x1x128x128xbf16>
    %84 = vector.shape_cast %83 : vector<1x1x128x128xbf16> to vector<128x128xbf16>
    %cst_108 = arith.constant dense<0.000000e+00> : vector<64x128xf32>
    %85 = tpu.matmul %82, %84, %cst_108 {dimension_numbers = #tpu.dot_dimension_numbers<[1], [0], [0], [1], [0, 0, 1, 1], [], []>} : vector<64x128xbf16>, vector<128x128xbf16>, vector<64x128xf32> -> vector<64x128xf32>
    %86 = arith.addf %79, %85 : vector<64x128xf32>
    %c0_109 = arith.constant 0 : index
    %c1_110 = arith.constant 1 : index
    %c0_111 = arith.constant 0 : index
    %87 = vector.load %arg14[%c0_109, %c1_110, %c0_111] : memref<10x10x128xf32, #tpu.memory_space<vmem>>, vector<8x8x128xf32>
    %88 = arith.truncf %87 : vector<8x8x128xf32> to vector<8x8x128xbf16>
    %89 = vector.shape_cast %88 : vector<8x8x128xbf16> to vector<64x128xbf16>
    %c0_112 = arith.constant 0 : index
    %c1_113 = arith.constant 1 : index
    %c0_114 = arith.constant 0 : index
    %c0_115 = arith.constant 0 : index
    %90 = vector.load %arg7[%c0_112, %c1_113, %c0_114, %c0_115] : memref<3x3x128x128xbf16, #tpu.memory_space<vmem>>, vector<1x1x128x128xbf16>
    %91 = vector.shape_cast %90 : vector<1x1x128x128xbf16> to vector<128x128xbf16>
    %cst_116 = arith.constant dense<0.000000e+00> : vector<64x128xf32>
    %92 = tpu.matmul %89, %91, %cst_116 {dimension_numbers = #tpu.dot_dimension_numbers<[1], [0], [0], [1], [0, 0, 1, 1], [], []>} : vector<64x128xbf16>, vector<128x128xbf16>, vector<64x128xf32> -> vector<64x128xf32>
    %93 = arith.addf %86, %92 : vector<64x128xf32>
    %c0_117 = arith.constant 0 : index
    %c2_118 = arith.constant 2 : index
    %c0_119 = arith.constant 0 : index
    %94 = vector.load %arg14[%c0_117, %c2_118, %c0_119] : memref<10x10x128xf32, #tpu.memory_space<vmem>>, vector<8x8x128xf32>
    %95 = arith.truncf %94 : vector<8x8x128xf32> to vector<8x8x128xbf16>
    %96 = vector.shape_cast %95 : vector<8x8x128xbf16> to vector<64x128xbf16>
    %c0_120 = arith.constant 0 : index
    %c2_121 = arith.constant 2 : index
    %c0_122 = arith.constant 0 : index
    %c0_123 = arith.constant 0 : index
    %97 = vector.load %arg7[%c0_120, %c2_121, %c0_122, %c0_123] : memref<3x3x128x128xbf16, #tpu.memory_space<vmem>>, vector<1x1x128x128xbf16>
    %98 = vector.shape_cast %97 : vector<1x1x128x128xbf16> to vector<128x128xbf16>
    %cst_124 = arith.constant dense<0.000000e+00> : vector<64x128xf32>
    %99 = tpu.matmul %96, %98, %cst_124 {dimension_numbers = #tpu.dot_dimension_numbers<[1], [0], [0], [1], [0, 0, 1, 1], [], []>} : vector<64x128xbf16>, vector<128x128xbf16>, vector<64x128xf32> -> vector<64x128xf32>
    %100 = arith.addf %93, %99 : vector<64x128xf32>
    %c1_125 = arith.constant 1 : index
    %c0_126 = arith.constant 0 : index
    %c0_127 = arith.constant 0 : index
    %101 = vector.load %arg14[%c1_125, %c0_126, %c0_127] : memref<10x10x128xf32, #tpu.memory_space<vmem>>, vector<8x8x128xf32>
    %102 = arith.truncf %101 : vector<8x8x128xf32> to vector<8x8x128xbf16>
    %103 = vector.shape_cast %102 : vector<8x8x128xbf16> to vector<64x128xbf16>
    %c1_128 = arith.constant 1 : index
    %c0_129 = arith.constant 0 : index
    %c0_130 = arith.constant 0 : index
    %c0_131 = arith.constant 0 : index
    %104 = vector.load %arg7[%c1_128, %c0_129, %c0_130, %c0_131] : memref<3x3x128x128xbf16, #tpu.memory_space<vmem>>, vector<1x1x128x128xbf16>
    %105 = vector.shape_cast %104 : vector<1x1x128x128xbf16> to vector<128x128xbf16>
    %cst_132 = arith.constant dense<0.000000e+00> : vector<64x128xf32>
    %106 = tpu.matmul %103, %105, %cst_132 {dimension_numbers = #tpu.dot_dimension_numbers<[1], [0], [0], [1], [0, 0, 1, 1], [], []>} : vector<64x128xbf16>, vector<128x128xbf16>, vector<64x128xf32> -> vector<64x128xf32>
    %107 = arith.addf %100, %106 : vector<64x128xf32>
    %c1_133 = arith.constant 1 : index
    %c1_134 = arith.constant 1 : index
    %c0_135 = arith.constant 0 : index
    %108 = vector.load %arg14[%c1_133, %c1_134, %c0_135] : memref<10x10x128xf32, #tpu.memory_space<vmem>>, vector<8x8x128xf32>
    %109 = arith.truncf %108 : vector<8x8x128xf32> to vector<8x8x128xbf16>
    %110 = vector.shape_cast %109 : vector<8x8x128xbf16> to vector<64x128xbf16>
    %c1_136 = arith.constant 1 : index
    %c1_137 = arith.constant 1 : index
    %c0_138 = arith.constant 0 : index
    %c0_139 = arith.constant 0 : index
    %111 = vector.load %arg7[%c1_136, %c1_137, %c0_138, %c0_139] : memref<3x3x128x128xbf16, #tpu.memory_space<vmem>>, vector<1x1x128x128xbf16>
    %112 = vector.shape_cast %111 : vector<1x1x128x128xbf16> to vector<128x128xbf16>
    %cst_140 = arith.constant dense<0.000000e+00> : vector<64x128xf32>
    %113 = tpu.matmul %110, %112, %cst_140 {dimension_numbers = #tpu.dot_dimension_numbers<[1], [0], [0], [1], [0, 0, 1, 1], [], []>} : vector<64x128xbf16>, vector<128x128xbf16>, vector<64x128xf32> -> vector<64x128xf32>
    %114 = arith.addf %107, %113 : vector<64x128xf32>
    %c1_141 = arith.constant 1 : index
    %c2_142 = arith.constant 2 : index
    %c0_143 = arith.constant 0 : index
    %115 = vector.load %arg14[%c1_141, %c2_142, %c0_143] : memref<10x10x128xf32, #tpu.memory_space<vmem>>, vector<8x8x128xf32>
    %116 = arith.truncf %115 : vector<8x8x128xf32> to vector<8x8x128xbf16>
    %117 = vector.shape_cast %116 : vector<8x8x128xbf16> to vector<64x128xbf16>
    %c1_144 = arith.constant 1 : index
    %c2_145 = arith.constant 2 : index
    %c0_146 = arith.constant 0 : index
    %c0_147 = arith.constant 0 : index
    %118 = vector.load %arg7[%c1_144, %c2_145, %c0_146, %c0_147] : memref<3x3x128x128xbf16, #tpu.memory_space<vmem>>, vector<1x1x128x128xbf16>
    %119 = vector.shape_cast %118 : vector<1x1x128x128xbf16> to vector<128x128xbf16>
    %cst_148 = arith.constant dense<0.000000e+00> : vector<64x128xf32>
    %120 = tpu.matmul %117, %119, %cst_148 {dimension_numbers = #tpu.dot_dimension_numbers<[1], [0], [0], [1], [0, 0, 1, 1], [], []>} : vector<64x128xbf16>, vector<128x128xbf16>, vector<64x128xf32> -> vector<64x128xf32>
    %121 = arith.addf %114, %120 : vector<64x128xf32>
    %c2_149 = arith.constant 2 : index
    %c0_150 = arith.constant 0 : index
    %c0_151 = arith.constant 0 : index
    %122 = vector.load %arg14[%c2_149, %c0_150, %c0_151] : memref<10x10x128xf32, #tpu.memory_space<vmem>>, vector<8x8x128xf32>
    %123 = arith.truncf %122 : vector<8x8x128xf32> to vector<8x8x128xbf16>
    %124 = vector.shape_cast %123 : vector<8x8x128xbf16> to vector<64x128xbf16>
    %c2_152 = arith.constant 2 : index
    %c0_153 = arith.constant 0 : index
    %c0_154 = arith.constant 0 : index
    %c0_155 = arith.constant 0 : index
    %125 = vector.load %arg7[%c2_152, %c0_153, %c0_154, %c0_155] : memref<3x3x128x128xbf16, #tpu.memory_space<vmem>>, vector<1x1x128x128xbf16>
    %126 = vector.shape_cast %125 : vector<1x1x128x128xbf16> to vector<128x128xbf16>
    %cst_156 = arith.constant dense<0.000000e+00> : vector<64x128xf32>
    %127 = tpu.matmul %124, %126, %cst_156 {dimension_numbers = #tpu.dot_dimension_numbers<[1], [0], [0], [1], [0, 0, 1, 1], [], []>} : vector<64x128xbf16>, vector<128x128xbf16>, vector<64x128xf32> -> vector<64x128xf32>
    %128 = arith.addf %121, %127 : vector<64x128xf32>
    %c2_157 = arith.constant 2 : index
    %c1_158 = arith.constant 1 : index
    %c0_159 = arith.constant 0 : index
    %129 = vector.load %arg14[%c2_157, %c1_158, %c0_159] : memref<10x10x128xf32, #tpu.memory_space<vmem>>, vector<8x8x128xf32>
    %130 = arith.truncf %129 : vector<8x8x128xf32> to vector<8x8x128xbf16>
    %131 = vector.shape_cast %130 : vector<8x8x128xbf16> to vector<64x128xbf16>
    %c2_160 = arith.constant 2 : index
    %c1_161 = arith.constant 1 : index
    %c0_162 = arith.constant 0 : index
    %c0_163 = arith.constant 0 : index
    %132 = vector.load %arg7[%c2_160, %c1_161, %c0_162, %c0_163] : memref<3x3x128x128xbf16, #tpu.memory_space<vmem>>, vector<1x1x128x128xbf16>
    %133 = vector.shape_cast %132 : vector<1x1x128x128xbf16> to vector<128x128xbf16>
    %cst_164 = arith.constant dense<0.000000e+00> : vector<64x128xf32>
    %134 = tpu.matmul %131, %133, %cst_164 {dimension_numbers = #tpu.dot_dimension_numbers<[1], [0], [0], [1], [0, 0, 1, 1], [], []>} : vector<64x128xbf16>, vector<128x128xbf16>, vector<64x128xf32> -> vector<64x128xf32>
    %135 = arith.addf %128, %134 : vector<64x128xf32>
    %c2_165 = arith.constant 2 : index
    %c2_166 = arith.constant 2 : index
    %c0_167 = arith.constant 0 : index
    %136 = vector.load %arg14[%c2_165, %c2_166, %c0_167] : memref<10x10x128xf32, #tpu.memory_space<vmem>>, vector<8x8x128xf32>
    %137 = arith.truncf %136 : vector<8x8x128xf32> to vector<8x8x128xbf16>
    %138 = vector.shape_cast %137 : vector<8x8x128xbf16> to vector<64x128xbf16>
    %c2_168 = arith.constant 2 : index
    %c2_169 = arith.constant 2 : index
    %c0_170 = arith.constant 0 : index
    %c0_171 = arith.constant 0 : index
    %139 = vector.load %arg7[%c2_168, %c2_169, %c0_170, %c0_171] : memref<3x3x128x128xbf16, #tpu.memory_space<vmem>>, vector<1x1x128x128xbf16>
    %140 = vector.shape_cast %139 : vector<1x1x128x128xbf16> to vector<128x128xbf16>
    %cst_172 = arith.constant dense<0.000000e+00> : vector<64x128xf32>
    %141 = tpu.matmul %138, %140, %cst_172 {dimension_numbers = #tpu.dot_dimension_numbers<[1], [0], [0], [1], [0, 0, 1, 1], [], []>} : vector<64x128xbf16>, vector<128x128xbf16>, vector<64x128xf32> -> vector<64x128xf32>
    %142 = arith.addf %135, %141 : vector<64x128xf32>
    %c0_173 = arith.constant 0 : index
    %c0_174 = arith.constant 0 : index
    %143 = vector.load %arg8[%c0_173, %c0_174] : memref<1x128xf32, #tpu.memory_space<vmem>>, vector<1x128xf32>
    %144 = vector.broadcast %143 : vector<1x128xf32> to vector<64x128xf32>
    %145 = arith.addf %142, %144 : vector<64x128xf32>
    %cst_175 = arith.constant 0.000000e+00 : f32
    %146 = vector.broadcast %cst_175 : f32 to vector<64x128xf32>
    %147 = arith.maximumf %145, %146 : vector<64x128xf32>
    %148 = vector.shape_cast %147 : vector<64x128xf32> to vector<8x8x128xf32>
    %c1_176 = arith.constant 1 : index
    %c1_177 = arith.constant 1 : index
    %c0_178 = arith.constant 0 : index
    %149 = vector.load %arg15[%c1_176, %c1_177, %c0_178] : memref<10x10x128xf32, #tpu.memory_space<vmem>>, vector<8x8x128xf32>
    tpu.vector_store %arg15[%c1_176, %c1_177, %c0_178], %148 {strides = array<i32>} : memref<10x10x128xf32, #tpu.memory_space<vmem>>, vector<8x8x128xf32>,
    %150 = vector.extract_strided_slice %148 {offsets = [1, 0, 0], sizes = [1, 8, 128], strides = [1, 1, 1]} : vector<8x8x128xf32> to vector<1x8x128xf32>
    %c0_179 = arith.constant 0 : index
    %c1_180 = arith.constant 1 : index
    %c0_181 = arith.constant 0 : index
    %151 = vector.load %arg15[%c0_179, %c1_180, %c0_181] : memref<10x10x128xf32, #tpu.memory_space<vmem>>, vector<1x8x128xf32>
    tpu.vector_store %arg15[%c0_179, %c1_180, %c0_181], %150 {strides = array<i32>} : memref<10x10x128xf32, #tpu.memory_space<vmem>>, vector<1x8x128xf32>,
    %152 = vector.extract_strided_slice %148 {offsets = [6, 0, 0], sizes = [1, 8, 128], strides = [1, 1, 1]} : vector<8x8x128xf32> to vector<1x8x128xf32>
    %c9_182 = arith.constant 9 : index
    %c1_183 = arith.constant 1 : index
    %c0_184 = arith.constant 0 : index
    %153 = vector.load %arg15[%c9_182, %c1_183, %c0_184] : memref<10x10x128xf32, #tpu.memory_space<vmem>>, vector<1x8x128xf32>
    tpu.vector_store %arg15[%c9_182, %c1_183, %c0_184], %152 {strides = array<i32>} : memref<10x10x128xf32, #tpu.memory_space<vmem>>, vector<1x8x128xf32>,
    %c0_185 = arith.constant 0 : index
    %c2_186 = arith.constant 2 : index
    %c0_187 = arith.constant 0 : index
    %154 = vector.load %arg15[%c0_185, %c2_186, %c0_187] : memref<10x10x128xf32, #tpu.memory_space<vmem>>, vector<10x1x128xf32>
    %c0_188 = arith.constant 0 : index
    %c0_189 = arith.constant 0 : index
    %c0_190 = arith.constant 0 : index
    %155 = vector.load %arg15[%c0_188, %c0_189, %c0_190] : memref<10x10x128xf32, #tpu.memory_space<vmem>>, vector<10x1x128xf32>
    tpu.vector_store %arg15[%c0_188, %c0_189, %c0_190], %154 {strides = array<i32>} : memref<10x10x128xf32, #tpu.memory_space<vmem>>, vector<10x1x128xf32>,
    %c0_191 = arith.constant 0 : index
    %c7_192 = arith.constant 7 : index
    %c0_193 = arith.constant 0 : index
    %156 = vector.load %arg15[%c0_191, %c7_192, %c0_193] : memref<10x10x128xf32, #tpu.memory_space<vmem>>, vector<10x1x128xf32>
    %c0_194 = arith.constant 0 : index
    %c9_195 = arith.constant 9 : index
    %c0_196 = arith.constant 0 : index
    %157 = vector.load %arg15[%c0_194, %c9_195, %c0_196] : memref<10x10x128xf32, #tpu.memory_space<vmem>>, vector<10x1x128xf32>
    tpu.vector_store %arg15[%c0_194, %c9_195, %c0_196], %156 {strides = array<i32>} : memref<10x10x128xf32, #tpu.memory_space<vmem>>, vector<10x1x128xf32>,
    %cst_197 = arith.constant 0.000000e+00 : f32
    %158 = vector.broadcast %cst_197 : f32 to vector<64x128xf32>
    %c0_198 = arith.constant 0 : index
    %c0_199 = arith.constant 0 : index
    %c0_200 = arith.constant 0 : index
    %159 = vector.load %arg15[%c0_198, %c0_199, %c0_200] : memref<10x10x128xf32, #tpu.memory_space<vmem>>, vector<8x8x128xf32>
    %160 = arith.truncf %159 : vector<8x8x128xf32> to vector<8x8x128xbf16>
    %161 = vector.shape_cast %160 : vector<8x8x128xbf16> to vector<64x128xbf16>
    %c0_201 = arith.constant 0 : index
    %c0_202 = arith.constant 0 : index
    %c0_203 = arith.constant 0 : index
    %c0_204 = arith.constant 0 : index
    %162 = vector.load %arg9[%c0_201, %c0_202, %c0_203, %c0_204] : memref<3x3x128x128xbf16, #tpu.memory_space<vmem>>, vector<1x1x128x128xbf16>
    %163 = vector.shape_cast %162 : vector<1x1x128x128xbf16> to vector<128x128xbf16>
    %cst_205 = arith.constant dense<0.000000e+00> : vector<64x128xf32>
    %164 = tpu.matmul %161, %163, %cst_205 {dimension_numbers = #tpu.dot_dimension_numbers<[1], [0], [0], [1], [0, 0, 1, 1], [], []>} : vector<64x128xbf16>, vector<128x128xbf16>, vector<64x128xf32> -> vector<64x128xf32>
    %165 = arith.addf %158, %164 : vector<64x128xf32>
    %c0_206 = arith.constant 0 : index
    %c1_207 = arith.constant 1 : index
    %c0_208 = arith.constant 0 : index
    %166 = vector.load %arg15[%c0_206, %c1_207, %c0_208] : memref<10x10x128xf32, #tpu.memory_space<vmem>>, vector<8x8x128xf32>
    %167 = arith.truncf %166 : vector<8x8x128xf32> to vector<8x8x128xbf16>
    %168 = vector.shape_cast %167 : vector<8x8x128xbf16> to vector<64x128xbf16>
    %c0_209 = arith.constant 0 : index
    %c1_210 = arith.constant 1 : index
    %c0_211 = arith.constant 0 : index
    %c0_212 = arith.constant 0 : index
    %169 = vector.load %arg9[%c0_209, %c1_210, %c0_211, %c0_212] : memref<3x3x128x128xbf16, #tpu.memory_space<vmem>>, vector<1x1x128x128xbf16>
    %170 = vector.shape_cast %169 : vector<1x1x128x128xbf16> to vector<128x128xbf16>
    %cst_213 = arith.constant dense<0.000000e+00> : vector<64x128xf32>
    %171 = tpu.matmul %168, %170, %cst_213 {dimension_numbers = #tpu.dot_dimension_numbers<[1], [0], [0], [1], [0, 0, 1, 1], [], []>} : vector<64x128xbf16>, vector<128x128xbf16>, vector<64x128xf32> -> vector<64x128xf32>
    %172 = arith.addf %165, %171 : vector<64x128xf32>
    %c0_214 = arith.constant 0 : index
    %c2_215 = arith.constant 2 : index
    %c0_216 = arith.constant 0 : index
    %173 = vector.load %arg15[%c0_214, %c2_215, %c0_216] : memref<10x10x128xf32, #tpu.memory_space<vmem>>, vector<8x8x128xf32>
    %174 = arith.truncf %173 : vector<8x8x128xf32> to vector<8x8x128xbf16>
    %175 = vector.shape_cast %174 : vector<8x8x128xbf16> to vector<64x128xbf16>
    %c0_217 = arith.constant 0 : index
    %c2_218 = arith.constant 2 : index
    %c0_219 = arith.constant 0 : index
    %c0_220 = arith.constant 0 : index
    %176 = vector.load %arg9[%c0_217, %c2_218, %c0_219, %c0_220] : memref<3x3x128x128xbf16, #tpu.memory_space<vmem>>, vector<1x1x128x128xbf16>
    %177 = vector.shape_cast %176 : vector<1x1x128x128xbf16> to vector<128x128xbf16>
    %cst_221 = arith.constant dense<0.000000e+00> : vector<64x128xf32>
    %178 = tpu.matmul %175, %177, %cst_221 {dimension_numbers = #tpu.dot_dimension_numbers<[1], [0], [0], [1], [0, 0, 1, 1], [], []>} : vector<64x128xbf16>, vector<128x128xbf16>, vector<64x128xf32> -> vector<64x128xf32>
    %179 = arith.addf %172, %178 : vector<64x128xf32>
    %c1_222 = arith.constant 1 : index
    %c0_223 = arith.constant 0 : index
    %c0_224 = arith.constant 0 : index
    %180 = vector.load %arg15[%c1_222, %c0_223, %c0_224] : memref<10x10x128xf32, #tpu.memory_space<vmem>>, vector<8x8x128xf32>
    %181 = arith.truncf %180 : vector<8x8x128xf32> to vector<8x8x128xbf16>
    %182 = vector.shape_cast %181 : vector<8x8x128xbf16> to vector<64x128xbf16>
    %c1_225 = arith.constant 1 : index
    %c0_226 = arith.constant 0 : index
    %c0_227 = arith.constant 0 : index
    %c0_228 = arith.constant 0 : index
    %183 = vector.load %arg9[%c1_225, %c0_226, %c0_227, %c0_228] : memref<3x3x128x128xbf16, #tpu.memory_space<vmem>>, vector<1x1x128x128xbf16>
    %184 = vector.shape_cast %183 : vector<1x1x128x128xbf16> to vector<128x128xbf16>
    %cst_229 = arith.constant dense<0.000000e+00> : vector<64x128xf32>
    %185 = tpu.matmul %182, %184, %cst_229 {dimension_numbers = #tpu.dot_dimension_numbers<[1], [0], [0], [1], [0, 0, 1, 1], [], []>} : vector<64x128xbf16>, vector<128x128xbf16>, vector<64x128xf32> -> vector<64x128xf32>
    %186 = arith.addf %179, %185 : vector<64x128xf32>
    %c1_230 = arith.constant 1 : index
    %c1_231 = arith.constant 1 : index
    %c0_232 = arith.constant 0 : index
    %187 = vector.load %arg15[%c1_230, %c1_231, %c0_232] : memref<10x10x128xf32, #tpu.memory_space<vmem>>, vector<8x8x128xf32>
    %188 = arith.truncf %187 : vector<8x8x128xf32> to vector<8x8x128xbf16>
    %189 = vector.shape_cast %188 : vector<8x8x128xbf16> to vector<64x128xbf16>
    %c1_233 = arith.constant 1 : index
    %c1_234 = arith.constant 1 : index
    %c0_235 = arith.constant 0 : index
    %c0_236 = arith.constant 0 : index
    %190 = vector.load %arg9[%c1_233, %c1_234, %c0_235, %c0_236] : memref<3x3x128x128xbf16, #tpu.memory_space<vmem>>, vector<1x1x128x128xbf16>
    %191 = vector.shape_cast %190 : vector<1x1x128x128xbf16> to vector<128x128xbf16>
    %cst_237 = arith.constant dense<0.000000e+00> : vector<64x128xf32>
    %192 = tpu.matmul %189, %191, %cst_237 {dimension_numbers = #tpu.dot_dimension_numbers<[1], [0], [0], [1], [0, 0, 1, 1], [], []>} : vector<64x128xbf16>, vector<128x128xbf16>, vector<64x128xf32> -> vector<64x128xf32>
    %193 = arith.addf %186, %192 : vector<64x128xf32>
    %c1_238 = arith.constant 1 : index
    %c2_239 = arith.constant 2 : index
    %c0_240 = arith.constant 0 : index
    %194 = vector.load %arg15[%c1_238, %c2_239, %c0_240] : memref<10x10x128xf32, #tpu.memory_space<vmem>>, vector<8x8x128xf32>
    %195 = arith.truncf %194 : vector<8x8x128xf32> to vector<8x8x128xbf16>
    %196 = vector.shape_cast %195 : vector<8x8x128xbf16> to vector<64x128xbf16>
    %c1_241 = arith.constant 1 : index
    %c2_242 = arith.constant 2 : index
    %c0_243 = arith.constant 0 : index
    %c0_244 = arith.constant 0 : index
    %197 = vector.load %arg9[%c1_241, %c2_242, %c0_243, %c0_244] : memref<3x3x128x128xbf16, #tpu.memory_space<vmem>>, vector<1x1x128x128xbf16>
    %198 = vector.shape_cast %197 : vector<1x1x128x128xbf16> to vector<128x128xbf16>
    %cst_245 = arith.constant dense<0.000000e+00> : vector<64x128xf32>
    %199 = tpu.matmul %196, %198, %cst_245 {dimension_numbers = #tpu.dot_dimension_numbers<[1], [0], [0], [1], [0, 0, 1, 1], [], []>} : vector<64x128xbf16>, vector<128x128xbf16>, vector<64x128xf32> -> vector<64x128xf32>
    %200 = arith.addf %193, %199 : vector<64x128xf32>
    %c2_246 = arith.constant 2 : index
    %c0_247 = arith.constant 0 : index
    %c0_248 = arith.constant 0 : index
    %201 = vector.load %arg15[%c2_246, %c0_247, %c0_248] : memref<10x10x128xf32, #tpu.memory_space<vmem>>, vector<8x8x128xf32>
    %202 = arith.truncf %201 : vector<8x8x128xf32> to vector<8x8x128xbf16>
    %203 = vector.shape_cast %202 : vector<8x8x128xbf16> to vector<64x128xbf16>
    %c2_249 = arith.constant 2 : index
    %c0_250 = arith.constant 0 : index
    %c0_251 = arith.constant 0 : index
    %c0_252 = arith.constant 0 : index
    %204 = vector.load %arg9[%c2_249, %c0_250, %c0_251, %c0_252] : memref<3x3x128x128xbf16, #tpu.memory_space<vmem>>, vector<1x1x128x128xbf16>
    %205 = vector.shape_cast %204 : vector<1x1x128x128xbf16> to vector<128x128xbf16>
    %cst_253 = arith.constant dense<0.000000e+00> : vector<64x128xf32>
    %206 = tpu.matmul %203, %205, %cst_253 {dimension_numbers = #tpu.dot_dimension_numbers<[1], [0], [0], [1], [0, 0, 1, 1], [], []>} : vector<64x128xbf16>, vector<128x128xbf16>, vector<64x128xf32> -> vector<64x128xf32>
    %207 = arith.addf %200, %206 : vector<64x128xf32>
    %c2_254 = arith.constant 2 : index
    %c1_255 = arith.constant 1 : index
    %c0_256 = arith.constant 0 : index
    %208 = vector.load %arg15[%c2_254, %c1_255, %c0_256] : memref<10x10x128xf32, #tpu.memory_space<vmem>>, vector<8x8x128xf32>
    %209 = arith.truncf %208 : vector<8x8x128xf32> to vector<8x8x128xbf16>
    %210 = vector.shape_cast %209 : vector<8x8x128xbf16> to vector<64x128xbf16>
    %c2_257 = arith.constant 2 : index
    %c1_258 = arith.constant 1 : index
    %c0_259 = arith.constant 0 : index
    %c0_260 = arith.constant 0 : index
    %211 = vector.load %arg9[%c2_257, %c1_258, %c0_259, %c0_260] : memref<3x3x128x128xbf16, #tpu.memory_space<vmem>>, vector<1x1x128x128xbf16>
    %212 = vector.shape_cast %211 : vector<1x1x128x128xbf16> to vector<128x128xbf16>
    %cst_261 = arith.constant dense<0.000000e+00> : vector<64x128xf32>
    %213 = tpu.matmul %210, %212, %cst_261 {dimension_numbers = #tpu.dot_dimension_numbers<[1], [0], [0], [1], [0, 0, 1, 1], [], []>} : vector<64x128xbf16>, vector<128x128xbf16>, vector<64x128xf32> -> vector<64x128xf32>
    %214 = arith.addf %207, %213 : vector<64x128xf32>
    %c2_262 = arith.constant 2 : index
    %c2_263 = arith.constant 2 : index
    %c0_264 = arith.constant 0 : index
    %215 = vector.load %arg15[%c2_262, %c2_263, %c0_264] : memref<10x10x128xf32, #tpu.memory_space<vmem>>, vector<8x8x128xf32>
    %216 = arith.truncf %215 : vector<8x8x128xf32> to vector<8x8x128xbf16>
    %217 = vector.shape_cast %216 : vector<8x8x128xbf16> to vector<64x128xbf16>
    %c2_265 = arith.constant 2 : index
    %c2_266 = arith.constant 2 : index
    %c0_267 = arith.constant 0 : index
    %c0_268 = arith.constant 0 : index
    %218 = vector.load %arg9[%c2_265, %c2_266, %c0_267, %c0_268] : memref<3x3x128x128xbf16, #tpu.memory_space<vmem>>, vector<1x1x128x128xbf16>
    %219 = vector.shape_cast %218 : vector<1x1x128x128xbf16> to vector<128x128xbf16>
    %cst_269 = arith.constant dense<0.000000e+00> : vector<64x128xf32>
    %220 = tpu.matmul %217, %219, %cst_269 {dimension_numbers = #tpu.dot_dimension_numbers<[1], [0], [0], [1], [0, 0, 1, 1], [], []>} : vector<64x128xbf16>, vector<128x128xbf16>, vector<64x128xf32> -> vector<64x128xf32>
    %221 = arith.addf %214, %220 : vector<64x128xf32>
    %c0_270 = arith.constant 0 : index
    %c0_271 = arith.constant 0 : index
    %222 = vector.load %arg10[%c0_270, %c0_271] : memref<1x128xf32, #tpu.memory_space<vmem>>, vector<1x128xf32>
    %223 = vector.broadcast %222 : vector<1x128xf32> to vector<64x128xf32>
    %224 = arith.addf %221, %223 : vector<64x128xf32>
    %cst_272 = arith.constant 0.000000e+00 : f32
    %225 = vector.broadcast %cst_272 : f32 to vector<64x128xf32>
    %226 = arith.maximumf %224, %225 : vector<64x128xf32>
    %cst_273 = arith.constant dense<0.000000e+00> : vector<128xf32>
    %227 = vector.multi_reduction <add>, %226, %cst_273 [0] : vector<64x128xf32> to vector<128xf32>
    %228 = vector.shape_cast %227 : vector<128xf32> to vector<1x128xf32>
    %cst_274 = arith.constant 6.400000e+01 : f32
    %229 = vector.broadcast %cst_274 : f32 to vector<1x128xf32>
    %230 = arith.divf %228, %229 : vector<1x128xf32>
    %231 = vector.broadcast %230 : vector<1x128xf32> to vector<64x128xf32>
    %232 = arith.subf %226, %231 : vector<64x128xf32>
    %233 = arith.mulf %232, %232 : vector<64x128xf32>
    %cst_275 = arith.constant dense<0.000000e+00> : vector<128xf32>
    %234 = vector.multi_reduction <add>, %233, %cst_275 [0] : vector<64x128xf32> to vector<128xf32>
    %235 = vector.shape_cast %234 : vector<128xf32> to vector<1x128xf32>
    %cst_276 = arith.constant 6.400000e+01 : f32
    %236 = vector.broadcast %cst_276 : f32 to vector<1x128xf32>
    %237 = arith.divf %235, %236 : vector<1x128xf32>
    %238 = vector.broadcast %230 : vector<1x128xf32> to vector<64x128xf32>
    %239 = arith.subf %226, %238 : vector<64x128xf32>
    %cst_277 = arith.constant 9.99999974E-6 : f32
    %240 = vector.broadcast %cst_277 : f32 to vector<1x128xf32>
    %241 = arith.addf %237, %240 : vector<1x128xf32>
    %242 = math.rsqrt %241 : vector<1x128xf32>
    %243 = vector.broadcast %242 : vector<1x128xf32> to vector<64x128xf32>
    %244 = arith.mulf %239, %243 : vector<64x128xf32>
    %c0_278 = arith.constant 0 : index
    %c0_279 = arith.constant 0 : index
    %245 = vector.load %arg11[%c0_278, %c0_279] : memref<1x128xf32, #tpu.memory_space<vmem>>, vector<1x128xf32>
    %246 = vector.broadcast %245 : vector<1x128xf32> to vector<64x128xf32>
    %247 = arith.mulf %244, %246 : vector<64x128xf32>
    %c0_280 = arith.constant 0 : index
    %c0_281 = arith.constant 0 : index
    %248 = vector.load %arg12[%c0_280, %c0_281] : memref<1x128xf32, #tpu.memory_space<vmem>>, vector<1x128xf32>
    %249 = vector.broadcast %248 : vector<1x128xf32> to vector<64x128xf32>
    %250 = arith.addf %247, %249 : vector<64x128xf32>
    %251 = vector.shape_cast %250 : vector<64x128xf32> to vector<8x8x128xf32>
    %c0_282 = arith.constant 0 : index
    %c0_283 = arith.constant 0 : index
    %c0_284 = arith.constant 0 : index
    %c0_285 = arith.constant 0 : index
    %252 = vector.load %arg13[%c0_282, %c0_283, %c0_284, %c0_285] : memref<1x8x8x128xf32, #tpu.memory_space<vmem>>, vector<1x8x8x128xf32>
    %253 = vector.shape_cast %252 : vector<1x8x8x128xf32> to vector<8x8x128xf32>
    %254 = vector.shape_cast %251 : vector<8x8x128xf32> to vector<1x8x8x128xf32>
    tpu.vector_store %arg13[%c0_282, %c0_283, %c0_284, %c0_285], %254 {strides = array<i32>} : memref<1x8x8x128xf32, #tpu.memory_space<vmem>>, vector<1x8x8x128xf32>,
    return
  }
  func.func @transform_0(%arg0: i32) -> (i32, i32, i32, i32) {
    %c0_i32 = arith.constant 0 : i32
    %c0_i32_0 = arith.constant 0 : i32
    %c0_i32_1 = arith.constant 0 : i32
    %c0_i32_2 = arith.constant 0 : i32
    return %arg0, %c0_i32, %c0_i32_0, %c0_i32_1 : i32, i32, i32, i32
  }
  func.func @transform_1(%arg0: i32) -> (i32, i32, i32, i32) {
    %c0_i32 = arith.constant 0 : i32
    %c0_i32_0 = arith.constant 0 : i32
    %c0_i32_1 = arith.constant 0 : i32
    %c0_i32_2 = arith.constant 0 : i32
    return %arg0, %c0_i32, %c0_i32_0, %c0_i32_1 : i32, i32, i32, i32
  }
  func.func @transform_2(%arg0: i32) -> (i32, i32, i32, i32) {
    %c0_i32 = arith.constant 0 : i32
    %c0_i32_0 = arith.constant 0 : i32
    %c0_i32_1 = arith.constant 0 : i32
    %c0_i32_2 = arith.constant 0 : i32
    return %arg0, %c0_i32, %c0_i32_0, %c0_i32_1 : i32, i32, i32, i32
  }
  func.func @transform_3(%arg0: i32) -> (i32, i32, i32, i32) {
    %c0_i32 = arith.constant 0 : i32
    %c0_i32_0 = arith.constant 0 : i32
    %c0_i32_1 = arith.constant 0 : i32
    %c0_i32_2 = arith.constant 0 : i32
    return %arg0, %c0_i32, %c0_i32_0, %c0_i32_1 : i32, i32, i32, i32
  }
  func.func @transform_4(%arg0: i32) -> (i32, i32, i32, i32) {
    %c0_i32 = arith.constant 0 : i32
    %c0_i32_0 = arith.constant 0 : i32
    %c0_i32_1 = arith.constant 0 : i32
    %c0_i32_2 = arith.constant 0 : i32
    %c0_i32_3 = arith.constant 0 : i32
    return %c0_i32, %c0_i32_0, %c0_i32_1, %c0_i32_2 : i32, i32, i32, i32
  }
  func.func @transform_5(%arg0: i32) -> (i32, i32) {
    %c0_i32 = arith.constant 0 : i32
    %c0_i32_0 = arith.constant 0 : i32
    %c0_i32_1 = arith.constant 0 : i32
    return %c0_i32, %c0_i32_0 : i32, i32
  }
  func.func @transform_6(%arg0: i32) -> (i32, i32, i32, i32) {
    %c0_i32 = arith.constant 0 : i32
    %c0_i32_0 = arith.constant 0 : i32
    %c0_i32_1 = arith.constant 0 : i32
    %c0_i32_2 = arith.constant 0 : i32
    %c0_i32_3 = arith.constant 0 : i32
    return %c0_i32, %c0_i32_0, %c0_i32_1, %c0_i32_2 : i32, i32, i32, i32
  }
  func.func @transform_7(%arg0: i32) -> (i32, i32) {
    %c0_i32 = arith.constant 0 : i32
    %c0_i32_0 = arith.constant 0 : i32
    %c0_i32_1 = arith.constant 0 : i32
    return %c0_i32, %c0_i32_0 : i32, i32
  }
  func.func @transform_8(%arg0: i32) -> (i32, i32, i32, i32) {
    %c0_i32 = arith.constant 0 : i32
    %c0_i32_0 = arith.constant 0 : i32
    %c0_i32_1 = arith.constant 0 : i32
    %c0_i32_2 = arith.constant 0 : i32
    %c0_i32_3 = arith.constant 0 : i32
    return %c0_i32, %c0_i32_0, %c0_i32_1, %c0_i32_2 : i32, i32, i32, i32
  }
  func.func @transform_9(%arg0: i32) -> (i32, i32) {
    %c0_i32 = arith.constant 0 : i32
    %c0_i32_0 = arith.constant 0 : i32
    %c0_i32_1 = arith.constant 0 : i32
    return %c0_i32, %c0_i32_0 : i32, i32
  }
  func.func @transform_10(%arg0: i32) -> (i32, i32) {
    %c0_i32 = arith.constant 0 : i32
    %c0_i32_0 = arith.constant 0 : i32
    %c0_i32_1 = arith.constant 0 : i32
    return %c0_i32, %c0_i32_0 : i32, i32
  }
  func.func @transform_11(%arg0: i32) -> (i32, i32) {
    %c0_i32 = arith.constant 0 : i32
    %c0_i32_0 = arith.constant 0 : i32
    %c0_i32_1 = arith.constant 0 : i32
    return %c0_i32, %c0_i32_0 : i32, i32
  }
  func.func @transform_12(%arg0: i32) -> (i32, i32, i32, i32) {
    %c0_i32 = arith.constant 0 : i32
    %c0_i32_0 = arith.constant 0 : i32
    %c0_i32_1 = arith.constant 0 : i32
    %c0_i32_2 = arith.constant 0 : i32
    return %arg0, %c0_i32, %c0_i32_0, %c0_i32_1 : i32, i32, i32, i32
  }
}

</mosaic_0001>

<llo_original>
// kernel: down_forward.1
$region0: #{down_forward.1}
  #allocation0 [shape = 'u32[]', space=smem, size = 0x4, offset = 0x4, fixed_abs, tag = 'smem constant byte address 0x4 - core index']
  #allocation1 [shape = 'u32[144,128]{1,0:T(1,128)}', space=vmem, size = 0x12000, scoped, tag = 'internal scratch']
  #allocation2 [shape = 'f32[10,10,128]{2,1,0:T(8,128)}', space=vmem, size = 0x14000, scoped, tag = 'scratch operand']
  #allocation3 [shape = 'f32[10,10,128]{2,1,0:T(8,128)}', space=vmem, size = 0x14000, scoped, tag = 'scratch operand']
  %s0 = inlined_call_operand.vmem [shape: bf16[2,9,9,4], index: 0, kind: input, shape index: {}]
  %s1 = inlined_call_operand.vmem [shape: bf16[2,9,9,4], index: 1, kind: input, shape index: {}]
  %s2 = inlined_call_operand.vmem [shape: bf16[2,9,9,4], index: 2, kind: input, shape index: {}]
  %s3 = inlined_call_operand.vmem [shape: bf16[2,9,9,4], index: 3, kind: input, shape index: {}]
  %s4 = inlined_call_operand.vmem [shape: bf16[3,3,4,128], index: 4, kind: input, shape index: {}]
  %s5 = inlined_call_operand.vmem [shape: f32[1,128], index: 5, kind: input, shape index: {}]
  %s6 = inlined_call_operand.vmem [shape: bf16[3,3,128,128], index: 6, kind: input, shape index: {}]
  %s7 = inlined_call_operand.vmem [shape: f32[1,128], index: 7, kind: input, shape index: {}]
  %s8 = inlined_call_operand.vmem [shape: bf16[3,3,128,128], index: 8, kind: input, shape index: {}]
  %s9 = inlined_call_operand.vmem [shape: f32[1,128], index: 9, kind: input, shape index: {}]
  %s10 = inlined_call_operand.vmem [shape: f32[1,128], index: 10, kind: input, shape index: {}]
  %s11 = inlined_call_operand.vmem [shape: f32[1,128], index: 11, kind: input, shape index: {}]
  %s12 = inlined_call_operand.vmem [shape: f32[2,8,8,128], index: 12, kind: output, shape index: {}]
  %s13 = sld [smem:[#allocation0]]
  $region81: #{down_forward.1} parent=0
    _
  %s15 = ssub.s32 1, %s13
  %s16 = scalar_select 0, %s15, %s13
  loop: start=0, step=1, limit=4
  $region2: #{down_forward.1} parent=0 // loop_pre_header
    _
  $region3: #{down_forward.1} parent=0 // loop_header
    %s18 = sphi 0, %s22
    %p19 = scmp.ge.s32.totalorder %s18, 4
    %s28 = sphi 0, %s30
    %s31 = sphi 0, %s28
    %s32 = sphi 0, %s31
    %s48 = sphi 0, %s32
    %s54 = sphi 0, %s56
    %s57 = sphi 0, %s54
    %s58 = sphi 0, %s57
    %s74 = sphi 0, %s58
    %s80 = sphi 0, %s82
    %s83 = sphi 0, %s80
    %s84 = sphi 0, %s83
    %s100 = sphi 0, %s84
    %s106 = sphi 0, %s108
    %s109 = sphi 0, %s106
    %s110 = sphi 0, %s109
    %s126 = sphi 0, %s110
    %s130 = sphi 0, %s130
    %s132 = sphi 0, %s130
    %s133 = sphi 0, %s132
    %s147 = sphi 0, %s133
    %s151 = sphi 0, %s151
    %s153 = sphi 0, %s151
    %s154 = sphi 0, %s153
    %s168 = sphi 0, %s154
    %s172 = sphi 0, %s172
    %s174 = sphi 0, %s172
    %s175 = sphi 0, %s174
    %s189 = sphi 0, %s175
    %s193 = sphi 0, %s193
    %s195 = sphi 0, %s193
    %s196 = sphi 0, %s195
    %s210 = sphi 0, %s196
    %s214 = sphi 0, %s214
    %s216 = sphi 0, %s214
    %s217 = sphi 0, %s216
    %s231 = sphi 0, %s217
    %s235 = sphi 0, %s235
    %s237 = sphi 0, %s235
    %s238 = sphi 0, %s237
    %s252 = sphi 0, %s238
    %s256 = sphi 0, %s256
    %s258 = sphi 0, %s256
    %s259 = sphi 0, %s258
    %s273 = sphi 0, %s259
    %s277 = sphi 0, %s277
    %s279 = sphi 0, %s277
    %s280 = sphi 0, %s279
    %s294 = sphi 0, %s280
    %s300 = sphi 0, %s302
    %s303 = sphi 0, %s300
    %s304 = sphi 0, %s303
    %s320 = sphi 0, %s304
  $region4: #{down_forward.1} parent=0 // loop_header_branch
    %21 = sbr.rel (%p19) target = $region8
  $region5: #{down_forward.1} parent=0 // loop_body
    %s23 = ssub.s32 %s18, 1
    %s24 = ssub.s32 %s18, 2
    %s25 = sadd.s32 %s18, 1
    %s26 = ssub.s32 %s18, %s25
    %p27 = scmp.eq.s32.totalorder %s26, 0
    %s29 = sadd.s32 %s28, 1
    %s30 = scalar_select %p27, %s28, %s29
    %p33 = pneg %p27
    %p34 = scmp.eq.s32.totalorder %s18, 1
    %p35 = por %p33, %p34
    %p36 = scmp.ne.s32.totalorder %s28, %s31
    %p37 = scmp.eq.s32.totalorder %s18, 0
    %p38 = por %p36, %p37
    %p39 = scmp.ne.s32.totalorder %s28, %s31
    %p40 = scmp.eq.s32.totalorder %s23, 1
    %p41 = por %p39, %p40
    %p42 = scmp.ne.s32.totalorder %s31, %s32
    %p43 = scmp.eq.s32.totalorder %s23, 0
    %p44 = por %p42, %p43
    %p45 = scmp.ne.s32.totalorder %s31, %s32
    %p46 = scmp.eq.s32.totalorder %s24, 1
    %p47 = por %p45, %p46
    %p49 = scmp.ne.s32.totalorder %s32, %s48
    %p50 = scmp.eq.s32.totalorder %s24, 0
    %p51 = por %p49, %p50
    %s52 = ssub.s32 %s18, %s25
    %p53 = scmp.eq.s32.totalorder %s52, 0
    %s55 = sadd.s32 %s54, 1
    %s56 = scalar_select %p53, %s54, %s55
    %p59 = pneg %p53
    %p60 = scmp.eq.s32.totalorder %s18, 1
    %p61 = por %p59, %p60
    %p62 = scmp.ne.s32.totalorder %s54, %s57
    %p63 = scmp.eq.s32.totalorder %s18, 0
    %p64 = por %p62, %p63
    %p65 = scmp.ne.s32.totalorder %s54, %s57
    %p66 = scmp.eq.s32.totalorder %s23, 1
    %p67 = por %p65, %p66
    %p68 = scmp.ne.s32.totalorder %s57, %s58
    %p69 = scmp.eq.s32.totalorder %s23, 0
    %p70 = por %p68, %p69
    %p71 = scmp.ne.s32.totalorder %s57, %s58
    %p72 = scmp.eq.s32.totalorder %s24, 1
    %p73 = por %p71, %p72
    %p75 = scmp.ne.s32.totalorder %s58, %s74
    %p76 = scmp.eq.s32.totalorder %s24, 0
    %p77 = por %p75, %p76
    %s78 = ssub.s32 %s18, %s25
    %p79 = scmp.eq.s32.totalorder %s78, 0
    %s81 = sadd.s32 %s80, 1
    %s82 = scalar_select %p79, %s80, %s81
    %p85 = pneg %p79
    %p86 = scmp.eq.s32.totalorder %s18, 1
    %p87 = por %p85, %p86
    %p88 = scmp.ne.s32.totalorder %s80, %s83
    %p89 = scmp.eq.s32.totalorder %s18, 0
    %p90 = por %p88, %p89
    %p91 = scmp.ne.s32.totalorder %s80, %s83
    %p92 = scmp.eq.s32.totalorder %s23, 1
    %p93 = por %p91, %p92
    %p94 = scmp.ne.s32.totalorder %s83, %s84
    %p95 = scmp.eq.s32.totalorder %s23, 0
    %p96 = por %p94, %p95
    %p97 = scmp.ne.s32.totalorder %s83, %s84
    %p98 = scmp.eq.s32.totalorder %s24, 1
    %p99 = por %p97, %p98
    %p101 = scmp.ne.s32.totalorder %s84, %s100
    %p102 = scmp.eq.s32.totalorder %s24, 0
    %p103 = por %p101, %p102
    %s104 = ssub.s32 %s18, %s25
    %p105 = scmp.eq.s32.totalorder %s104, 0
    %s107 = sadd.s32 %s106, 1
    %s108 = scalar_select %p105, %s106, %s107
    %p111 = pneg %p105
    %p112 = scmp.eq.s32.totalorder %s18, 1
    %p113 = por %p111, %p112
    %p114 = scmp.ne.s32.totalorder %s106, %s109
    %p115 = scmp.eq.s32.totalorder %s18, 0
    %p116 = por %p114, %p115
    %p117 = scmp.ne.s32.totalorder %s106, %s109
    %p118 = scmp.eq.s32.totalorder %s23, 1
    %p119 = por %p117, %p118
    %p120 = scmp.ne.s32.totalorder %s109, %s110
    %p121 = scmp.eq.s32.totalorder %s23, 0
    %p122 = por %p120, %p121
    %p123 = scmp.ne.s32.totalorder %s109, %s110
    %p124 = scmp.eq.s32.totalorder %s24, 1
    %p125 = por %p123, %p124
    %p127 = scmp.ne.s32.totalorder %s110, %s126
    %p128 = scmp.eq.s32.totalorder %s24, 0
    %p129 = por %p127, %p128
    %s131 = sadd.s32 %s130, 1
    %p134 = scmp.eq.s32.totalorder %s18, 1
    %p135 = scmp.ne.s32.totalorder %s130, %s132
    %p136 = scmp.eq.s32.totalorder %s18, 0
    %p137 = por %p135, %p136
    %p138 = scmp.ne.s32.totalorder %s130, %s132
    %p139 = scmp.eq.s32.totalorder %s23, 1
    %p140 = por %p138, %p139
    %p141 = scmp.ne.s32.totalorder %s132, %s133
    %p142 = scmp.eq.s32.totalorder %s23, 0
    %p143 = por %p141, %p142
    %p144 = scmp.ne.s32.totalorder %s132, %s133
    %p145 = scmp.eq.s32.totalorder %s24, 1
    %p146 = por %p144, %p145
    %p148 = scmp.ne.s32.totalorder %s133, %s147
    %p149 = scmp.eq.s32.totalorder %s24, 0
    %p150 = por %p148, %p149
    %s152 = sadd.s32 %s151, 1
    %p155 = scmp.eq.s32.totalorder %s18, 1
    %p156 = scmp.ne.s32.totalorder %s151, %s153
    %p157 = scmp.eq.s32.totalorder %s18, 0
    %p158 = por %p156, %p157
    %p159 = scmp.ne.s32.totalorder %s151, %s153
    %p160 = scmp.eq.s32.totalorder %s23, 1
    %p161 = por %p159, %p160
    %p162 = scmp.ne.s32.totalorder %s153, %s154
    %p163 = scmp.eq.s32.totalorder %s23, 0
    %p164 = por %p162, %p163
    %p165 = scmp.ne.s32.totalorder %s153, %s154
    %p166 = scmp.eq.s32.totalorder %s24, 1
    %p167 = por %p165, %p166
    %p169 = scmp.ne.s32.totalorder %s154, %s168
    %p170 = scmp.eq.s32.totalorder %s24, 0
    %p171 = por %p169, %p170
    %s173 = sadd.s32 %s172, 1
    %p176 = scmp.eq.s32.totalorder %s18, 1
    %p177 = scmp.ne.s32.totalorder %s172, %s174
    %p178 = scmp.eq.s32.totalorder %s18, 0
    %p179 = por %p177, %p178
    %p180 = scmp.ne.s32.totalorder %s172, %s174
    %p181 = scmp.eq.s32.totalorder %s23, 1
    %p182 = por %p180, %p181
    %p183 = scmp.ne.s32.totalorder %s174, %s175
    %p184 = scmp.eq.s32.totalorder %s23, 0
    %p185 = por %p183, %p184
    %p186 = scmp.ne.s32.totalorder %s174, %s175
    %p187 = scmp.eq.s32.totalorder %s24, 1
    %p188 = por %p186, %p187
    %p190 = scmp.ne.s32.totalorder %s175, %s189
    %p191 = scmp.eq.s32.totalorder %s24, 0
    %p192 = por %p190, %p191
    %s194 = sadd.s32 %s193, 1
    %p197 = scmp.eq.s32.totalorder %s18, 1
    %p198 = scmp.ne.s32.totalorder %s193, %s195
    %p199 = scmp.eq.s32.totalorder %s18, 0
    %p200 = por %p198, %p199
    %p201 = scmp.ne.s32.totalorder %s193, %s195
    %p202 = scmp.eq.s32.totalorder %s23, 1
    %p203 = por %p201, %p202
    %p204 = scmp.ne.s32.totalorder %s195, %s196
    %p205 = scmp.eq.s32.totalorder %s23, 0
    %p206 = por %p204, %p205
    %p207 = scmp.ne.s32.totalorder %s195, %s196
    %p208 = scmp.eq.s32.totalorder %s24, 1
    %p209 = por %p207, %p208
    %p211 = scmp.ne.s32.totalorder %s196, %s210
    %p212 = scmp.eq.s32.totalorder %s24, 0
    %p213 = por %p211, %p212
    %s215 = sadd.s32 %s214, 1
    %p218 = scmp.eq.s32.totalorder %s18, 1
    %p219 = scmp.ne.s32.totalorder %s214, %s216
    %p220 = scmp.eq.s32.totalorder %s18, 0
    %p221 = por %p219, %p220
    %p222 = scmp.ne.s32.totalorder %s214, %s216
    %p223 = scmp.eq.s32.totalorder %s23, 1
    %p224 = por %p222, %p223
    %p225 = scmp.ne.s32.totalorder %s216, %s217
    %p226 = scmp.eq.s32.totalorder %s23, 0
    %p227 = por %p225, %p226
    %p228 = scmp.ne.s32.totalorder %s216, %s217
    %p229 = scmp.eq.s32.totalorder %s24, 1
    %p230 = por %p228, %p229
    %p232 = scmp.ne.s32.totalorder %s217, %s231
    %p233 = scmp.eq.s32.totalorder %s24, 0
    %p234 = por %p232, %p233
    %s236 = sadd.s32 %s235, 1
    %p239 = scmp.eq.s32.totalorder %s18, 1
    %p240 = scmp.ne.s32.totalorder %s235, %s237
    %p241 = scmp.eq.s32.totalorder %s18, 0
    %p242 = por %p240, %p241
    %p243 = scmp.ne.s32.totalorder %s235, %s237
    %p244 = scmp.eq.s32.totalorder %s23, 1
    %p245 = por %p243, %p244
    %p246 = scmp.ne.s32.totalorder %s237, %s238
    %p247 = scmp.eq.s32.totalorder %s23, 0
    %p248 = por %p246, %p247
    %p249 = scmp.ne.s32.totalorder %s237, %s238
    %p250 = scmp.eq.s32.totalorder %s24, 1
    %p251 = por %p249, %p250
    %p253 = scmp.ne.s32.totalorder %s238, %s252
    %p254 = scmp.eq.s32.totalorder %s24, 0
    %p255 = por %p253, %p254
    %s257 = sadd.s32 %s256, 1
    %p260 = scmp.eq.s32.totalorder %s18, 1
    %p261 = scmp.ne.s32.totalorder %s256, %s258
    %p262 = scmp.eq.s32.totalorder %s18, 0
    %p263 = por %p261, %p262
    %p264 = scmp.ne.s32.totalorder %s256, %s258
    %p265 = scmp.eq.s32.totalorder %s23, 1
    %p266 = por %p264, %p265
    %p267 = scmp.ne.s32.totalorder %s258, %s259
    %p268 = scmp.eq.s32.totalorder %s23, 0
    %p269 = por %p267, %p268
    %p270 = scmp.ne.s32.totalorder %s258, %s259
    %p271 = scmp.eq.s32.totalorder %s24, 1
    %p272 = por %p270, %p271
    %p274 = scmp.ne.s32.totalorder %s259, %s273
    %p275 = scmp.eq.s32.totalorder %s24, 0
    %p276 = por %p274, %p275
    %s278 = sadd.s32 %s277, 1
    %p281 = scmp.eq.s32.totalorder %s18, 1
    %p282 = scmp.ne.s32.totalorder %s277, %s279
    %p283 = scmp.eq.s32.totalorder %s18, 0
    %p284 = por %p282, %p283
    %p285 = scmp.ne.s32.totalorder %s277, %s279
    %p286 = scmp.eq.s32.totalorder %s23, 1
    %p287 = por %p285, %p286
    %p288 = scmp.ne.s32.totalorder %s279, %s280
    %p289 = scmp.eq.s32.totalorder %s23, 0
    %p290 = por %p288, %p289
    %p291 = scmp.ne.s32.totalorder %s279, %s280
    %p292 = scmp.eq.s32.totalorder %s24, 1
    %p293 = por %p291, %p292
    %p295 = scmp.ne.s32.totalorder %s280, %s294
    %p296 = scmp.eq.s32.totalorder %s24, 0
    %p297 = por %p295, %p296
    %s298 = ssub.s32 %s18, %s25
    %p299 = scmp.eq.s32.totalorder %s298, 0
    %s301 = sadd.s32 %s300, 1
    %s302 = scalar_select %p299, %s300, %s301
    %p305 = pneg %p299
    %p306 = scmp.eq.s32.totalorder %s18, 1
    %p307 = por %p305, %p306
    %p308 = scmp.ne.s32.totalorder %s300, %s303
    %p309 = scmp.eq.s32.totalorder %s18, 0
    %p310 = por %p308, %p309
    %p311 = scmp.ne.s32.totalorder %s300, %s303
    %p312 = scmp.eq.s32.totalorder %s23, 1
    %p313 = por %p311, %p312
    %p314 = scmp.ne.s32.totalorder %s303, %s304
    %p315 = scmp.eq.s32.totalorder %s23, 0
    %p316 = por %p314, %p315
    %p317 = scmp.ne.s32.totalorder %s303, %s304
    %p318 = scmp.eq.s32.totalorder %s24, 1
    %p319 = por %p317, %p318
    %p321 = scmp.ne.s32.totalorder %s304, %s320
    %p322 = scmp.eq.s32.totalorder %s24, 0
    %p323 = por %p321, %p322
    %p324 = scmp.le.s32.totalorder 1, %s18
    %p325 = scmp.lt.s32.totalorder %s18, 3
    %p326 = pnand %p324, %p325
    %p327 = pneg %p326
    // Predicated region
    $region9: #{down_forward.1} parent=5 // pred_check
      _
    $region10: #{down_forward.1} parent=5 // pred_check_branch
      %329 = sbr.rel (%p326) target = $region12
    $region11: #{down_forward.1} parent=5 // pred_region
      %s330 = ssub.s32 %s18, 1
      // Predicated region
      $region13: #{down_forward.1} parent=11 // pred_check
        %p331 = pneg %p143
      $region14: #{down_forward.1} parent=11 // pred_check_branch
        %333 = sbr.rel (%p331) target = $region16
      $region15: #{down_forward.1} parent=11 // pred_region
        _
      $region16: #{down_forward.1} parent=11 // pred_fallthru
        _
      // Predicated region
      $region17: #{down_forward.1} parent=11 // pred_check
        %p334 = pneg %p164
      $region18: #{down_forward.1} parent=11 // pred_check_branch
        %336 = sbr.rel (%p334) target = $region20
      $region19: #{down_forward.1} parent=11 // pred_region
        _
      $region20: #{down_forward.1} parent=11 // pred_fallthru
        _
      // Predicated region
      $region21: #{down_forward.1} parent=11 // pred_check
        %p337 = pneg %p185
      $region22: #{down_forward.1} parent=11 // pred_check_branch
        %339 = sbr.rel (%p337) target = $region24
      $region23: #{down_forward.1} parent=11 // pred_region
        _
      $region24: #{down_forward.1} parent=11 // pred_fallthru
        _
      // Predicated region
      $region25: #{down_forward.1} parent=11 // pred_check
        %p340 = pneg %p206
      $region26: #{down_forward.1} parent=11 // pred_check_branch
        %342 = sbr.rel (%p340) target = $region28
      $region27: #{down_forward.1} parent=11 // pred_region
        _
      $region28: #{down_forward.1} parent=11 // pred_fallthru
        _
      // Predicated region
      $region29: #{down_forward.1} parent=11 // pred_check
        %p343 = pneg %p227
      $region30: #{down_forward.1} parent=11 // pred_check_branch
        %345 = sbr.rel (%p343) target = $region32
      $region31: #{down_forward.1} parent=11 // pred_region
        _
      $region32: #{down_forward.1} parent=11 // pred_fallthru
        _
      // Predicated region
      $region33: #{down_forward.1} parent=11 // pred_check
        %p346 = pneg %p248
      $region34: #{down_forward.1} parent=11 // pred_check_branch
        %348 = sbr.rel (%p346) target = $region36
      $region35: #{down_forward.1} parent=11 // pred_region
        _
      $region36: #{down_forward.1} parent=11 // pred_fallthru
        _
      // Predicated region
      $region37: #{down_forward.1} parent=11 // pred_check
        %p349 = pneg %p269
      $region38: #{down_forward.1} parent=11 // pred_check_branch
        %351 = sbr.rel (%p349) target = $region40
      $region39: #{down_forward.1} parent=11 // pred_region
        _
      $region40: #{down_forward.1} parent=11 // pred_fallthru
        _
      // Predicated region
      $region41: #{down_forward.1} parent=11 // pred_check
        %p352 = pneg %p290
      $region42: #{down_forward.1} parent=11 // pred_check_branch
        %354 = sbr.rel (%p352) target = $region44
      $region43: #{down_forward.1} parent=11 // pred_region
        _
      $region44: #{down_forward.1} parent=11 // pred_fallthru
        _
    $region12: #{down_forward.1} parent=5 // pred_fallthru
      _
    %p355 = scmp.lt.s32.totalorder %s18, 2
    // Predicated region
    $region45: #{down_forward.1} parent=5 // pred_check
      %p356 = pneg %p355
    $region46: #{down_forward.1} parent=5 // pred_check_branch
      %358 = sbr.rel (%p356) target = $region48
    $region47: #{down_forward.1} parent=5 // pred_region
      // Predicated region
      $region49: #{down_forward.1} parent=47 // pred_check
        %p359 = pneg %p38
      $region50: #{down_forward.1} parent=47 // pred_check_branch
        %361 = sbr.rel (%p359) target = $region52
      $region51: #{down_forward.1} parent=47 // pred_region
        %p362 = scmp.lt.s32.totalorder %s18, 1
        %s363 = scalar_select %p362, %s18, 1
        %s364 = smul.addr %s363, 18
        %s365 = smul.addr %s364, 4
        %s366 = scalar_lea.vmem %s0, %s365
      $region52: #{down_forward.1} parent=47 // pred_fallthru
        _
      // Predicated region
      $region53: #{down_forward.1} parent=47 // pred_check
        %p367 = pneg %p64
      $region54: #{down_forward.1} parent=47 // pred_check_branch
        %369 = sbr.rel (%p367) target = $region56
      $region55: #{down_forward.1} parent=47 // pred_region
        %p370 = scmp.lt.s32.totalorder %s18, 1
        %s371 = scalar_select %p370, %s18, 1
        %s372 = smul.addr %s371, 18
        %s373 = smul.addr %s372, 4
        %s374 = scalar_lea.vmem %s1, %s373
      $region56: #{down_forward.1} parent=47 // pred_fallthru
        _
      // Predicated region
      $region57: #{down_forward.1} parent=47 // pred_check
        %p375 = pneg %p90
      $region58: #{down_forward.1} parent=47 // pred_check_branch
        %377 = sbr.rel (%p375) target = $region60
      $region59: #{down_forward.1} parent=47 // pred_region
        %p378 = scmp.lt.s32.totalorder %s18, 1
        %s379 = scalar_select %p378, %s18, 1
        %s380 = smul.addr %s379, 18
        %s381 = smul.addr %s380, 4
        %s382 = scalar_lea.vmem %s2, %s381
      $region60: #{down_forward.1} parent=47 // pred_fallthru
        _
      // Predicated region
      $region61: #{down_forward.1} parent=47 // pred_check
        %p383 = pneg %p116
      $region62: #{down_forward.1} parent=47 // pred_check_branch
        %385 = sbr.rel (%p383) target = $region64
      $region63: #{down_forward.1} parent=47 // pred_region
        %p386 = scmp.lt.s32.totalorder %s18, 1
        %s387 = scalar_select %p386, %s18, 1
        %s388 = smul.addr %s387, 18
        %s389 = smul.addr %s388, 4
        %s390 = scalar_lea.vmem %s3, %s389
      $region64: #{down_forward.1} parent=47 // pred_fallthru
        _
    $region48: #{down_forward.1} parent=5 // pred_fallthru
      _
    %p391 = scmp.le.s32.totalorder 1, %s18
    %p392 = scmp.lt.s32.totalorder %s18, 3
    %p393 = pnand %p391, %p392
    %p394 = pneg %p393
    // Predicated region
    $region65: #{down_forward.1} parent=5 // pred_check
      _
    $region66: #{down_forward.1} parent=5 // pred_check_branch
      %396 = sbr.rel (%p393) target = $region68
    $region67: #{down_forward.1} parent=5 // pred_region
      %s397 = ssub.s32 %s18, 1
      %p398 = scmp.lt.s32.totalorder %s23, 1
      %s399 = scalar_select %p398, %s23, 1
      %s400 = smul.addr %s399, 18
      %s401 = smul.addr %s400, 4
      %s402 = scalar_lea.vmem %s0, %s401
      %p403 = pneg %p44
      %p404 = pneg %p41
      %p405 = scmp.lt.s32.totalorder %s23, 1
      %s406 = scalar_select %p405, %s23, 1
      %s407 = smul.addr %s406, 18
      %s408 = smul.addr %s407, 4
      %s409 = scalar_lea.vmem %s1, %s408
      %p410 = pneg %p70
      %p411 = pneg %p67
      %p412 = scmp.lt.s32.totalorder %s23, 1
      %s413 = scalar_select %p412, %s23, 1
      %s414 = smul.addr %s413, 18
      %s415 = smul.addr %s414, 4
      %s416 = scalar_lea.vmem %s2, %s415
      %p417 = pneg %p96
      %p418 = pneg %p93
      %p419 = scmp.lt.s32.totalorder %s23, 1
      %s420 = scalar_select %p419, %s23, 1
      %s421 = smul.addr %s420, 18
      %s422 = smul.addr %s421, 4
      %s423 = scalar_lea.vmem %s3, %s422
      %p424 = pneg %p122
      %p425 = pneg %p119
      %p426 = pneg %p143
      %p427 = pneg %p140
      %p428 = pneg %p164
      %p429 = pneg %p161
      %p430 = pneg %p185
      %p431 = pneg %p182
      %p432 = pneg %p206
      %p433 = pneg %p203
      %p434 = pneg %p227
      %p435 = pneg %p224
      %p436 = pneg %p248
      %p437 = pneg %p245
      %p438 = pneg %p269
      %p439 = pneg %p266
      %p440 = pneg %p290
      %p441 = pneg %p287
      %p442 = pneg %p316
      %p443 = pneg %p313
      %p444 = scmp.lt.s32.totalorder %s23, 1
      %s445 = scalar_select %p444, %s23, 1
      %s446 = smul.addr %s445, 8
      %s447 = smul.addr %s446, 8
      %s448 = scalar_lea.vmem %s12, %s447
      %p449 = scmp.lt.s32.totalorder %s23, 1
      %s450 = scalar_select %p449, %s23, 1
      %s451 = smul.addr %s450, 18
      %s452 = smul.addr %s451, 4
      %s453 = scalar_lea.vmem %s0, %s452
      %p454 = scmp.lt.s32.totalorder %s23, 1
      %s455 = scalar_select %p454, %s23, 1
      %s456 = smul.addr %s455, 18
      %s457 = smul.addr %s456, 4
      %s458 = scalar_lea.vmem %s1, %s457
      %p459 = scmp.lt.s32.totalorder %s23, 1
      %s460 = scalar_select %p459, %s23, 1
      %s461 = smul.addr %s460, 18
      %s462 = smul.addr %s461, 4
      %s463 = scalar_lea.vmem %s2, %s462
      %p464 = scmp.lt.s32.totalorder %s23, 1
      %s465 = scalar_select %p464, %s23, 1
      %s466 = smul.addr %s465, 18
      %s467 = smul.addr %s466, 4
      %s468 = scalar_lea.vmem %s3, %s467
      %p469 = scmp.lt.s32.totalorder %s23, 1
      %s470 = scalar_select %p469, %s23, 1
      %s471 = smul.addr %s470, 8
      %s472 = smul.addr %s471, 8
      %s473 = scalar_lea.vmem %s12, %s472
      %v475 = vld [vmem:[%s453] sm:$0xf]
      %v476 = vld [vmem:[%s453 + $0x8] sm:$0xf]
      %v477 = vld [vmem:[%s453 + $0x10] sm:$0xf]
      %v478 = vld [vmem:[%s453 + $0x18] sm:$0xf]
      %v479 = vld [vmem:[%s453 + $0x20] sm:$0xf]
      %v480 = vld [vmem:[%s453 + $0x28] sm:$0xf]
      %v481 = vld [vmem:[%s453 + $0x30] sm:$0xf]
      %v482 = vld [vmem:[%s453 + $0x38] sm:$0xf]
      %v483 = vld [vmem:[%s4] sm:$0x3]
      %v484 = vld [vmem:[%s458] sm:$0xf]
      %v485 = vld [vmem:[%s458 + $0x8] sm:$0xf]
      %v486 = vld [vmem:[%s458 + $0x10] sm:$0xf]
      %v487 = vld [vmem:[%s458 + $0x18] sm:$0xf]
      %v488 = vld [vmem:[%s458 + $0x20] sm:$0xf]
      %v489 = vld [vmem:[%s458 + $0x28] sm:$0xf]
      %v490 = vld [vmem:[%s458 + $0x30] sm:$0xf]
      %v491 = vld [vmem:[%s458 + $0x38] sm:$0xf]
      %s492 = scalar_lea.vmem %s4, 2
      %v493 = vld [vmem:[%s492] sm:$0x3]
      %v502 = vunpack.c.l.b16 %v484
      %v503 = vunpack.c.l.b16 %v485
      %v504 = vunpack.c.l.b16 %v486
      %v505 = vunpack.c.l.b16 %v487
      %v506 = vunpack.c.l.b16 %v488
      %v507 = vunpack.c.l.b16 %v489
      %v508 = vunpack.c.l.b16 %v490
      %v509 = vunpack.c.l.b16 %v491
      %v510 = vpack.c.b16 %v503, %v502
      %v511 = vpack.c.b16 %v505, %v504
      %v512 = vpack.c.b16 %v507, %v506
      %v513 = vpack.c.b16 %v509, %v508
      %vm514 = vcmask 31744
      %v516 = vsel %vm514, %v510, 0
      %v519 = vsel %vm514, %v511, 0
      %v522 = vsel %vm514, %v512, 0
      %v525 = vsel %vm514, %v513, 0
      %vm527 = vcmask 1041408
      %v529 = vsel %vm527, %v493, 0
      %531 = vmatprep.subr.bf16.mxu0 0
      %532 = vmatpush1.bf16.msra.mxu0 %v529
      %533 = vmatprep.subr.bf16.mxu0 0
      %534 = vmatpush1.bf16.msra.mxu0 0
      %535 = vmatprep.subr.bf16.mxu0 0
      %536 = vmatpush1.bf16.msra.mxu0 0
      %537 = vmatprep.subr.bf16.mxu0 0
      %538 = vmatpush1.bf16.msra.mxu0 0
      %539 = vmatprep.subr.bf16.mxu0 0
      %540 = vmatpush1.bf16.msra.mxu0 0
      %541 = vmatprep.subr.bf16.mxu0 0
      %542 = vmatpush1.bf16.msra.mxu0 0
      %543 = vmatprep.subr.bf16.mxu0 0
      %544 = vmatpush1.bf16.msra.mxu0 0
      %545 = vmatprep.subr.bf16.mxu0 0
      %546 = vmatpush1.bf16.msra.mxu0 0
      %547 = vmatprep.subr.bf16.mxu0 0
      %548 = vmatpush1.bf16.msra.mxu0 0
      %549 = vmatprep.subr.bf16.mxu0 0
      %550 = vmatpush1.bf16.msra.mxu0 0
      %551 = vmatprep.subr.bf16.mxu0 0
      %552 = vmatpush1.bf16.msra.mxu0 0
      %553 = vmatprep.subr.bf16.mxu0 0
      %554 = vmatpush1.bf16.msra.mxu0 0
      %555 = vmatprep.subr.bf16.mxu0 0
      %556 = vmatpush1.bf16.msra.mxu0 0
      %557 = vmatprep.subr.bf16.mxu0 0
      %558 = vmatpush1.bf16.msra.mxu0 0
      %559 = vmatprep.subr.bf16.mxu0 0
      %560 = vmatpush1.bf16.msra.mxu0 0
      %561 = vmatprep.subr.bf16.mxu0 0
      %562 = vmatpush1.bf16.msra.mxu0 0
      %563 = vmatprep.mubr.bf16.mxu0 0
      %564 = vmatmul.mubr.bf16.gmra.mrb[0].mxu0 %v516
      %v565 = vpop.f32.mrb[0].mxu0
      %v566 = vadd.f32 0.0, %v565
      %v567 = vpop.f32.mrb[0].mxu0
      %v568 = vpop.f32.mrb[0].mxu0
      %v569 = vadd.f32 0.0, %v568
      %v570 = vpop.f32.mrb[0].mxu0
      %571 = vmatprep.mubr.bf16.mxu0 0
      %572 = vmatmul.mubr.bf16.gmra.mrb[0].mxu0 %v519
      %v573 = vpop.f32.mrb[0].mxu0
      %v574 = vadd.f32 0.0, %v573
      %v575 = vpop.f32.mrb[0].mxu0
      %v576 = vpop.f32.mrb[0].mxu0
      %v577 = vadd.f32 0.0, %v576
      %v578 = vpop.f32.mrb[0].mxu0
      %579 = vmatprep.mubr.bf16.mxu0 0
      %580 = vmatmul.mubr.bf16.gmra.mrb[0].mxu0 %v522
      %v581 = vpop.f32.mrb[0].mxu0
      %v582 = vadd.f32 0.0, %v581
      %v583 = vpop.f32.mrb[0].mxu0
      %v584 = vpop.f32.mrb[0].mxu0
      %v585 = vadd.f32 0.0, %v584
      %v586 = vpop.f32.mrb[0].mxu0
      %587 = vmatprep.mubr.bf16.mxu0 0
      %588 = vmatmul.mubr.bf16.gmra.mrb[0].mxu0 %v525
      %v589 = vpop.f32.mrb[0].mxu0
      %v590 = vadd.f32 0.0, %v589
      %v591 = vpop.f32.mrb[0].mxu0
      %v592 = vpop.f32.mrb[0].mxu0
      %v593 = vadd.f32 0.0, %v592
      %v594 = vpop.f32.mrb[0].mxu0
      %595 = vdwg.mxu0
      %v604 = vunpack.c.l.b16 %v475
      %v605 = vunpack.c.l.b16 %v476
      %v606 = vunpack.c.l.b16 %v477
      %v607 = vunpack.c.l.b16 %v478
      %v608 = vunpack.c.l.b16 %v479
      %v609 = vunpack.c.l.b16 %v480
      %v610 = vunpack.c.l.b16 %v481
      %v611 = vunpack.c.l.b16 %v482
      %v612 = vpack.c.b16 %v605, %v604
      %v613 = vpack.c.b16 %v607, %v606
      %v614 = vpack.c.b16 %v609, %v608
      %v615 = vpack.c.b16 %v611, %v610
      %v617 = vsel %vm514, %v612, 0
      %v620 = vsel %vm514, %v613, 0
      %v623 = vsel %vm514, %v614, 0
      %v626 = vsel %vm514, %v615, 0
      %v629 = vsel %vm527, %v483, 0
      %631 = vmatprep.subr.bf16.mxu0 0
      %632 = vmatpush1.bf16.msra.mxu0 %v629
      %633 = vmatprep.subr.bf16.mxu0 0
      %634 = vmatpush1.bf16.msra.mxu0 0
      %635 = vmatprep.subr.bf16.mxu0 0
      %636 = vmatpush1.bf16.msra.mxu0 0
      %637 = vmatprep.subr.bf16.mxu0 0
      %638 = vmatpush1.bf16.msra.mxu0 0
      %639 = vmatprep.subr.bf16.mxu0 0
      %640 = vmatpush1.bf16.msra.mxu0 0
      %641 = vmatprep.subr.bf16.mxu0 0
      %642 = vmatpush1.bf16.msra.mxu0 0
      %643 = vmatprep.subr.bf16.mxu0 0
      %644 = vmatpush1.bf16.msra.mxu0 0
      %645 = vmatprep.subr.bf16.mxu0 0
      %646 = vmatpush1.bf16.msra.mxu0 0
      %647 = vmatprep.subr.bf16.mxu0 0
      %648 = vmatpush1.bf16.msra.mxu0 0
      %649 = vmatprep.subr.bf16.mxu0 0
      %650 = vmatpush1.bf16.msra.mxu0 0
      %651 = vmatprep.subr.bf16.mxu0 0
      %652 = vmatpush1.bf16.msra.mxu0 0
      %653 = vmatprep.subr.bf16.mxu0 0
      %654 = vmatpush1.bf16.msra.mxu0 0
      %655 = vmatprep.subr.bf16.mxu0 0
      %656 = vmatpush1.bf16.msra.mxu0 0
      %657 = vmatprep.subr.bf16.mxu0 0
      %658 = vmatpush1.bf16.msra.mxu0 0
      %659 = vmatprep.subr.bf16.mxu0 0
      %660 = vmatpush1.bf16.msra.mxu0 0
      %661 = vmatprep.subr.bf16.mxu0 0
      %662 = vmatpush1.bf16.msra.mxu0 0
      %663 = vmatprep.mubr.bf16.mxu0 0
      %664 = vmatmul.mubr.bf16.gmra.mrb[0].mxu0 %v617
      %v665 = vpop.f32.mrb[0].mxu0
      %v666 = vadd.f32 %v566, %v665
      %v667 = vpop.f32.mrb[0].mxu0
      %v668 = vpop.f32.mrb[0].mxu0
      %v669 = vadd.f32 %v569, %v668
      %v670 = vpop.f32.mrb[0].mxu0
      %671 = vmatprep.mubr.bf16.mxu0 0
      %672 = vmatmul.mubr.bf16.gmra.mrb[0].mxu0 %v620
      %v673 = vpop.f32.mrb[0].mxu0
      %v674 = vadd.f32 %v574, %v673
      %v675 = vpop.f32.mrb[0].mxu0
      %v676 = vpop.f32.mrb[0].mxu0
      %v677 = vadd.f32 %v577, %v676
      %v678 = vpop.f32.mrb[0].mxu0
      %679 = vmatprep.mubr.bf16.mxu0 0
      %680 = vmatmul.mubr.bf16.gmra.mrb[0].mxu0 %v623
      %v681 = vpop.f32.mrb[0].mxu0
      %v682 = vadd.f32 %v582, %v681
      %v683 = vpop.f32.mrb[0].mxu0
      %v684 = vpop.f32.mrb[0].mxu0
      %v685 = vadd.f32 %v585, %v684
      %v686 = vpop.f32.mrb[0].mxu0
      %687 = vmatprep.mubr.bf16.mxu0 0
      %688 = vmatmul.mubr.bf16.gmra.mrb[0].mxu0 %v626
      %v689 = vpop.f32.mrb[0].mxu0
      %v690 = vadd.f32 %v590, %v689
      %v691 = vpop.f32.mrb[0].mxu0
      %v692 = vpop.f32.mrb[0].mxu0
      %v693 = vadd.f32 %v593, %v692
      %v694 = vpop.f32.mrb[0].mxu0
      %695 = vdwg.mxu0
      %v696 = vld [vmem:[%s453] sm:$0xf]
      %v697 = vld [vmem:[%s453 + $0x4] sm:$0x1]
      %v698 = vld [vmem:[%s453 + $0x8] sm:$0xf]
      %v699 = vld [vmem:[%s453 + $0xc] sm:$0x1]
      %v700 = vld [vmem:[%s453 + $0x10] sm:$0xf]
      %v701 = vld [vmem:[%s453 + $0x14] sm:$0x1]
      %v702 = vld [vmem:[%s453 + $0x18] sm:$0xf]
      %v703 = vld [vmem:[%s453 + $0x1c] sm:$0x1]
      %v704 = vld [vmem:[%s453 + $0x20] sm:$0xf]
      %v705 = vld [vmem:[%s453 + $0x24] sm:$0x1]
      %v706 = vld [vmem:[%s453 + $0x28] sm:$0xf]
      %v707 = vld [vmem:[%s453 + $0x2c] sm:$0x1]
      %v708 = vld [vmem:[%s453 + $0x30] sm:$0xf]
      %v709 = vld [vmem:[%s453 + $0x34] sm:$0x1]
      %v710 = vld [vmem:[%s453 + $0x38] sm:$0xf]
      %v711 = vld [vmem:[%s453 + $0x3c] sm:$0x1]
      %vm712 = vsmask.f32 3328
      %vm713 = vsmask.f32 7440
      %vm714 = vmor %vm712, %vm713
      %v716 = vshrl.u32 %v696, 16
      %v718 = vrot.slane %v716, 4
      %v719 = vshll.u32 %v696, 16
      %v721 = vrot.slane %v719, 5
      %v722 = vor.u32 %v718, %v721
      %v723 = vrot.slane %v722, 4
      %v725 = vshll.u32 %v697, 16
      %v727 = vrot.slane %v725, 5
      %v728 = vsel %vm714, %v723, %v727
      %v730 = vshrl.u32 %v698, 16
      %v732 = vrot.slane %v730, 4
      %v733 = vshll.u32 %v698, 16
      %v735 = vrot.slane %v733, 5
      %v736 = vor.u32 %v732, %v735
      %v737 = vrot.slane %v736, 4
      %v739 = vshll.u32 %v699, 16
      %v741 = vrot.slane %v739, 5
      %v742 = vsel %vm714, %v737, %v741
      %v744 = vshrl.u32 %v700, 16
      %v746 = vrot.slane %v744, 4
      %v747 = vshll.u32 %v700, 16
      %v749 = vrot.slane %v747, 5
      %v750 = vor.u32 %v746, %v749
      %v751 = vrot.slane %v750, 4
      %v753 = vshll.u32 %v701, 16
      %v755 = vrot.slane %v753, 5
      %v756 = vsel %vm714, %v751, %v755
      %v758 = vshrl.u32 %v702, 16
      %v760 = vrot.slane %v758, 4
      %v761 = vshll.u32 %v702, 16
      %v763 = vrot.slane %v761, 5
      %v764 = vor.u32 %v760, %v763
      %v765 = vrot.slane %v764, 4
      %v767 = vshll.u32 %v703, 16
      %v769 = vrot.slane %v767, 5
      %v770 = vsel %vm714, %v765, %v769
      %v772 = vshrl.u32 %v704, 16
      %v774 = vrot.slane %v772, 4
      %v775 = vshll.u32 %v704, 16
      %v777 = vrot.slane %v775, 5
      %v778 = vor.u32 %v774, %v777
      %v779 = vrot.slane %v778, 4
      %v781 = vshll.u32 %v705, 16
      %v783 = vrot.slane %v781, 5
      %v784 = vsel %vm714, %v779, %v783
      %v786 = vshrl.u32 %v706, 16
      %v788 = vrot.slane %v786, 4
      %v789 = vshll.u32 %v706, 16
      %v791 = vrot.slane %v789, 5
      %v792 = vor.u32 %v788, %v791
      %v793 = vrot.slane %v792, 4
      %v795 = vshll.u32 %v707, 16
      %v797 = vrot.slane %v795, 5
      %v798 = vsel %vm714, %v793, %v797
      %v800 = vshrl.u32 %v708, 16
      %v802 = vrot.slane %v800, 4
      %v803 = vshll.u32 %v708, 16
      %v805 = vrot.slane %v803, 5
      %v806 = vor.u32 %v802, %v805
      %v807 = vrot.slane %v806, 4
      %v809 = vshll.u32 %v709, 16
      %v811 = vrot.slane %v809, 5
      %v812 = vsel %vm714, %v807, %v811
      %v814 = vshrl.u32 %v710, 16
      %v816 = vrot.slane %v814, 4
      %v817 = vshll.u32 %v710, 16
      %v819 = vrot.slane %v817, 5
      %v820 = vor.u32 %v816, %v819
      %v821 = vrot.slane %v820, 4
      %v823 = vshll.u32 %v711, 16
      %v825 = vrot.slane %v823, 5
      %v826 = vsel %vm714, %v821, %v825
      %s827 = scalar_lea.vmem %s4, 4
      %v828 = vld [vmem:[%s827] sm:$0x3]
      %v829 = vunpack.c.l.b16 %v728
      %v830 = vunpack.c.l.b16 %v742
      %v831 = vunpack.c.l.b16 %v756
      %v832 = vunpack.c.l.b16 %v770
      %v833 = vunpack.c.l.b16 %v784
      %v834 = vunpack.c.l.b16 %v798
      %v835 = vunpack.c.l.b16 %v812
      %v836 = vunpack.c.l.b16 %v826
      %v837 = vpack.c.b16 %v830, %v829
      %v838 = vpack.c.b16 %v832, %v831
      %v839 = vpack.c.b16 %v834, %v833
      %v840 = vpack.c.b16 %v836, %v835
      %v842 = vsel %vm514, %v837, 0
      %v845 = vsel %vm514, %v838, 0
      %v848 = vsel %vm514, %v839, 0
      %v851 = vsel %vm514, %v840, 0
      %v854 = vsel %vm527, %v828, 0
      %856 = vmatprep.subr.bf16.mxu0 0
      %857 = vmatpush1.bf16.msra.mxu0 %v854
      %858 = vmatprep.subr.bf16.mxu0 0
      %859 = vmatpush1.bf16.msra.mxu0 0
      %860 = vmatprep.subr.bf16.mxu0 0
      %861 = vmatpush1.bf16.msra.mxu0 0
      %862 = vmatprep.subr.bf16.mxu0 0
      %863 = vmatpush1.bf16.msra.mxu0 0
      %864 = vmatprep.subr.bf16.mxu0 0
      %865 = vmatpush1.bf16.msra.mxu0 0
      %866 = vmatprep.subr.bf16.mxu0 0
      %867 = vmatpush1.bf16.msra.mxu0 0
      %868 = vmatprep.subr.bf16.mxu0 0
      %869 = vmatpush1.bf16.msra.mxu0 0
      %870 = vmatprep.subr.bf16.mxu0 0
      %871 = vmatpush1.bf16.msra.mxu0 0
      %872 = vmatprep.subr.bf16.mxu0 0
      %873 = vmatpush1.bf16.msra.mxu0 0
      %874 = vmatprep.subr.bf16.mxu0 0
      %875 = vmatpush1.bf16.msra.mxu0 0
      %876 = vmatprep.subr.bf16.mxu0 0
      %877 = vmatpush1.bf16.msra.mxu0 0
      %878 = vmatprep.subr.bf16.mxu0 0
      %879 = vmatpush1.bf16.msra.mxu0 0
      %880 = vmatprep.subr.bf16.mxu0 0
      %881 = vmatpush1.bf16.msra.mxu0 0
      %882 = vmatprep.subr.bf16.mxu0 0
      %883 = vmatpush1.bf16.msra.mxu0 0
      %884 = vmatprep.subr.bf16.mxu0 0
      %885 = vmatpush1.bf16.msra.mxu0 0
      %886 = vmatprep.subr.bf16.mxu0 0
      %887 = vmatpush1.bf16.msra.mxu0 0
      %888 = vmatprep.mubr.bf16.mxu0 0
      %889 = vmatmul.mubr.bf16.gmra.mrb[0].mxu0 %v842
      %v890 = vpop.f32.mrb[0].mxu0
      %v891 = vadd.f32 0.0, %v890
      %v892 = vpop.f32.mrb[0].mxu0
      %v893 = vpop.f32.mrb[0].mxu0
      %v894 = vadd.f32 0.0, %v893
      %v895 = vpop.f32.mrb[0].mxu0
      %896 = vmatprep.mubr.bf16.mxu0 0
      %897 = vmatmul.mubr.bf16.gmra.mrb[0].mxu0 %v845
      %v898 = vpop.f32.mrb[0].mxu0
      %v899 = vadd.f32 0.0, %v898
      %v900 = vpop.f32.mrb[0].mxu0
      %v901 = vpop.f32.mrb[0].mxu0
      %v902 = vadd.f32 0.0, %v901
      %v903 = vpop.f32.mrb[0].mxu0
      %904 = vmatprep.mubr.bf16.mxu0 0
      %905 = vmatmul.mubr.bf16.gmra.mrb[0].mxu0 %v848
      %v906 = vpop.f32.mrb[0].mxu0
      %v907 = vadd.f32 0.0, %v906
      %v908 = vpop.f32.mrb[0].mxu0
      %v909 = vpop.f32.mrb[0].mxu0
      %v910 = vadd.f32 0.0, %v909
      %v911 = vpop.f32.mrb[0].mxu0
      %912 = vmatprep.mubr.bf16.mxu0 0
      %913 = vmatmul.mubr.bf16.gmra.mrb[0].mxu0 %v851
      %v914 = vpop.f32.mrb[0].mxu0
      %v915 = vadd.f32 0.0, %v914
      %v916 = vpop.f32.mrb[0].mxu0
      %v917 = vpop.f32.mrb[0].mxu0
      %v918 = vadd.f32 0.0, %v917
      %v919 = vpop.f32.mrb[0].mxu0
      %920 = vdwg.mxu0
      %v921 = vadd.f32 %v666, %v891
      %v922 = vadd.f32 %v669, %v894
      %v923 = vadd.f32 %v674, %v899
      %v924 = vadd.f32 %v677, %v902
      %v925 = vadd.f32 %v682, %v907
      %v926 = vadd.f32 %v685, %v910
      %v927 = vadd.f32 %v690, %v915
      %v928 = vadd.f32 %v693, %v918
      %v929 = vld [vmem:[%s463] sm:$0xf]
      %v930 = vld [vmem:[%s463 + $0x8] sm:$0xf]
      %v931 = vld [vmem:[%s463 + $0x10] sm:$0xf]
      %v932 = vld [vmem:[%s463 + $0x18] sm:$0xf]
      %v933 = vld [vmem:[%s463 + $0x20] sm:$0xf]
      %v934 = vld [vmem:[%s463 + $0x28] sm:$0xf]
      %v935 = vld [vmem:[%s463 + $0x30] sm:$0xf]
      %v936 = vld [vmem:[%s463 + $0x38] sm:$0xf]
      %s937 = scalar_lea.vmem %s4, 6
      %v938 = vld [vmem:[%s937] sm:$0x3]
      %v947 = vunpack.c.l.b16 %v929
      %v948 = vunpack.c.l.b16 %v930
      %v949 = vunpack.c.l.b16 %v931
      %v950 = vunpack.c.l.b16 %v932
      %v951 = vunpack.c.l.b16 %v933
      %v952 = vunpack.c.l.b16 %v934
      %v953 = vunpack.c.l.b16 %v935
      %v954 = vunpack.c.l.b16 %v936
      %v955 = vpack.c.b16 %v948, %v947
      %v956 = vpack.c.b16 %v950, %v949
      %v957 = vpack.c.b16 %v952, %v951
      %v958 = vpack.c.b16 %v954, %v953
      %v960 = vsel %vm514, %v955, 0
      %v963 = vsel %vm514, %v956, 0
      %v966 = vsel %vm514, %v957, 0
      %v969 = vsel %vm514, %v958, 0
      %v972 = vsel %vm527, %v938, 0
      %974 = vmatprep.subr.bf16.mxu0 0
      %975 = vmatpush1.bf16.msra.mxu0 %v972
      %976 = vmatprep.subr.bf16.mxu0 0
      %977 = vmatpush1.bf16.msra.mxu0 0
      %978 = vmatprep.subr.bf16.mxu0 0
      %979 = vmatpush1.bf16.msra.mxu0 0
      %980 = vmatprep.subr.bf16.mxu0 0
      %981 = vmatpush1.bf16.msra.mxu0 0
      %982 = vmatprep.subr.bf16.mxu0 0
      %983 = vmatpush1.bf16.msra.mxu0 0
      %984 = vmatprep.subr.bf16.mxu0 0
      %985 = vmatpush1.bf16.msra.mxu0 0
      %986 = vmatprep.subr.bf16.mxu0 0
      %987 = vmatpush1.bf16.msra.mxu0 0
      %988 = vmatprep.subr.bf16.mxu0 0
      %989 = vmatpush1.bf16.msra.mxu0 0
      %990 = vmatprep.subr.bf16.mxu0 0
      %991 = vmatpush1.bf16.msra.mxu0 0
      %992 = vmatprep.subr.bf16.mxu0 0
      %993 = vmatpush1.bf16.msra.mxu0 0
      %994 = vmatprep.subr.bf16.mxu0 0
      %995 = vmatpush1.bf16.msra.mxu0 0
      %996 = vmatprep.subr.bf16.mxu0 0
      %997 = vmatpush1.bf16.msra.mxu0 0
      %998 = vmatprep.subr.bf16.mxu0 0
      %999 = vmatpush1.bf16.msra.mxu0 0
      %1000 = vmatprep.subr.bf16.mxu0 0
      %1001 = vmatpush1.bf16.msra.mxu0 0
      %1002 = vmatprep.subr.bf16.mxu0 0
      %1003 = vmatpush1.bf16.msra.mxu0 0
      %1004 = vmatprep.subr.bf16.mxu0 0
      %1005 = vmatpush1.bf16.msra.mxu0 0
      %1006 = vmatprep.mubr.bf16.mxu0 0
      %1007 = vmatmul.mubr.bf16.gmra.mrb[0].mxu0 %v960
      %v1008 = vpop.f32.mrb[0].mxu0
      %v1009 = vadd.f32 0.0, %v1008
      %v1010 = vpop.f32.mrb[0].mxu0
      %v1011 = vpop.f32.mrb[0].mxu0
      %v1012 = vadd.f32 0.0, %v1011
      %v1013 = vpop.f32.mrb[0].mxu0
      %1014 = vmatprep.mubr.bf16.mxu0 0
      %1015 = vmatmul.mubr.bf16.gmra.mrb[0].mxu0 %v963
      %v1016 = vpop.f32.mrb[0].mxu0
      %v1017 = vadd.f32 0.0, %v1016
      %v1018 = vpop.f32.mrb[0].mxu0
      %v1019 = vpop.f32.mrb[0].mxu0
      %v1020 = vadd.f32 0.0, %v1019
      %v1021 = vpop.f32.mrb[0].mxu0
      %1022 = vmatprep.mubr.bf16.mxu0 0
      %1023 = vmatmul.mubr.bf16.gmra.mrb[0].mxu0 %v966
      %v1024 = vpop.f32.mrb[0].mxu0
      %v1025 = vadd.f32 0.0, %v1024
      %v1026 = vpop.f32.mrb[0].mxu0
      %v1027 = vpop.f32.mrb[0].mxu0
      %v1028 = vadd.f32 0.0, %v1027
      %v1029 = vpop.f32.mrb[0].mxu0
      %1030 = vmatprep.mubr.bf16.mxu0 0
      %1031 = vmatmul.mubr.bf16.gmra.mrb[0].mxu0 %v969
      %v1032 = vpop.f32.mrb[0].mxu0
      %v1033 = vadd.f32 0.0, %v1032
      %v1034 = vpop.f32.mrb[0].mxu0
      %v1035 = vpop.f32.mrb[0].mxu0
      %v1036 = vadd.f32 0.0, %v1035
      %v1037 = vpop.f32.mrb[0].mxu0
      %1038 = vdwg.mxu0
      %v1039 = vadd.f32 %v921, %v1009
      %v1040 = vadd.f32 %v922, %v1012
      %v1041 = vadd.f32 %v923, %v1017
      %v1042 = vadd.f32 %v924, %v1020
      %v1043 = vadd.f32 %v925, %v1025
      %v1044 = vadd.f32 %v926, %v1028
      %v1045 = vadd.f32 %v927, %v1033
      %v1046 = vadd.f32 %v928, %v1036
      %v1047 = vld [vmem:[%s468] sm:$0xf]
      %v1048 = vld [vmem:[%s468 + $0x8] sm:$0xf]
      %v1049 = vld [vmem:[%s468 + $0x10] sm:$0xf]
      %v1050 = vld [vmem:[%s468 + $0x18] sm:$0xf]
      %v1051 = vld [vmem:[%s468 + $0x20] sm:$0xf]
      %v1052 = vld [vmem:[%s468 + $0x28] sm:$0xf]
      %v1053 = vld [vmem:[%s468 + $0x30] sm:$0xf]
      %v1054 = vld [vmem:[%s468 + $0x38] sm:$0xf]
      %s1055 = scalar_lea.vmem %s4, 8
      %v1056 = vld [vmem:[%s1055] sm:$0x3]
      %v1065 = vunpack.c.l.b16 %v1047
      %v1066 = vunpack.c.l.b16 %v1048
      %v1067 = vunpack.c.l.b16 %v1049
      %v1068 = vunpack.c.l.b16 %v1050
      %v1069 = vunpack.c.l.b16 %v1051
      %v1070 = vunpack.c.l.b16 %v1052
      %v1071 = vunpack.c.l.b16 %v1053
      %v1072 = vunpack.c.l.b16 %v1054
      %v1073 = vpack.c.b16 %v1066, %v1065
      %v1074 = vpack.c.b16 %v1068, %v1067
      %v1075 = vpack.c.b16 %v1070, %v1069
      %v1076 = vpack.c.b16 %v1072, %v1071
      %v1078 = vsel %vm514, %v1073, 0
      %v1081 = vsel %vm514, %v1074, 0
      %v1084 = vsel %vm514, %v1075, 0
      %v1087 = vsel %vm514, %v1076, 0
      %v1090 = vsel %vm527, %v1056, 0
      %1092 = vmatprep.subr.bf16.mxu0 0
      %1093 = vmatpush1.bf16.msra.mxu0 %v1090
      %1094 = vmatprep.subr.bf16.mxu0 0
      %1095 = vmatpush1.bf16.msra.mxu0 0
      %1096 = vmatprep.subr.bf16.mxu0 0
      %1097 = vmatpush1.bf16.msra.mxu0 0
      %1098 = vmatprep.subr.bf16.mxu0 0
      %1099 = vmatpush1.bf16.msra.mxu0 0
      %1100 = vmatprep.subr.bf16.mxu0 0
      %1101 = vmatpush1.bf16.msra.mxu0 0
      %1102 = vmatprep.subr.bf16.mxu0 0
      %1103 = vmatpush1.bf16.msra.mxu0 0
      %1104 = vmatprep.subr.bf16.mxu0 0
      %1105 = vmatpush1.bf16.msra.mxu0 0
      %1106 = vmatprep.subr.bf16.mxu0 0
      %1107 = vmatpush1.bf16.msra.mxu0 0
      %1108 = vmatprep.subr.bf16.mxu0 0
      %1109 = vmatpush1.bf16.msra.mxu0 0
      %1110 = vmatprep.subr.bf16.mxu0 0
      %1111 = vmatpush1.bf16.msra.mxu0 0
      %1112 = vmatprep.subr.bf16.mxu0 0
      %1113 = vmatpush1.bf16.msra.mxu0 0
      %1114 = vmatprep.subr.bf16.mxu0 0
      %1115 = vmatpush1.bf16.msra.mxu0 0
      %1116 = vmatprep.subr.bf16.mxu0 0
      %1117 = vmatpush1.bf16.msra.mxu0 0
      %1118 = vmatprep.subr.bf16.mxu0 0
      %1119 = vmatpush1.bf16.msra.mxu0 0
      %1120 = vmatprep.subr.bf16.mxu0 0
      %1121 = vmatpush1.bf16.msra.mxu0 0
      %1122 = vmatprep.subr.bf16.mxu0 0
      %1123 = vmatpush1.bf16.msra.mxu0 0
      %1124 = vmatprep.mubr.bf16.mxu0 0
      %1125 = vmatmul.mubr.bf16.gmra.mrb[0].mxu0 %v1078
      %v1126 = vpop.f32.mrb[0].mxu0
      %v1127 = vadd.f32 0.0, %v1126
      %v1128 = vpop.f32.mrb[0].mxu0
      %v1129 = vpop.f32.mrb[0].mxu0
      %v1130 = vadd.f32 0.0, %v1129
      %v1131 = vpop.f32.mrb[0].mxu0
      %1132 = vmatprep.mubr.bf16.mxu0 0
      %1133 = vmatmul.mubr.bf16.gmra.mrb[0].mxu0 %v1081
      %v1134 = vpop.f32.mrb[0].mxu0
      %v1135 = vadd.f32 0.0, %v1134
      %v1136 = vpop.f32.mrb[0].mxu0
      %v1137 = vpop.f32.mrb[0].mxu0
      %v1138 = vadd.f32 0.0, %v1137
      %v1139 = vpop.f32.mrb[0].mxu0
      %1140 = vmatprep.mubr.bf16.mxu0 0
      %1141 = vmatmul.mubr.bf16.gmra.mrb[0].mxu0 %v1084
      %v1142 = vpop.f32.mrb[0].mxu0
      %v1143 = vadd.f32 0.0, %v1142
      %v1144 = vpop.f32.mrb[0].mxu0
      %v1145 = vpop.f32.mrb[0].mxu0
      %v1146 = vadd.f32 0.0, %v1145
      %v1147 = vpop.f32.mrb[0].mxu0
      %1148 = vmatprep.mubr.bf16.mxu0 0
      %1149 = vmatmul.mubr.bf16.gmra.mrb[0].mxu0 %v1087
      %v1150 = vpop.f32.mrb[0].mxu0
      %v1151 = vadd.f32 0.0, %v1150
      %v1152 = vpop.f32.mrb[0].mxu0
      %v1153 = vpop.f32.mrb[0].mxu0
      %v1154 = vadd.f32 0.0, %v1153
      %v1155 = vpop.f32.mrb[0].mxu0
      %1156 = vdwg.mxu0
      %v1157 = vadd.f32 %v1039, %v1127
      %v1158 = vadd.f32 %v1040, %v1130
      %v1159 = vadd.f32 %v1041, %v1135
      %v1160 = vadd.f32 %v1042, %v1138
      %v1161 = vadd.f32 %v1043, %v1143
      %v1162 = vadd.f32 %v1044, %v1146
      %v1163 = vadd.f32 %v1045, %v1151
      %v1164 = vadd.f32 %v1046, %v1154
      %v1165 = vld [vmem:[%s463] sm:$0xf]
      %v1166 = vld [vmem:[%s463 + $0x4] sm:$0x1]
      %v1167 = vld [vmem:[%s463 + $0x8] sm:$0xf]
      %v1168 = vld [vmem:[%s463 + $0xc] sm:$0x1]
      %v1169 = vld [vmem:[%s463 + $0x10] sm:$0xf]
      %v1170 = vld [vmem:[%s463 + $0x14] sm:$0x1]
      %v1171 = vld [vmem:[%s463 + $0x18] sm:$0xf]
      %v1172 = vld [vmem:[%s463 + $0x1c] sm:$0x1]
      %v1173 = vld [vmem:[%s463 + $0x20] sm:$0xf]
      %v1174 = vld [vmem:[%s463 + $0x24] sm:$0x1]
      %v1175 = vld [vmem:[%s463 + $0x28] sm:$0xf]
      %v1176 = vld [vmem:[%s463 + $0x2c] sm:$0x1]
      %v1177 = vld [vmem:[%s463 + $0x30] sm:$0xf]
      %v1178 = vld [vmem:[%s463 + $0x34] sm:$0x1]
      %v1179 = vld [vmem:[%s463 + $0x38] sm:$0xf]
      %v1180 = vld [vmem:[%s463 + $0x3c] sm:$0x1]
      %v1182 = vshrl.u32 %v1165, 16
      %v1184 = vrot.slane %v1182, 4
      %v1185 = vshll.u32 %v1165, 16
      %v1187 = vrot.slane %v1185, 5
      %v1188 = vor.u32 %v1184, %v1187
      %v1189 = vrot.slane %v1188, 4
      %v1191 = vshll.u32 %v1166, 16
      %v1193 = vrot.slane %v1191, 5
      %v1194 = vsel %vm714, %v1189, %v1193
      %v1196 = vshrl.u32 %v1167, 16
      %v1198 = vrot.slane %v1196, 4
      %v1199 = vshll.u32 %v1167, 16
      %v1201 = vrot.slane %v1199, 5
      %v1202 = vor.u32 %v1198, %v1201
      %v1203 = vrot.slane %v1202, 4
      %v1205 = vshll.u32 %v1168, 16
      %v1207 = vrot.slane %v1205, 5
      %v1208 = vsel %vm714, %v1203, %v1207
      %v1210 = vshrl.u32 %v1169, 16
      %v1212 = vrot.slane %v1210, 4
      %v1213 = vshll.u32 %v1169, 16
      %v1215 = vrot.slane %v1213, 5
      %v1216 = vor.u32 %v1212, %v1215
      %v1217 = vrot.slane %v1216, 4
      %v1219 = vshll.u32 %v1170, 16
      %v1221 = vrot.slane %v1219, 5
      %v1222 = vsel %vm714, %v1217, %v1221
      %v1224 = vshrl.u32 %v1171, 16
      %v1226 = vrot.slane %v1224, 4
      %v1227 = vshll.u32 %v1171, 16
      %v1229 = vrot.slane %v1227, 5
      %v1230 = vor.u32 %v1226, %v1229
      %v1231 = vrot.slane %v1230, 4
      %v1233 = vshll.u32 %v1172, 16
      %v1235 = vrot.slane %v1233, 5
      %v1236 = vsel %vm714, %v1231, %v1235
      %v1238 = vshrl.u32 %v1173, 16
      %v1240 = vrot.slane %v1238, 4
      %v1241 = vshll.u32 %v1173, 16
      %v1243 = vrot.slane %v1241, 5
      %v1244 = vor.u32 %v1240, %v1243
      %v1245 = vrot.slane %v1244, 4
      %v1247 = vshll.u32 %v1174, 16
      %v1249 = vrot.slane %v1247, 5
      %v1250 = vsel %vm714, %v1245, %v1249
      %v1252 = vshrl.u32 %v1175, 16
      %v1254 = vrot.slane %v1252, 4
      %v1255 = vshll.u32 %v1175, 16
      %v1257 = vrot.slane %v1255, 5
      %v1258 = vor.u32 %v1254, %v1257
      %v1259 = vrot.slane %v1258, 4
      %v1261 = vshll.u32 %v1176, 16
      %v1263 = vrot.slane %v1261, 5
      %v1264 = vsel %vm714, %v1259, %v1263
      %v1266 = vshrl.u32 %v1177, 16
      %v1268 = vrot.slane %v1266, 4
      %v1269 = vshll.u32 %v1177, 16
      %v1271 = vrot.slane %v1269, 5
      %v1272 = vor.u32 %v1268, %v1271
      %v1273 = vrot.slane %v1272, 4
      %v1275 = vshll.u32 %v1178, 16
      %v1277 = vrot.slane %v1275, 5
      %v1278 = vsel %vm714, %v1273, %v1277
      %v1280 = vshrl.u32 %v1179, 16
      %v1282 = vrot.slane %v1280, 4
      %v1283 = vshll.u32 %v1179, 16
      %v1285 = vrot.slane %v1283, 5
      %v1286 = vor.u32 %v1282, %v1285
      %v1287 = vrot.slane %v1286, 4
      %v1289 = vshll.u32 %v1180, 16
      %v1291 = vrot.slane %v1289, 5
      %v1292 = vsel %vm714, %v1287, %v1291
      %s1293 = scalar_lea.vmem %s4, 10
      %v1294 = vld [vmem:[%s1293] sm:$0x3]
      %v1295 = vunpack.c.l.b16 %v1194
      %v1296 = vunpack.c.l.b16 %v1208
      %v1297 = vunpack.c.l.b16 %v1222
      %v1298 = vunpack.c.l.b16 %v1236
      %v1299 = vunpack.c.l.b16 %v1250
      %v1300 = vunpack.c.l.b16 %v1264
      %v1301 = vunpack.c.l.b16 %v1278
      %v1302 = vunpack.c.l.b16 %v1292
      %v1303 = vpack.c.b16 %v1296, %v1295
      %v1304 = vpack.c.b16 %v1298, %v1297
      %v1305 = vpack.c.b16 %v1300, %v1299
      %v1306 = vpack.c.b16 %v1302, %v1301
      %v1308 = vsel %vm514, %v1303, 0
      %v1311 = vsel %vm514, %v1304, 0
      %v1314 = vsel %vm514, %v1305, 0
      %v1317 = vsel %vm514, %v1306, 0
      %v1320 = vsel %vm527, %v1294, 0
      %1322 = vmatprep.subr.bf16.mxu0 0
      %1323 = vmatpush1.bf16.msra.mxu0 %v1320
      %1324 = vmatprep.subr.bf16.mxu0 0
      %1325 = vmatpush1.bf16.msra.mxu0 0
      %1326 = vmatprep.subr.bf16.mxu0 0
      %1327 = vmatpush1.bf16.msra.mxu0 0
      %1328 = vmatprep.subr.bf16.mxu0 0
      %1329 = vmatpush1.bf16.msra.mxu0 0
      %1330 = vmatprep.subr.bf16.mxu0 0
      %1331 = vmatpush1.bf16.msra.mxu0 0
      %1332 = vmatprep.subr.bf16.mxu0 0
      %1333 = vmatpush1.bf16.msra.mxu0 0
      %1334 = vmatprep.subr.bf16.mxu0 0
      %1335 = vmatpush1.bf16.msra.mxu0 0
      %1336 = vmatprep.subr.bf16.mxu0 0
      %1337 = vmatpush1.bf16.msra.mxu0 0
      %1338 = vmatprep.subr.bf16.mxu0 0
      %1339 = vmatpush1.bf16.msra.mxu0 0
      %1340 = vmatprep.subr.bf16.mxu0 0
      %1341 = vmatpush1.bf16.msra.mxu0 0
      %1342 = vmatprep.subr.bf16.mxu0 0
      %1343 = vmatpush1.bf16.msra.mxu0 0
      %1344 = vmatprep.subr.bf16.mxu0 0
      %1345 = vmatpush1.bf16.msra.mxu0 0
      %1346 = vmatprep.subr.bf16.mxu0 0
      %1347 = vmatpush1.bf16.msra.mxu0 0
      %1348 = vmatprep.subr.bf16.mxu0 0
      %1349 = vmatpush1.bf16.msra.mxu0 0
      %1350 = vmatprep.subr.bf16.mxu0 0
      %1351 = vmatpush1.bf16.msra.mxu0 0
      %1352 = vmatprep.subr.bf16.mxu0 0
      %1353 = vmatpush1.bf16.msra.mxu0 0
      %1354 = vmatprep.mubr.bf16.mxu0 0
      %1355 = vmatmul.mubr.bf16.gmra.mrb[0].mxu0 %v1308
      %v1356 = vpop.f32.mrb[0].mxu0
      %v1357 = vadd.f32 0.0, %v1356
      %v1358 = vpop.f32.mrb[0].mxu0
      %v1359 = vpop.f32.mrb[0].mxu0
      %v1360 = vadd.f32 0.0, %v1359
      %v1361 = vpop.f32.mrb[0].mxu0
      %1362 = vmatprep.mubr.bf16.mxu0 0
      %1363 = vmatmul.mubr.bf16.gmra.mrb[0].mxu0 %v1311
      %v1364 = vpop.f32.mrb[0].mxu0
      %v1365 = vadd.f32 0.0, %v1364
      %v1366 = vpop.f32.mrb[0].mxu0
      %v1367 = vpop.f32.mrb[0].mxu0
      %v1368 = vadd.f32 0.0, %v1367
      %v1369 = vpop.f32.mrb[0].mxu0
      %1370 = vmatprep.mubr.bf16.mxu0 0
      %1371 = vmatmul.mubr.bf16.gmra.mrb[0].mxu0 %v1314
      %v1372 = vpop.f32.mrb[0].mxu0
      %v1373 = vadd.f32 0.0, %v1372
      %v1374 = vpop.f32.mrb[0].mxu0
      %v1375 = vpop.f32.mrb[0].mxu0
      %v1376 = vadd.f32 0.0, %v1375
      %v1377 = vpop.f32.mrb[0].mxu0
      %1378 = vmatprep.mubr.bf16.mxu0 0
      %1379 = vmatmul.mubr.bf16.gmra.mrb[0].mxu0 %v1317
      %v1380 = vpop.f32.mrb[0].mxu0
      %v1381 = vadd.f32 0.0, %v1380
      %v1382 = vpop.f32.mrb[0].mxu0
      %v1383 = vpop.f32.mrb[0].mxu0
      %v1384 = vadd.f32 0.0, %v1383
      %v1385 = vpop.f32.mrb[0].mxu0
      %1386 = vdwg.mxu0
      %v1387 = vadd.f32 %v1157, %v1357
      %v1388 = vadd.f32 %v1158, %v1360
      %v1389 = vadd.f32 %v1159, %v1365
      %v1390 = vadd.f32 %v1160, %v1368
      %v1391 = vadd.f32 %v1161, %v1373
      %v1392 = vadd.f32 %v1162, %v1376
      %v1393 = vadd.f32 %v1163, %v1381
      %v1394 = vadd.f32 %v1164, %v1384
      %s1395 = scalar_lea.vmem %s453, 8
      %v1396 = vld [vmem:[%s1395] sm:$0xf]
      %v1397 = vld [vmem:[%s1395 + $0x8] sm:$0xf]
      %v1398 = vld [vmem:[%s1395 + $0x10] sm:$0xf]
      %v1399 = vld [vmem:[%s1395 + $0x18] sm:$0xf]
      %v1400 = vld [vmem:[%s1395 + $0x20] sm:$0xf]
      %v1401 = vld [vmem:[%s1395 + $0x28] sm:$0xf]
      %v1402 = vld [vmem:[%s1395 + $0x30] sm:$0xf]
      %v1403 = vld [vmem:[%s1395 + $0x38] sm:$0xf]
      %s1404 = scalar_lea.vmem %s4, 12
      %v1405 = vld [vmem:[%s1404] sm:$0x3]
      %v1414 = vunpack.c.l.b16 %v1396
      %v1415 = vunpack.c.l.b16 %v1397
      %v1416 = vunpack.c.l.b16 %v1398
      %v1417 = vunpack.c.l.b16 %v1399
      %v1418 = vunpack.c.l.b16 %v1400
      %v1419 = vunpack.c.l.b16 %v1401
      %v1420 = vunpack.c.l.b16 %v1402
      %v1421 = vunpack.c.l.b16 %v1403
      %v1422 = vpack.c.b16 %v1415, %v1414
      %v1423 = vpack.c.b16 %v1417, %v1416
      %v1424 = vpack.c.b16 %v1419, %v1418
      %v1425 = vpack.c.b16 %v1421, %v1420
      %v1427 = vsel %vm514, %v1422, 0
      %v1430 = vsel %vm514, %v1423, 0
      %v1433 = vsel %vm514, %v1424, 0
      %v1436 = vsel %vm514, %v1425, 0
      %v1439 = vsel %vm527, %v1405, 0
      %1441 = vmatprep.subr.bf16.mxu0 0
      %1442 = vmatpush1.bf16.msra.mxu0 %v1439
      %1443 = vmatprep.subr.bf16.mxu0 0
      %1444 = vmatpush1.bf16.msra.mxu0 0
      %1445 = vmatprep.subr.bf16.mxu0 0
      %1446 = vmatpush1.bf16.msra.mxu0 0
      %1447 = vmatprep.subr.bf16.mxu0 0
      %1448 = vmatpush1.bf16.msra.mxu0 0
      %1449 = vmatprep.subr.bf16.mxu0 0
      %1450 = vmatpush1.bf16.msra.mxu0 0
      %1451 = vmatprep.subr.bf16.mxu0 0
      %1452 = vmatpush1.bf16.msra.mxu0 0
      %1453 = vmatprep.subr.bf16.mxu0 0
      %1454 = vmatpush1.bf16.msra.mxu0 0
      %1455 = vmatprep.subr.bf16.mxu0 0
      %1456 = vmatpush1.bf16.msra.mxu0 0
      %1457 = vmatprep.subr.bf16.mxu0 0
      %1458 = vmatpush1.bf16.msra.mxu0 0
      %1459 = vmatprep.subr.bf16.mxu0 0
      %1460 = vmatpush1.bf16.msra.mxu0 0
      %1461 = vmatprep.subr.bf16.mxu0 0
      %1462 = vmatpush1.bf16.msra.mxu0 0
      %1463 = vmatprep.subr.bf16.mxu0 0
      %1464 = vmatpush1.bf16.msra.mxu0 0
      %1465 = vmatprep.subr.bf16.mxu0 0
      %1466 = vmatpush1.bf16.msra.mxu0 0
      %1467 = vmatprep.subr.bf16.mxu0 0
      %1468 = vmatpush1.bf16.msra.mxu0 0
      %1469 = vmatprep.subr.bf16.mxu0 0
      %1470 = vmatpush1.bf16.msra.mxu0 0
      %1471 = vmatprep.subr.bf16.mxu0 0
      %1472 = vmatpush1.bf16.msra.mxu0 0
      %1473 = vmatprep.mubr.bf16.mxu0 0
      %1474 = vmatmul.mubr.bf16.gmra.mrb[0].mxu0 %v1427
      %v1475 = vpop.f32.mrb[0].mxu0
      %v1476 = vadd.f32 0.0, %v1475
      %v1477 = vpop.f32.mrb[0].mxu0
      %v1478 = vpop.f32.mrb[0].mxu0
      %v1479 = vadd.f32 0.0, %v1478
      %v1480 = vpop.f32.mrb[0].mxu0
      %1481 = vmatprep.mubr.bf16.mxu0 0
      %1482 = vmatmul.mubr.bf16.gmra.mrb[0].mxu0 %v1430
      %v1483 = vpop.f32.mrb[0].mxu0
      %v1484 = vadd.f32 0.0, %v1483
      %v1485 = vpop.f32.mrb[0].mxu0
      %v1486 = vpop.f32.mrb[0].mxu0
      %v1487 = vadd.f32 0.0, %v1486
      %v1488 = vpop.f32.mrb[0].mxu0
      %1489 = vmatprep.mubr.bf16.mxu0 0
      %1490 = vmatmul.mubr.bf16.gmra.mrb[0].mxu0 %v1433
      %v1491 = vpop.f32.mrb[0].mxu0
      %v1492 = vadd.f32 0.0, %v1491
      %v1493 = vpop.f32.mrb[0].mxu0
      %v1494 = vpop.f32.mrb[0].mxu0
      %v1495 = vadd.f32 0.0, %v1494
      %v1496 = vpop.f32.mrb[0].mxu0
      %1497 = vmatprep.mubr.bf16.mxu0 0
      %1498 = vmatmul.mubr.bf16.gmra.mrb[0].mxu0 %v1436
      %v1499 = vpop.f32.mrb[0].mxu0
      %v1500 = vadd.f32 0.0, %v1499
      %v1501 = vpop.f32.mrb[0].mxu0
      %v1502 = vpop.f32.mrb[0].mxu0
      %v1503 = vadd.f32 0.0, %v1502
      %v1504 = vpop.f32.mrb[0].mxu0
      %1505 = vdwg.mxu0
      %v1506 = vadd.f32 %v1387, %v1476
      %v1507 = vadd.f32 %v1388, %v1479
      %v1508 = vadd.f32 %v1389, %v1484
      %v1509 = vadd.f32 %v1390, %v1487
      %v1510 = vadd.f32 %v1391, %v1492
      %v1511 = vadd.f32 %v1392, %v1495
      %v1512 = vadd.f32 %v1393, %v1500
      %v1513 = vadd.f32 %v1394, %v1503
      %s1514 = scalar_lea.vmem %s458, 8
      %v1515 = vld [vmem:[%s1514] sm:$0xf]
      %v1516 = vld [vmem:[%s1514 + $0x8] sm:$0xf]
      %v1517 = vld [vmem:[%s1514 + $0x10] sm:$0xf]
      %v1518 = vld [vmem:[%s1514 + $0x18] sm:$0xf]
      %v1519 = vld [vmem:[%s1514 + $0x20] sm:$0xf]
      %v1520 = vld [vmem:[%s1514 + $0x28] sm:$0xf]
      %v1521 = vld [vmem:[%s1514 + $0x30] sm:$0xf]
      %v1522 = vld [vmem:[%s1514 + $0x38] sm:$0xf]
      %s1523 = scalar_lea.vmem %s4, 14
      %v1524 = vld [vmem:[%s1523] sm:$0x3]
      %v1533 = vunpack.c.l.b16 %v1515
      %v1534 = vunpack.c.l.b16 %v1516
      %v1535 = vunpack.c.l.b16 %v1517
      %v1536 = vunpack.c.l.b16 %v1518
      %v1537 = vunpack.c.l.b16 %v1519
      %v1538 = vunpack.c.l.b16 %v1520
      %v1539 = vunpack.c.l.b16 %v1521
      %v1540 = vunpack.c.l.b16 %v1522
      %v1541 = vpack.c.b16 %v1534, %v1533
      %v1542 = vpack.c.b16 %v1536, %v1535
      %v1543 = vpack.c.b16 %v1538, %v1537
      %v1544 = vpack.c.b16 %v1540, %v1539
      %v1546 = vsel %vm514, %v1541, 0
      %v1549 = vsel %vm514, %v1542, 0
      %v1552 = vsel %vm514, %v1543, 0
      %v1555 = vsel %vm514, %v1544, 0
      %v1558 = vsel %vm527, %v1524, 0
      %1560 = vmatprep.subr.bf16.mxu0 0
      %1561 = vmatpush1.bf16.msra.mxu0 %v1558
      %1562 = vmatprep.subr.bf16.mxu0 0
      %1563 = vmatpush1.bf16.msra.mxu0 0
      %1564 = vmatprep.subr.bf16.mxu0 0
      %1565 = vmatpush1.bf16.msra.mxu0 0
      %1566 = vmatprep.subr.bf16.mxu0 0
      %1567 = vmatpush1.bf16.msra.mxu0 0
      %1568 = vmatprep.subr.bf16.mxu0 0
      %1569 = vmatpush1.bf16.msra.mxu0 0
      %1570 = vmatprep.subr.bf16.mxu0 0
      %1571 = vmatpush1.bf16.msra.mxu0 0
      %1572 = vmatprep.subr.bf16.mxu0 0
      %1573 = vmatpush1.bf16.msra.mxu0 0
      %1574 = vmatprep.subr.bf16.mxu0 0
      %1575 = vmatpush1.bf16.msra.mxu0 0
      %1576 = vmatprep.subr.bf16.mxu0 0
      %1577 = vmatpush1.bf16.msra.mxu0 0
      %1578 = vmatprep.subr.bf16.mxu0 0
      %1579 = vmatpush1.bf16.msra.mxu0 0
      %1580 = vmatprep.subr.bf16.mxu0 0
      %1581 = vmatpush1.bf16.msra.mxu0 0
      %1582 = vmatprep.subr.bf16.mxu0 0
      %1583 = vmatpush1.bf16.msra.mxu0 0
      %1584 = vmatprep.subr.bf16.mxu0 0
      %1585 = vmatpush1.bf16.msra.mxu0 0
      %1586 = vmatprep.subr.bf16.mxu0 0
      %1587 = vmatpush1.bf16.msra.mxu0 0
      %1588 = vmatprep.subr.bf16.mxu0 0
      %1589 = vmatpush1.bf16.msra.mxu0 0
      %1590 = vmatprep.subr.bf16.mxu0 0
      %1591 = vmatpush1.bf16.msra.mxu0 0
      %1592 = vmatprep.mubr.bf16.mxu0 0
      %1593 = vmatmul.mubr.bf16.gmra.mrb[0].mxu0 %v1546
      %v1594 = vpop.f32.mrb[0].mxu0
      %v1595 = vadd.f32 0.0, %v1594
      %v1596 = vpop.f32.mrb[0].mxu0
      %v1597 = vpop.f32.mrb[0].mxu0
      %v1598 = vadd.f32 0.0, %v1597
      %v1599 = vpop.f32.mrb[0].mxu0
      %1600 = vmatprep.mubr.bf16.mxu0 0
      %1601 = vmatmul.mubr.bf16.gmra.mrb[0].mxu0 %v1549
      %v1602 = vpop.f32.mrb[0].mxu0
      %v1603 = vadd.f32 0.0, %v1602
      %v1604 = vpop.f32.mrb[0].mxu0
      %v1605 = vpop.f32.mrb[0].mxu0
      %v1606 = vadd.f32 0.0, %v1605
      %v1607 = vpop.f32.mrb[0].mxu0
      %1608 = vmatprep.mubr.bf16.mxu0 0
      %1609 = vmatmul.mubr.bf16.gmra.mrb[0].mxu0 %v1552
      %v1610 = vpop.f32.mrb[0].mxu0
      %v1611 = vadd.f32 0.0, %v1610
      %v1612 = vpop.f32.mrb[0].mxu0
      %v1613 = vpop.f32.mrb[0].mxu0
      %v1614 = vadd.f32 0.0, %v1613
      %v1615 = vpop.f32.mrb[0].mxu0
      %1616 = vmatprep.mubr.bf16.mxu0 0
      %1617 = vmatmul.mubr.bf16.gmra.mrb[0].mxu0 %v1555
      %v1618 = vpop.f32.mrb[0].mxu0
      %v1619 = vadd.f32 0.0, %v1618
      %v1620 = vpop.f32.mrb[0].mxu0
      %v1621 = vpop.f32.mrb[0].mxu0
      %v1622 = vadd.f32 0.0, %v1621
      %v1623 = vpop.f32.mrb[0].mxu0
      %1624 = vdwg.mxu0
      %v1625 = vadd.f32 %v1506, %v1595
      %v1626 = vadd.f32 %v1507, %v1598
      %v1627 = vadd.f32 %v1508, %v1603
      %v1628 = vadd.f32 %v1509, %v1606
      %v1629 = vadd.f32 %v1510, %v1611
      %v1630 = vadd.f32 %v1511, %v1614
      %v1631 = vadd.f32 %v1512, %v1619
      %v1632 = vadd.f32 %v1513, %v1622
      %v1633 = vld [vmem:[%s1395] sm:$0xf]
      %v1634 = vld [vmem:[%s1395 + $0x4] sm:$0x1]
      %v1635 = vld [vmem:[%s1395 + $0x8] sm:$0xf]
      %v1636 = vld [vmem:[%s1395 + $0xc] sm:$0x1]
      %v1637 = vld [vmem:[%s1395 + $0x10] sm:$0xf]
      %v1638 = vld [vmem:[%s1395 + $0x14] sm:$0x1]
      %v1639 = vld [vmem:[%s1395 + $0x18] sm:$0xf]
      %v1640 = vld [vmem:[%s1395 + $0x1c] sm:$0x1]
      %v1641 = vld [vmem:[%s1395 + $0x20] sm:$0xf]
      %v1642 = vld [vmem:[%s1395 + $0x24] sm:$0x1]
      %v1643 = vld [vmem:[%s1395 + $0x28] sm:$0xf]
      %v1644 = vld [vmem:[%s1395 + $0x2c] sm:$0x1]
      %v1645 = vld [vmem:[%s1395 + $0x30] sm:$0xf]
      %v1646 = vld [vmem:[%s1395 + $0x34] sm:$0x1]
      %v1647 = vld [vmem:[%s1395 + $0x38] sm:$0xf]
      %v1648 = vld [vmem:[%s1395 + $0x3c] sm:$0x1]
      %v1650 = vshrl.u32 %v1633, 16
      %v1652 = vrot.slane %v1650, 4
      %v1653 = vshll.u32 %v1633, 16
      %v1655 = vrot.slane %v1653, 5
      %v1656 = vor.u32 %v1652, %v1655
      %v1657 = vrot.slane %v1656, 4
      %v1659 = vshll.u32 %v1634, 16
      %v1661 = vrot.slane %v1659, 5
      %v1662 = vsel %vm714, %v1657, %v1661
      %v1664 = vshrl.u32 %v1635, 16
      %v1666 = vrot.slane %v1664, 4
      %v1667 = vshll.u32 %v1635, 16
      %v1669 = vrot.slane %v1667, 5
      %v1670 = vor.u32 %v1666, %v1669
      %v1671 = vrot.slane %v1670, 4
      %v1673 = vshll.u32 %v1636, 16
      %v1675 = vrot.slane %v1673, 5
      %v1676 = vsel %vm714, %v1671, %v1675
      %v1678 = vshrl.u32 %v1637, 16
      %v1680 = vrot.slane %v1678, 4
      %v1681 = vshll.u32 %v1637, 16
      %v1683 = vrot.slane %v1681, 5
      %v1684 = vor.u32 %v1680, %v1683
      %v1685 = vrot.slane %v1684, 4
      %v1687 = vshll.u32 %v1638, 16
      %v1689 = vrot.slane %v1687, 5
      %v1690 = vsel %vm714, %v1685, %v1689
      %v1692 = vshrl.u32 %v1639, 16
      %v1694 = vrot.slane %v1692, 4
      %v1695 = vshll.u32 %v1639, 16
      %v1697 = vrot.slane %v1695, 5
      %v1698 = vor.u32 %v1694, %v1697
      %v1699 = vrot.slane %v1698, 4
      %v1701 = vshll.u32 %v1640, 16
      %v1703 = vrot.slane %v1701, 5
      %v1704 = vsel %vm714, %v1699, %v1703
      %v1706 = vshrl.u32 %v1641, 16
      %v1708 = vrot.slane %v1706, 4
      %v1709 = vshll.u32 %v1641, 16
      %v1711 = vrot.slane %v1709, 5
      %v1712 = vor.u32 %v1708, %v1711
      %v1713 = vrot.slane %v1712, 4
      %v1715 = vshll.u32 %v1642, 16
      %v1717 = vrot.slane %v1715, 5
      %v1718 = vsel %vm714, %v1713, %v1717
      %v1720 = vshrl.u32 %v1643, 16
      %v1722 = vrot.slane %v1720, 4
      %v1723 = vshll.u32 %v1643, 16
      %v1725 = vrot.slane %v1723, 5
      %v1726 = vor.u32 %v1722, %v1725
      %v1727 = vrot.slane %v1726, 4
      %v1729 = vshll.u32 %v1644, 16
      %v1731 = vrot.slane %v1729, 5
      %v1732 = vsel %vm714, %v1727, %v1731
      %v1734 = vshrl.u32 %v1645, 16
      %v1736 = vrot.slane %v1734, 4
      %v1737 = vshll.u32 %v1645, 16
      %v1739 = vrot.slane %v1737, 5
      %v1740 = vor.u32 %v1736, %v1739
      %v1741 = vrot.slane %v1740, 4
      %v1743 = vshll.u32 %v1646, 16
      %v1745 = vrot.slane %v1743, 5
      %v1746 = vsel %vm714, %v1741, %v1745
      %v1748 = vshrl.u32 %v1647, 16
      %v1750 = vrot.slane %v1748, 4
      %v1751 = vshll.u32 %v1647, 16
      %v1753 = vrot.slane %v1751, 5
      %v1754 = vor.u32 %v1750, %v1753
      %v1755 = vrot.slane %v1754, 4
      %v1757 = vshll.u32 %v1648, 16
      %v1759 = vrot.slane %v1757, 5
      %v1760 = vsel %vm714, %v1755, %v1759
      %s1761 = scalar_lea.vmem %s4, 16
      %v1762 = vld [vmem:[%s1761] sm:$0x3]
      %v1763 = vunpack.c.l.b16 %v1662
      %v1764 = vunpack.c.l.b16 %v1676
      %v1765 = vunpack.c.l.b16 %v1690
      %v1766 = vunpack.c.l.b16 %v1704
      %v1767 = vunpack.c.l.b16 %v1718
      %v1768 = vunpack.c.l.b16 %v1732
      %v1769 = vunpack.c.l.b16 %v1746
      %v1770 = vunpack.c.l.b16 %v1760
      %v1771 = vpack.c.b16 %v1764, %v1763
      %v1772 = vpack.c.b16 %v1766, %v1765
      %v1773 = vpack.c.b16 %v1768, %v1767
      %v1774 = vpack.c.b16 %v1770, %v1769
      %v1776 = vsel %vm514, %v1771, 0
      %v1779 = vsel %vm514, %v1772, 0
      %v1782 = vsel %vm514, %v1773, 0
      %v1785 = vsel %vm514, %v1774, 0
      %v1788 = vsel %vm527, %v1762, 0
      %1790 = vmatprep.subr.bf16.mxu0 0
      %1791 = vmatpush1.bf16.msra.mxu0 %v1788
      %1792 = vmatprep.subr.bf16.mxu0 0
      %1793 = vmatpush1.bf16.msra.mxu0 0
      %1794 = vmatprep.subr.bf16.mxu0 0
      %1795 = vmatpush1.bf16.msra.mxu0 0
      %1796 = vmatprep.subr.bf16.mxu0 0
      %1797 = vmatpush1.bf16.msra.mxu0 0
      %1798 = vmatprep.subr.bf16.mxu0 0
      %1799 = vmatpush1.bf16.msra.mxu0 0
      %1800 = vmatprep.subr.bf16.mxu0 0
      %1801 = vmatpush1.bf16.msra.mxu0 0
      %1802 = vmatprep.subr.bf16.mxu0 0
      %1803 = vmatpush1.bf16.msra.mxu0 0
      %1804 = vmatprep.subr.bf16.mxu0 0
      %1805 = vmatpush1.bf16.msra.mxu0 0
      %1806 = vmatprep.subr.bf16.mxu0 0
      %1807 = vmatpush1.bf16.msra.mxu0 0
      %1808 = vmatprep.subr.bf16.mxu0 0
      %1809 = vmatpush1.bf16.msra.mxu0 0
      %1810 = vmatprep.subr.bf16.mxu0 0
      %1811 = vmatpush1.bf16.msra.mxu0 0
      %1812 = vmatprep.subr.bf16.mxu0 0
      %1813 = vmatpush1.bf16.msra.mxu0 0
      %1814 = vmatprep.subr.bf16.mxu0 0
      %1815 = vmatpush1.bf16.msra.mxu0 0
      %1816 = vmatprep.subr.bf16.mxu0 0
      %1817 = vmatpush1.bf16.msra.mxu0 0
      %1818 = vmatprep.subr.bf16.mxu0 0
      %1819 = vmatpush1.bf16.msra.mxu0 0
      %1820 = vmatprep.subr.bf16.mxu0 0
      %1821 = vmatpush1.bf16.msra.mxu0 0
      %1822 = vmatprep.mubr.bf16.mxu0 0
      %1823 = vmatmul.mubr.bf16.gmra.mrb[0].mxu0 %v1776
      %v1824 = vpop.f32.mrb[0].mxu0
      %v1825 = vadd.f32 0.0, %v1824
      %v1826 = vpop.f32.mrb[0].mxu0
      %v1827 = vpop.f32.mrb[0].mxu0
      %v1828 = vadd.f32 0.0, %v1827
      %v1829 = vpop.f32.mrb[0].mxu0
      %1830 = vmatprep.mubr.bf16.mxu0 0
      %1831 = vmatmul.mubr.bf16.gmra.mrb[0].mxu0 %v1779
      %v1832 = vpop.f32.mrb[0].mxu0
      %v1833 = vadd.f32 0.0, %v1832
      %v1834 = vpop.f32.mrb[0].mxu0
      %v1835 = vpop.f32.mrb[0].mxu0
      %v1836 = vadd.f32 0.0, %v1835
      %v1837 = vpop.f32.mrb[0].mxu0
      %1838 = vmatprep.mubr.bf16.mxu0 0
      %1839 = vmatmul.mubr.bf16.gmra.mrb[0].mxu0 %v1782
      %v1840 = vpop.f32.mrb[0].mxu0
      %v1841 = vadd.f32 0.0, %v1840
      %v1842 = vpop.f32.mrb[0].mxu0
      %v1843 = vpop.f32.mrb[0].mxu0
      %v1844 = vadd.f32 0.0, %v1843
      %v1845 = vpop.f32.mrb[0].mxu0
      %1846 = vmatprep.mubr.bf16.mxu0 0
      %1847 = vmatmul.mubr.bf16.gmra.mrb[0].mxu0 %v1785
      %v1848 = vpop.f32.mrb[0].mxu0
      %v1849 = vadd.f32 0.0, %v1848
      %v1850 = vpop.f32.mrb[0].mxu0
      %v1851 = vpop.f32.mrb[0].mxu0
      %v1852 = vadd.f32 0.0, %v1851
      %v1853 = vpop.f32.mrb[0].mxu0
      %1854 = vdwg.mxu0
      %v1855 = vadd.f32 %v1625, %v1825
      %v1856 = vadd.f32 %v1626, %v1828
      %v1857 = vadd.f32 %v1627, %v1833
      %v1858 = vadd.f32 %v1628, %v1836
      %v1859 = vadd.f32 %v1629, %v1841
      %v1860 = vadd.f32 %v1630, %v1844
      %v1861 = vadd.f32 %v1631, %v1849
      %v1862 = vadd.f32 %v1632, %v1852
      %v1863 = vld [vmem:[%s5] sm:$0x1]
      %v1865 = vlaneseq
      %v1866 = vshrl.u32 %v1865, 7
      %v1867 = vsub.s32 0, %v1866
      %v1868 = vrot.slane %v1863, %v1867
      %v1870 = vadd.f32 %v1855, %v1868
      %v1871 = vadd.f32 %v1856, %v1868
      %v1872 = vadd.f32 %v1857, %v1868
      %v1873 = vadd.f32 %v1858, %v1868
      %v1874 = vadd.f32 %v1859, %v1868
      %v1875 = vadd.f32 %v1860, %v1868
      %v1876 = vadd.f32 %v1861, %v1868
      %v1877 = vadd.f32 %v1862, %v1868
      %v1878 = vmax.f32 %v1870, 0.0
      %v1879 = vmax.f32 %v1871, 0.0
      %v1880 = vmax.f32 %v1872, 0.0
      %v1881 = vmax.f32 %v1873, 0.0
      %v1882 = vmax.f32 %v1874, 0.0
      %v1883 = vmax.f32 %v1875, 0.0
      %v1884 = vmax.f32 %v1876, 0.0
      %v1885 = vmax.f32 %v1877, 0.0
      %s1886 = scalar_lea.vmem [#allocation2], 16
      %1887 = vst [vmem:[%s1886 + $0x1] sm:$0xff] %v1878
      %1888 = vst [vmem:[%s1886 + $0x11] sm:$0xff] %v1879
      %1889 = vst [vmem:[%s1886 + $0x21] sm:$0xff] %v1880
      %1890 = vst [vmem:[%s1886 + $0x31] sm:$0xff] %v1881
      %1891 = vst [vmem:[%s1886 + $0x41] sm:$0xff] %v1882
      %1892 = vst [vmem:[%s1886 + $0x51] sm:$0xff] %v1883
      %1893 = vst [vmem:[%s1886 + $0x61] sm:$0xff] %v1884
      %1894 = vst [vmem:[%s1886 + $0x71] sm:$0xff] %v1885
      %1895 = vst [vmem:[#allocation2 + $0x1] sm:$0xff] %v1879
      %s1896 = scalar_lea.vmem [#allocation2], 144
      %1897 = vst [vmem:[%s1896 + $0x1] sm:$0xff] %v1884
      %v1898 = vld [vmem:[#allocation2 + $0x2] sm:$0x1]
      %v1899 = vld [vmem:[#allocation2 + $0x12] sm:$0x1]
      %v1900 = vld [vmem:[#allocation2 + $0x22] sm:$0x1]
      %v1901 = vld [vmem:[#allocation2 + $0x32] sm:$0x1]
      %v1902 = vld [vmem:[#allocation2 + $0x42] sm:$0x1]
      %v1903 = vld [vmem:[#allocation2 + $0x52] sm:$0x1]
      %v1904 = vld [vmem:[#allocation2 + $0x62] sm:$0x1]
      %v1905 = vld [vmem:[#allocation2 + $0x72] sm:$0x1]
      %v1906 = vld [vmem:[#allocation2 + $0x82] sm:$0x1]
      %v1907 = vld [vmem:[#allocation2 + $0x92] sm:$0x1]
      %1908 = vst [vmem:[#allocation2] sm:$0x1] %v1898
      %1909 = vst [vmem:[#allocation2 + $0x10] sm:$0x1] %v1899
      %1910 = vst [vmem:[#allocation2 + $0x20] sm:$0x1] %v1900
      %1911 = vst [vmem:[#allocation2 + $0x30] sm:$0x1] %v1901
      %1912 = vst [vmem:[#allocation2 + $0x40] sm:$0x1] %v1902
      %1913 = vst [vmem:[#allocation2 + $0x50] sm:$0x1] %v1903
      %1914 = vst [vmem:[#allocation2 + $0x60] sm:$0x1] %v1904
      %1915 = vst [vmem:[#allocation2 + $0x70] sm:$0x1] %v1905
      %1916 = vst [vmem:[#allocation2 + $0x80] sm:$0x1] %v1906
      %1917 = vst [vmem:[#allocation2 + $0x90] sm:$0x1] %v1907
      %v1918 = vld [vmem:[#allocation2 + $0x7] sm:$0x1]
      %v1919 = vld [vmem:[#allocation2 + $0x17] sm:$0x1]
      %v1920 = vld [vmem:[#allocation2 + $0x27] sm:$0x1]
      %v1921 = vld [vmem:[#allocation2 + $0x37] sm:$0x1]
      %v1922 = vld [vmem:[#allocation2 + $0x47] sm:$0x1]
      %v1923 = vld [vmem:[#allocation2 + $0x57] sm:$0x1]
      %v1924 = vld [vmem:[#allocation2 + $0x67] sm:$0x1]
      %v1925 = vld [vmem:[#allocation2 + $0x77] sm:$0x1]
      %v1926 = vld [vmem:[#allocation2 + $0x87] sm:$0x1]
      %v1927 = vld [vmem:[#allocation2 + $0x97] sm:$0x1]
      %1928 = vst [vmem:[#allocation2 + $0x9] sm:$0x1] %v1918
      %1929 = vst [vmem:[#allocation2 + $0x19] sm:$0x1] %v1919
      %1930 = vst [vmem:[#allocation2 + $0x29] sm:$0x1] %v1920
      %1931 = vst [vmem:[#allocation2 + $0x39] sm:$0x1] %v1921
      %1932 = vst [vmem:[#allocation2 + $0x49] sm:$0x1] %v1922
      %1933 = vst [vmem:[#allocation2 + $0x59] sm:$0x1] %v1923
      %1934 = vst [vmem:[#allocation2 + $0x69] sm:$0x1] %v1924
      %1935 = vst [vmem:[#allocation2 + $0x79] sm:$0x1] %v1925
      %1936 = vst [vmem:[#allocation2 + $0x89] sm:$0x1] %v1926
      %1937 = vst [vmem:[#allocation2 + $0x99] sm:$0x1] %v1927
      %v1938 = vld [vmem:[#allocation2] sm:$0xff]
      %v1939 = vld [vmem:[#allocation2 + $0x10] sm:$0xff]
      %v1940 = vld [vmem:[#allocation2 + $0x20] sm:$0xff]
      %v1941 = vld [vmem:[#allocation2 + $0x30] sm:$0xff]
      %v1942 = vld [vmem:[#allocation2 + $0x40] sm:$0xff]
      %v1943 = vld [vmem:[#allocation2 + $0x50] sm:$0xff]
      %v1944 = vld [vmem:[#allocation2 + $0x60] sm:$0xff]
      %v1945 = vld [vmem:[#allocation2 + $0x70] sm:$0xff]
      %v1946 = vpack.c.bf16 %v1938, %v1938
      %v1947 = vpack.c.bf16 %v1939, %v1939
      %v1948 = vpack.c.bf16 %v1940, %v1940
      %v1949 = vpack.c.bf16 %v1941, %v1941
      %v1950 = vpack.c.bf16 %v1942, %v1942
      %v1951 = vpack.c.bf16 %v1943, %v1943
      %v1952 = vpack.c.bf16 %v1944, %v1944
      %v1953 = vpack.c.bf16 %v1945, %v1945
      %v1954 = vld [vmem:[%s6] sm:$0xf]
      %v1955 = vld [vmem:[%s6 + $0x4] sm:$0xf]
      %v1956 = vld [vmem:[%s6 + $0x8] sm:$0xf]
      %v1957 = vld [vmem:[%s6 + $0xc] sm:$0xf]
      %v1958 = vld [vmem:[%s6 + $0x10] sm:$0xf]
      %v1959 = vld [vmem:[%s6 + $0x14] sm:$0xf]
      %v1960 = vld [vmem:[%s6 + $0x18] sm:$0xf]
      %v1961 = vld [vmem:[%s6 + $0x1c] sm:$0xf]
      %v1962 = vld [vmem:[%s6 + $0x20] sm:$0xf]
      %v1963 = vld [vmem:[%s6 + $0x24] sm:$0xf]
      %v1964 = vld [vmem:[%s6 + $0x28] sm:$0xf]
      %v1965 = vld [vmem:[%s6 + $0x2c] sm:$0xf]
      %v1966 = vld [vmem:[%s6 + $0x30] sm:$0xf]
      %v1967 = vld [vmem:[%s6 + $0x34] sm:$0xf]
      %v1968 = vld [vmem:[%s6 + $0x38] sm:$0xf]
      %v1969 = vld [vmem:[%s6 + $0x3c] sm:$0xf]
      %v1970 = vld [vmem:[#allocation2 + $0x1] sm:$0xff]
      %v1971 = vld [vmem:[#allocation2 + $0x11] sm:$0xff]
      %v1972 = vld [vmem:[#allocation2 + $0x21] sm:$0xff]
      %v1973 = vld [vmem:[#allocation2 + $0x31] sm:$0xff]
      %v1974 = vld [vmem:[#allocation2 + $0x41] sm:$0xff]
      %v1975 = vld [vmem:[#allocation2 + $0x51] sm:$0xff]
      %v1976 = vld [vmem:[#allocation2 + $0x61] sm:$0xff]
      %v1977 = vld [vmem:[#allocation2 + $0x71] sm:$0xff]
      %v1978 = vpack.c.bf16 %v1970, %v1970
      %v1979 = vpack.c.bf16 %v1971, %v1971
      %v1980 = vpack.c.bf16 %v1972, %v1972
      %v1981 = vpack.c.bf16 %v1973, %v1973
      %v1982 = vpack.c.bf16 %v1974, %v1974
      %v1983 = vpack.c.bf16 %v1975, %v1975
      %v1984 = vpack.c.bf16 %v1976, %v1976
      %v1985 = vpack.c.bf16 %v1977, %v1977
      %s1986 = scalar_lea.vmem %s6, 64
      %v1987 = vld [vmem:[%s1986] sm:$0xf]
      %v1988 = vld [vmem:[%s1986 + $0x4] sm:$0xf]
      %v1989 = vld [vmem:[%s1986 + $0x8] sm:$0xf]
      %v1990 = vld [vmem:[%s1986 + $0xc] sm:$0xf]
      %v1991 = vld [vmem:[%s1986 + $0x10] sm:$0xf]
      %v1992 = vld [vmem:[%s1986 + $0x14] sm:$0xf]
      %v1993 = vld [vmem:[%s1986 + $0x18] sm:$0xf]
      %v1994 = vld [vmem:[%s1986 + $0x1c] sm:$0xf]
      %v1995 = vld [vmem:[%s1986 + $0x20] sm:$0xf]
      %v1996 = vld [vmem:[%s1986 + $0x24] sm:$0xf]
      %v1997 = vld [vmem:[%s1986 + $0x28] sm:$0xf]
      %v1998 = vld [vmem:[%s1986 + $0x2c] sm:$0xf]
      %v1999 = vld [vmem:[%s1986 + $0x30] sm:$0xf]
      %v2000 = vld [vmem:[%s1986 + $0x34] sm:$0xf]
      %v2001 = vld [vmem:[%s1986 + $0x38] sm:$0xf]
      %v2002 = vld [vmem:[%s1986 + $0x3c] sm:$0xf]
      %v2011 = vunpack.c.l.b16 %v1978
      %v2012 = vunpack.c.l.b16 %v1979
      %v2013 = vunpack.c.l.b16 %v1980
      %v2014 = vunpack.c.l.b16 %v1981
      %v2015 = vunpack.c.l.b16 %v1982
      %v2016 = vunpack.c.l.b16 %v1983
      %v2017 = vunpack.c.l.b16 %v1984
      %v2018 = vunpack.c.l.b16 %v1985
      %v2019 = vpack.c.b16 %v2012, %v2011
      %v2020 = vpack.c.b16 %v2014, %v2013
      %v2021 = vpack.c.b16 %v2016, %v2015
      %v2022 = vpack.c.b16 %v2018, %v2017
      %v2043 = vunpack.c.l.b16 %v1987
      %v2044 = vunpack.c.l.b16 %v1988
      %v2045 = vunpack.c.l.b16 %v1989
      %v2046 = vunpack.c.l.b16 %v1990
      %v2047 = vunpack.c.l.b16 %v1991
      %v2048 = vunpack.c.l.b16 %v1992
      %v2049 = vunpack.c.l.b16 %v1993
      %v2050 = vunpack.c.l.b16 %v1994
      %v2051 = vunpack.c.l.b16 %v1995
      %v2052 = vunpack.c.l.b16 %v1996
      %v2053 = vunpack.c.l.b16 %v1997
      %v2054 = vunpack.c.l.b16 %v1998
      %v2055 = vunpack.c.l.b16 %v1999
      %v2056 = vunpack.c.l.b16 %v2000
      %v2057 = vunpack.c.l.b16 %v2001
      %v2058 = vunpack.c.l.b16 %v2002
      %v2059 = vpack.c.b16 %v2044, %v2043
      %v2060 = vpack.c.b16 %v2046, %v2045
      %v2061 = vpack.c.b16 %v2048, %v2047
      %v2062 = vpack.c.b16 %v2050, %v2049
      %v2063 = vpack.c.b16 %v2052, %v2051
      %v2064 = vpack.c.b16 %v2054, %v2053
      %v2065 = vpack.c.b16 %v2056, %v2055
      %v2066 = vpack.c.b16 %v2058, %v2057
      %2075 = vmatprep.subr.bf16.mxu0 0
      %2076 = vmatpush1.bf16.msra.mxu0 %v2059
      %2077 = vmatprep.subr.bf16.mxu0 0
      %2078 = vmatpush1.bf16.msra.mxu0 %v2060
      %2079 = vmatprep.subr.bf16.mxu0 0
      %2080 = vmatpush1.bf16.msra.mxu0 %v2061
      %2081 = vmatprep.subr.bf16.mxu0 0
      %2082 = vmatpush1.bf16.msra.mxu0 %v2062
      %2083 = vmatprep.subr.bf16.mxu0 0
      %2084 = vmatpush1.bf16.msra.mxu0 %v2063
      %2085 = vmatprep.subr.bf16.mxu0 0
      %2086 = vmatpush1.bf16.msra.mxu0 %v2064
      %2087 = vmatprep.subr.bf16.mxu0 0
      %2088 = vmatpush1.bf16.msra.mxu0 %v2065
      %2089 = vmatprep.subr.bf16.mxu0 0
      %2090 = vmatpush1.bf16.msra.mxu0 %v2066
      %2091 = vmatprep.subr.bf16.mxu0 0
      %2092 = vmatpush1.bf16.msra.mxu0 0
      %2093 = vmatprep.subr.bf16.mxu0 0
      %2094 = vmatpush1.bf16.msra.mxu0 0
      %2095 = vmatprep.subr.bf16.mxu0 0
      %2096 = vmatpush1.bf16.msra.mxu0 0
      %2097 = vmatprep.subr.bf16.mxu0 0
      %2098 = vmatpush1.bf16.msra.mxu0 0
      %2099 = vmatprep.subr.bf16.mxu0 0
      %2100 = vmatpush1.bf16.msra.mxu0 0
      %2101 = vmatprep.subr.bf16.mxu0 0
      %2102 = vmatpush1.bf16.msra.mxu0 0
      %2103 = vmatprep.subr.bf16.mxu0 0
      %2104 = vmatpush1.bf16.msra.mxu0 0
      %2105 = vmatprep.subr.bf16.mxu0 0
      %2106 = vmatpush1.bf16.msra.mxu0 0
      %2107 = vmatprep.mubr.bf16.mxu0 0
      %2108 = vmatmul.mubr.bf16.gmra.mrb[0].mxu0 %v2019
      %v2109 = vpop.f32.mrb[0].mxu0
      %v2110 = vadd.f32 0.0, %v2109
      %v2111 = vpop.f32.mrb[0].mxu0
      %v2112 = vpop.f32.mrb[0].mxu0
      %v2113 = vadd.f32 0.0, %v2112
      %v2114 = vpop.f32.mrb[0].mxu0
      %2115 = vmatprep.mubr.bf16.mxu0 0
      %2116 = vmatmul.mubr.bf16.gmra.mrb[0].mxu0 %v2020
      %v2117 = vpop.f32.mrb[0].mxu0
      %v2118 = vadd.f32 0.0, %v2117
      %v2119 = vpop.f32.mrb[0].mxu0
      %v2120 = vpop.f32.mrb[0].mxu0
      %v2121 = vadd.f32 0.0, %v2120
      %v2122 = vpop.f32.mrb[0].mxu0
      %2123 = vmatprep.mubr.bf16.mxu0 0
      %2124 = vmatmul.mubr.bf16.gmra.mrb[0].mxu0 %v2021
      %v2125 = vpop.f32.mrb[0].mxu0
      %v2126 = vadd.f32 0.0, %v2125
      %v2127 = vpop.f32.mrb[0].mxu0
      %v2128 = vpop.f32.mrb[0].mxu0
      %v2129 = vadd.f32 0.0, %v2128
      %v2130 = vpop.f32.mrb[0].mxu0
      %2131 = vmatprep.mubr.bf16.mxu0 0
      %2132 = vmatmul.mubr.bf16.gmra.mrb[0].mxu0 %v2022
      %v2133 = vpop.f32.mrb[0].mxu0
      %v2134 = vadd.f32 0.0, %v2133
      %v2135 = vpop.f32.mrb[0].mxu0
      %v2136 = vpop.f32.mrb[0].mxu0
      %v2137 = vadd.f32 0.0, %v2136
      %v2138 = vpop.f32.mrb[0].mxu0
      %2139 = vdwg.mxu0
      %v2148 = vunpack.c.l.b16 %v1946
      %v2149 = vunpack.c.l.b16 %v1947
      %v2150 = vunpack.c.l.b16 %v1948
      %v2151 = vunpack.c.l.b16 %v1949
      %v2152 = vunpack.c.l.b16 %v1950
      %v2153 = vunpack.c.l.b16 %v1951
      %v2154 = vunpack.c.l.b16 %v1952
      %v2155 = vunpack.c.l.b16 %v1953
      %v2156 = vpack.c.b16 %v2149, %v2148
      %v2157 = vpack.c.b16 %v2151, %v2150
      %v2158 = vpack.c.b16 %v2153, %v2152
      %v2159 = vpack.c.b16 %v2155, %v2154
      %v2180 = vunpack.c.l.b16 %v1954
      %v2181 = vunpack.c.l.b16 %v1955
      %v2182 = vunpack.c.l.b16 %v1956
      %v2183 = vunpack.c.l.b16 %v1957
      %v2184 = vunpack.c.l.b16 %v1958
      %v2185 = vunpack.c.l.b16 %v1959
      %v2186 = vunpack.c.l.b16 %v1960
      %v2187 = vunpack.c.l.b16 %v1961
      %v2188 = vunpack.c.l.b16 %v1962
      %v2189 = vunpack.c.l.b16 %v1963
      %v2190 = vunpack.c.l.b16 %v1964
      %v2191 = vunpack.c.l.b16 %v1965
      %v2192 = vunpack.c.l.b16 %v1966
      %v2193 = vunpack.c.l.b16 %v1967
      %v2194 = vunpack.c.l.b16 %v1968
      %v2195 = vunpack.c.l.b16 %v1969
      %v2196 = vpack.c.b16 %v2181, %v2180
      %v2197 = vpack.c.b16 %v2183, %v2182
      %v2198 = vpack.c.b16 %v2185, %v2184
      %v2199 = vpack.c.b16 %v2187, %v2186
      %v2200 = vpack.c.b16 %v2189, %v2188
      %v2201 = vpack.c.b16 %v2191, %v2190
      %v2202 = vpack.c.b16 %v2193, %v2192
      %v2203 = vpack.c.b16 %v2195, %v2194
      %2212 = vmatprep.subr.bf16.mxu0 0
      %2213 = vmatpush1.bf16.msra.mxu0 %v2196
      %2214 = vmatprep.subr.bf16.mxu0 0
      %2215 = vmatpush1.bf16.msra.mxu0 %v2197
      %2216 = vmatprep.subr.bf16.mxu0 0
      %2217 = vmatpush1.bf16.msra.mxu0 %v2198
      %2218 = vmatprep.subr.bf16.mxu0 0
      %2219 = vmatpush1.bf16.msra.mxu0 %v2199
      %2220 = vmatprep.subr.bf16.mxu0 0
      %2221 = vmatpush1.bf16.msra.mxu0 %v2200
      %2222 = vmatprep.subr.bf16.mxu0 0
      %2223 = vmatpush1.bf16.msra.mxu0 %v2201
      %2224 = vmatprep.subr.bf16.mxu0 0
      %2225 = vmatpush1.bf16.msra.mxu0 %v2202
      %2226 = vmatprep.subr.bf16.mxu0 0
      %2227 = vmatpush1.bf16.msra.mxu0 %v2203
      %2228 = vmatprep.subr.bf16.mxu0 0
      %2229 = vmatpush1.bf16.msra.mxu0 0
      %2230 = vmatprep.subr.bf16.mxu0 0
      %2231 = vmatpush1.bf16.msra.mxu0 0
      %2232 = vmatprep.subr.bf16.mxu0 0
      %2233 = vmatpush1.bf16.msra.mxu0 0
      %2234 = vmatprep.subr.bf16.mxu0 0
      %2235 = vmatpush1.bf16.msra.mxu0 0
      %2236 = vmatprep.subr.bf16.mxu0 0
      %2237 = vmatpush1.bf16.msra.mxu0 0
      %2238 = vmatprep.subr.bf16.mxu0 0
      %2239 = vmatpush1.bf16.msra.mxu0 0
      %2240 = vmatprep.subr.bf16.mxu0 0
      %2241 = vmatpush1.bf16.msra.mxu0 0
      %2242 = vmatprep.subr.bf16.mxu0 0
      %2243 = vmatpush1.bf16.msra.mxu0 0
      %2244 = vmatprep.mubr.bf16.mxu0 0
      %2245 = vmatmul.mubr.bf16.gmra.mrb[0].mxu0 %v2156
      %v2246 = vpop.f32.mrb[0].mxu0
      %v2247 = vadd.f32 %v2110, %v2246
      %v2248 = vpop.f32.mrb[0].mxu0
      %v2249 = vpop.f32.mrb[0].mxu0
      %v2250 = vadd.f32 %v2113, %v2249
      %v2251 = vpop.f32.mrb[0].mxu0
      %2252 = vmatprep.mubr.bf16.mxu0 0
      %2253 = vmatmul.mubr.bf16.gmra.mrb[0].mxu0 %v2157
      %v2254 = vpop.f32.mrb[0].mxu0
      %v2255 = vadd.f32 %v2118, %v2254
      %v2256 = vpop.f32.mrb[0].mxu0
      %v2257 = vpop.f32.mrb[0].mxu0
      %v2258 = vadd.f32 %v2121, %v2257
      %v2259 = vpop.f32.mrb[0].mxu0
      %2260 = vmatprep.mubr.bf16.mxu0 0
      %2261 = vmatmul.mubr.bf16.gmra.mrb[0].mxu0 %v2158
      %v2262 = vpop.f32.mrb[0].mxu0
      %v2263 = vadd.f32 %v2126, %v2262
      %v2264 = vpop.f32.mrb[0].mxu0
      %v2265 = vpop.f32.mrb[0].mxu0
      %v2266 = vadd.f32 %v2129, %v2265
      %v2267 = vpop.f32.mrb[0].mxu0
      %2268 = vmatprep.mubr.bf16.mxu0 0
      %2269 = vmatmul.mubr.bf16.gmra.mrb[0].mxu0 %v2159
      %v2270 = vpop.f32.mrb[0].mxu0
      %v2271 = vadd.f32 %v2134, %v2270
      %v2272 = vpop.f32.mrb[0].mxu0
      %v2273 = vpop.f32.mrb[0].mxu0
      %v2274 = vadd.f32 %v2137, %v2273
      %v2275 = vpop.f32.mrb[0].mxu0
      %2276 = vdwg.mxu0
      %v2277 = vld [vmem:[#allocation2 + $0x2] sm:$0xff]
      %v2278 = vld [vmem:[#allocation2 + $0x12] sm:$0xff]
      %v2279 = vld [vmem:[#allocation2 + $0x22] sm:$0xff]
      %v2280 = vld [vmem:[#allocation2 + $0x32] sm:$0xff]
      %v2281 = vld [vmem:[#allocation2 + $0x42] sm:$0xff]
      %v2282 = vld [vmem:[#allocation2 + $0x52] sm:$0xff]
      %v2283 = vld [vmem:[#allocation2 + $0x62] sm:$0xff]
      %v2284 = vld [vmem:[#allocation2 + $0x72] sm:$0xff]
      %v2285 = vpack.c.bf16 %v2277, %v2277
      %v2286 = vpack.c.bf16 %v2278, %v2278
      %v2287 = vpack.c.bf16 %v2279, %v2279
      %v2288 = vpack.c.bf16 %v2280, %v2280
      %v2289 = vpack.c.bf16 %v2281, %v2281
      %v2290 = vpack.c.bf16 %v2282, %v2282
      %v2291 = vpack.c.bf16 %v2283, %v2283
      %v2292 = vpack.c.bf16 %v2284, %v2284
      %s2293 = scalar_lea.vmem %s6, 128
      %v2294 = vld [vmem:[%s2293] sm:$0xf]
      %v2295 = vld [vmem:[%s2293 + $0x4] sm:$0xf]
      %v2296 = vld [vmem:[%s2293 + $0x8] sm:$0xf]
      %v2297 = vld [vmem:[%s2293 + $0xc] sm:$0xf]
      %v2298 = vld [vmem:[%s2293 + $0x10] sm:$0xf]
      %v2299 = vld [vmem:[%s2293 + $0x14] sm:$0xf]
      %v2300 = vld [vmem:[%s2293 + $0x18] sm:$0xf]
      %v2301 = vld [vmem:[%s2293 + $0x1c] sm:$0xf]
      %v2302 = vld [vmem:[%s2293 + $0x20] sm:$0xf]
      %v2303 = vld [vmem:[%s2293 + $0x24] sm:$0xf]
      %v2304 = vld [vmem:[%s2293 + $0x28] sm:$0xf]
      %v2305 = vld [vmem:[%s2293 + $0x2c] sm:$0xf]
      %v2306 = vld [vmem:[%s2293 + $0x30] sm:$0xf]
      %v2307 = vld [vmem:[%s2293 + $0x34] sm:$0xf]
      %v2308 = vld [vmem:[%s2293 + $0x38] sm:$0xf]
      %v2309 = vld [vmem:[%s2293 + $0x3c] sm:$0xf]
      %v2318 = vunpack.c.l.b16 %v2285
      %v2319 = vunpack.c.l.b16 %v2286
      %v2320 = vunpack.c.l.b16 %v2287
      %v2321 = vunpack.c.l.b16 %v2288
      %v2322 = vunpack.c.l.b16 %v2289
      %v2323 = vunpack.c.l.b16 %v2290
      %v2324 = vunpack.c.l.b16 %v2291
      %v2325 = vunpack.c.l.b16 %v2292
      %v2326 = vpack.c.b16 %v2319, %v2318
      %v2327 = vpack.c.b16 %v2321, %v2320
      %v2328 = vpack.c.b16 %v2323, %v2322
      %v2329 = vpack.c.b16 %v2325, %v2324
      %v2350 = vunpack.c.l.b16 %v2294
      %v2351 = vunpack.c.l.b16 %v2295
      %v2352 = vunpack.c.l.b16 %v2296
      %v2353 = vunpack.c.l.b16 %v2297
      %v2354 = vunpack.c.l.b16 %v2298
      %v2355 = vunpack.c.l.b16 %v2299
      %v2356 = vunpack.c.l.b16 %v2300
      %v2357 = vunpack.c.l.b16 %v2301
      %v2358 = vunpack.c.l.b16 %v2302
      %v2359 = vunpack.c.l.b16 %v2303
      %v2360 = vunpack.c.l.b16 %v2304
      %v2361 = vunpack.c.l.b16 %v2305
      %v2362 = vunpack.c.l.b16 %v2306
      %v2363 = vunpack.c.l.b16 %v2307
      %v2364 = vunpack.c.l.b16 %v2308
      %v2365 = vunpack.c.l.b16 %v2309
      %v2366 = vpack.c.b16 %v2351, %v2350
      %v2367 = vpack.c.b16 %v2353, %v2352
      %v2368 = vpack.c.b16 %v2355, %v2354
      %v2369 = vpack.c.b16 %v2357, %v2356
      %v2370 = vpack.c.b16 %v2359, %v2358
      %v2371 = vpack.c.b16 %v2361, %v2360
      %v2372 = vpack.c.b16 %v2363, %v2362
      %v2373 = vpack.c.b16 %v2365, %v2364
      %2382 = vmatprep.subr.bf16.mxu0 0
      %2383 = vmatpush1.bf16.msra.mxu0 %v2366
      %2384 = vmatprep.subr.bf16.mxu0 0
      %2385 = vmatpush1.bf16.msra.mxu0 %v2367
      %2386 = vmatprep.subr.bf16.mxu0 0
      %2387 = vmatpush1.bf16.msra.mxu0 %v2368
      %2388 = vmatprep.subr.bf16.mxu0 0
      %2389 = vmatpush1.bf16.msra.mxu0 %v2369
      %2390 = vmatprep.subr.bf16.mxu0 0
      %2391 = vmatpush1.bf16.msra.mxu0 %v2370
      %2392 = vmatprep.subr.bf16.mxu0 0
      %2393 = vmatpush1.bf16.msra.mxu0 %v2371
      %2394 = vmatprep.subr.bf16.mxu0 0
      %2395 = vmatpush1.bf16.msra.mxu0 %v2372
      %2396 = vmatprep.subr.bf16.mxu0 0
      %2397 = vmatpush1.bf16.msra.mxu0 %v2373
      %2398 = vmatprep.subr.bf16.mxu0 0
      %2399 = vmatpush1.bf16.msra.mxu0 0
      %2400 = vmatprep.subr.bf16.mxu0 0
      %2401 = vmatpush1.bf16.msra.mxu0 0
      %2402 = vmatprep.subr.bf16.mxu0 0
      %2403 = vmatpush1.bf16.msra.mxu0 0
      %2404 = vmatprep.subr.bf16.mxu0 0
      %2405 = vmatpush1.bf16.msra.mxu0 0
      %2406 = vmatprep.subr.bf16.mxu0 0
      %2407 = vmatpush1.bf16.msra.mxu0 0
      %2408 = vmatprep.subr.bf16.mxu0 0
      %2409 = vmatpush1.bf16.msra.mxu0 0
      %2410 = vmatprep.subr.bf16.mxu0 0
      %2411 = vmatpush1.bf16.msra.mxu0 0
      %2412 = vmatprep.subr.bf16.mxu0 0
      %2413 = vmatpush1.bf16.msra.mxu0 0
      %2414 = vmatprep.mubr.bf16.mxu0 0
      %2415 = vmatmul.mubr.bf16.gmra.mrb[0].mxu0 %v2326
      %v2416 = vpop.f32.mrb[0].mxu0
      %v2417 = vadd.f32 0.0, %v2416
      %v2418 = vpop.f32.mrb[0].mxu0
      %v2419 = vpop.f32.mrb[0].mxu0
      %v2420 = vadd.f32 0.0, %v2419
      %v2421 = vpop.f32.mrb[0].mxu0
      %2422 = vmatprep.mubr.bf16.mxu0 0
      %2423 = vmatmul.mubr.bf16.gmra.mrb[0].mxu0 %v2327
      %v2424 = vpop.f32.mrb[0].mxu0
      %v2425 = vadd.f32 0.0, %v2424
      %v2426 = vpop.f32.mrb[0].mxu0
      %v2427 = vpop.f32.mrb[0].mxu0
      %v2428 = vadd.f32 0.0, %v2427
      %v2429 = vpop.f32.mrb[0].mxu0
      %2430 = vmatprep.mubr.bf16.mxu0 0
      %2431 = vmatmul.mubr.bf16.gmra.mrb[0].mxu0 %v2328
      %v2432 = vpop.f32.mrb[0].mxu0
      %v2433 = vadd.f32 0.0, %v2432
      %v2434 = vpop.f32.mrb[0].mxu0
      %v2435 = vpop.f32.mrb[0].mxu0
      %v2436 = vadd.f32 0.0, %v2435
      %v2437 = vpop.f32.mrb[0].mxu0
      %2438 = vmatprep.mubr.bf16.mxu0 0
      %2439 = vmatmul.mubr.bf16.gmra.mrb[0].mxu0 %v2329
      %v2440 = vpop.f32.mrb[0].mxu0
      %v2441 = vadd.f32 0.0, %v2440
      %v2442 = vpop.f32.mrb[0].mxu0
      %v2443 = vpop.f32.mrb[0].mxu0
      %v2444 = vadd.f32 0.0, %v2443
      %v2445 = vpop.f32.mrb[0].mxu0
      %2446 = vdwg.mxu0
      %v2447 = vadd.f32 %v2247, %v2417
      %v2448 = vadd.f32 %v2250, %v2420
      %v2449 = vadd.f32 %v2255, %v2425
      %v2450 = vadd.f32 %v2258, %v2428
      %v2451 = vadd.f32 %v2263, %v2433
      %v2452 = vadd.f32 %v2266, %v2436
      %v2453 = vadd.f32 %v2271, %v2441
      %v2454 = vadd.f32 %v2274, %v2444
      %v2455 = vld [vmem:[%s1886] sm:$0xff]
      %v2456 = vld [vmem:[%s1886 + $0x10] sm:$0xff]
      %v2457 = vld [vmem:[%s1886 + $0x20] sm:$0xff]
      %v2458 = vld [vmem:[%s1886 + $0x30] sm:$0xff]
      %v2459 = vld [vmem:[%s1886 + $0x40] sm:$0xff]
      %v2460 = vld [vmem:[%s1886 + $0x50] sm:$0xff]
      %v2461 = vld [vmem:[%s1886 + $0x60] sm:$0xff]
      %v2462 = vld [vmem:[%s1886 + $0x70] sm:$0xff]
      %v2463 = vpack.c.bf16 %v2455, %v2455
      %v2464 = vpack.c.bf16 %v2456, %v2456
      %v2465 = vpack.c.bf16 %v2457, %v2457
      %v2466 = vpack.c.bf16 %v2458, %v2458
      %v2467 = vpack.c.bf16 %v2459, %v2459
      %v2468 = vpack.c.bf16 %v2460, %v2460
      %v2469 = vpack.c.bf16 %v2461, %v2461
      %v2470 = vpack.c.bf16 %v2462, %v2462
      %s2471 = scalar_lea.vmem %s6, 192
      %v2472 = vld [vmem:[%s2471] sm:$0xf]
      %v2473 = vld [vmem:[%s2471 + $0x4] sm:$0xf]
      %v2474 = vld [vmem:[%s2471 + $0x8] sm:$0xf]
      %v2475 = vld [vmem:[%s2471 + $0xc] sm:$0xf]
      %v2476 = vld [vmem:[%s2471 + $0x10] sm:$0xf]
      %v2477 = vld [vmem:[%s2471 + $0x14] sm:$0xf]
      %v2478 = vld [vmem:[%s2471 + $0x18] sm:$0xf]
      %v2479 = vld [vmem:[%s2471 + $0x1c] sm:$0xf]
      %v2480 = vld [vmem:[%s2471 + $0x20] sm:$0xf]
      %v2481 = vld [vmem:[%s2471 + $0x24] sm:$0xf]
      %v2482 = vld [vmem:[%s2471 + $0x28] sm:$0xf]
      %v2483 = vld [vmem:[%s2471 + $0x2c] sm:$0xf]
      %v2484 = vld [vmem:[%s2471 + $0x30] sm:$0xf]
      %v2485 = vld [vmem:[%s2471 + $0x34] sm:$0xf]
      %v2486 = vld [vmem:[%s2471 + $0x38] sm:$0xf]
      %v2487 = vld [vmem:[%s2471 + $0x3c] sm:$0xf]
      %v2496 = vunpack.c.l.b16 %v2463
      %v2497 = vunpack.c.l.b16 %v2464
      %v2498 = vunpack.c.l.b16 %v2465
      %v2499 = vunpack.c.l.b16 %v2466
      %v2500 = vunpack.c.l.b16 %v2467
      %v2501 = vunpack.c.l.b16 %v2468
      %v2502 = vunpack.c.l.b16 %v2469
      %v2503 = vunpack.c.l.b16 %v2470
      %v2504 = vpack.c.b16 %v2497, %v2496
      %v2505 = vpack.c.b16 %v2499, %v2498
      %v2506 = vpack.c.b16 %v2501, %v2500
      %v2507 = vpack.c.b16 %v2503, %v2502
      %v2528 = vunpack.c.l.b16 %v2472
      %v2529 = vunpack.c.l.b16 %v2473
      %v2530 = vunpack.c.l.b16 %v2474
      %v2531 = vunpack.c.l.b16 %v2475
      %v2532 = vunpack.c.l.b16 %v2476
      %v2533 = vunpack.c.l.b16 %v2477
      %v2534 = vunpack.c.l.b16 %v2478
      %v2535 = vunpack.c.l.b16 %v2479
      %v2536 = vunpack.c.l.b16 %v2480
      %v2537 = vunpack.c.l.b16 %v2481
      %v2538 = vunpack.c.l.b16 %v2482
      %v2539 = vunpack.c.l.b16 %v2483
      %v2540 = vunpack.c.l.b16 %v2484
      %v2541 = vunpack.c.l.b16 %v2485
      %v2542 = vunpack.c.l.b16 %v2486
      %v2543 = vunpack.c.l.b16 %v2487
      %v2544 = vpack.c.b16 %v2529, %v2528
      %v2545 = vpack.c.b16 %v2531, %v2530
      %v2546 = vpack.c.b16 %v2533, %v2532
      %v2547 = vpack.c.b16 %v2535, %v2534
      %v2548 = vpack.c.b16 %v2537, %v2536
      %v2549 = vpack.c.b16 %v2539, %v2538
      %v2550 = vpack.c.b16 %v2541, %v2540
      %v2551 = vpack.c.b16 %v2543, %v2542
      %2560 = vmatprep.subr.bf16.mxu0 0
      %2561 = vmatpush1.bf16.msra.mxu0 %v2544
      %2562 = vmatprep.subr.bf16.mxu0 0
      %2563 = vmatpush1.bf16.msra.mxu0 %v2545
      %2564 = vmatprep.subr.bf16.mxu0 0
      %2565 = vmatpush1.bf16.msra.mxu0 %v2546
      %2566 = vmatprep.subr.bf16.mxu0 0
      %2567 = vmatpush1.bf16.msra.mxu0 %v2547
      %2568 = vmatprep.subr.bf16.mxu0 0
      %2569 = vmatpush1.bf16.msra.mxu0 %v2548
      %2570 = vmatprep.subr.bf16.mxu0 0
      %2571 = vmatpush1.bf16.msra.mxu0 %v2549
      %2572 = vmatprep.subr.bf16.mxu0 0
      %2573 = vmatpush1.bf16.msra.mxu0 %v2550
      %2574 = vmatprep.subr.bf16.mxu0 0
      %2575 = vmatpush1.bf16.msra.mxu0 %v2551
      %2576 = vmatprep.subr.bf16.mxu0 0
      %2577 = vmatpush1.bf16.msra.mxu0 0
      %2578 = vmatprep.subr.bf16.mxu0 0
      %2579 = vmatpush1.bf16.msra.mxu0 0
      %2580 = vmatprep.subr.bf16.mxu0 0
      %2581 = vmatpush1.bf16.msra.mxu0 0
      %2582 = vmatprep.subr.bf16.mxu0 0
      %2583 = vmatpush1.bf16.msra.mxu0 0
      %2584 = vmatprep.subr.bf16.mxu0 0
      %2585 = vmatpush1.bf16.msra.mxu0 0
      %2586 = vmatprep.subr.bf16.mxu0 0
      %2587 = vmatpush1.bf16.msra.mxu0 0
      %2588 = vmatprep.subr.bf16.mxu0 0
      %2589 = vmatpush1.bf16.msra.mxu0 0
      %2590 = vmatprep.subr.bf16.mxu0 0
      %2591 = vmatpush1.bf16.msra.mxu0 0
      %2592 = vmatprep.mubr.bf16.mxu0 0
      %2593 = vmatmul.mubr.bf16.gmra.mrb[0].mxu0 %v2504
      %v2594 = vpop.f32.mrb[0].mxu0
      %v2595 = vadd.f32 0.0, %v2594
      %v2596 = vpop.f32.mrb[0].mxu0
      %v2597 = vpop.f32.mrb[0].mxu0
      %v2598 = vadd.f32 0.0, %v2597
      %v2599 = vpop.f32.mrb[0].mxu0
      %2600 = vmatprep.mubr.bf16.mxu0 0
      %2601 = vmatmul.mubr.bf16.gmra.mrb[0].mxu0 %v2505
      %v2602 = vpop.f32.mrb[0].mxu0
      %v2603 = vadd.f32 0.0, %v2602
      %v2604 = vpop.f32.mrb[0].mxu0
      %v2605 = vpop.f32.mrb[0].mxu0
      %v2606 = vadd.f32 0.0, %v2605
      %v2607 = vpop.f32.mrb[0].mxu0
      %2608 = vmatprep.mubr.bf16.mxu0 0
      %2609 = vmatmul.mubr.bf16.gmra.mrb[0].mxu0 %v2506
      %v2610 = vpop.f32.mrb[0].mxu0
      %v2611 = vadd.f32 0.0, %v2610
      %v2612 = vpop.f32.mrb[0].mxu0
      %v2613 = vpop.f32.mrb[0].mxu0
      %v2614 = vadd.f32 0.0, %v2613
      %v2615 = vpop.f32.mrb[0].mxu0
      %2616 = vmatprep.mubr.bf16.mxu0 0
      %2617 = vmatmul.mubr.bf16.gmra.mrb[0].mxu0 %v2507
      %v2618 = vpop.f32.mrb[0].mxu0
      %v2619 = vadd.f32 0.0, %v2618
      %v2620 = vpop.f32.mrb[0].mxu0
      %v2621 = vpop.f32.mrb[0].mxu0
      %v2622 = vadd.f32 0.0, %v2621
      %v2623 = vpop.f32.mrb[0].mxu0
      %2624 = vdwg.mxu0
      %v2625 = vadd.f32 %v2447, %v2595
      %v2626 = vadd.f32 %v2448, %v2598
      %v2627 = vadd.f32 %v2449, %v2603
      %v2628 = vadd.f32 %v2450, %v2606
      %v2629 = vadd.f32 %v2451, %v2611
      %v2630 = vadd.f32 %v2452, %v2614
      %v2631 = vadd.f32 %v2453, %v2619
      %v2632 = vadd.f32 %v2454, %v2622
      %v2633 = vld [vmem:[%s1886 + $0x1] sm:$0xff]
      %v2634 = vld [vmem:[%s1886 + $0x11] sm:$0xff]
      %v2635 = vld [vmem:[%s1886 + $0x21] sm:$0xff]
      %v2636 = vld [vmem:[%s1886 + $0x31] sm:$0xff]
      %v2637 = vld [vmem:[%s1886 + $0x41] sm:$0xff]
      %v2638 = vld [vmem:[%s1886 + $0x51] sm:$0xff]
      %v2639 = vld [vmem:[%s1886 + $0x61] sm:$0xff]
      %v2640 = vld [vmem:[%s1886 + $0x71] sm:$0xff]
      %v2641 = vpack.c.bf16 %v2633, %v2633
      %v2642 = vpack.c.bf16 %v2634, %v2634
      %v2643 = vpack.c.bf16 %v2635, %v2635
      %v2644 = vpack.c.bf16 %v2636, %v2636
      %v2645 = vpack.c.bf16 %v2637, %v2637
      %v2646 = vpack.c.bf16 %v2638, %v2638
      %v2647 = vpack.c.bf16 %v2639, %v2639
      %v2648 = vpack.c.bf16 %v2640, %v2640
      %s2649 = scalar_lea.vmem %s6, 256
      %v2650 = vld [vmem:[%s2649] sm:$0xf]
      %v2651 = vld [vmem:[%s2649 + $0x4] sm:$0xf]
      %v2652 = vld [vmem:[%s2649 + $0x8] sm:$0xf]
      %v2653 = vld [vmem:[%s2649 + $0xc] sm:$0xf]
      %v2654 = vld [vmem:[%s2649 + $0x10] sm:$0xf]
      %v2655 = vld [vmem:[%s2649 + $0x14] sm:$0xf]
      %v2656 = vld [vmem:[%s2649 + $0x18] sm:$0xf]
      %v2657 = vld [vmem:[%s2649 + $0x1c] sm:$0xf]
      %v2658 = vld [vmem:[%s2649 + $0x20] sm:$0xf]
      %v2659 = vld [vmem:[%s2649 + $0x24] sm:$0xf]
      %v2660 = vld [vmem:[%s2649 + $0x28] sm:$0xf]
      %v2661 = vld [vmem:[%s2649 + $0x2c] sm:$0xf]
      %v2662 = vld [vmem:[%s2649 + $0x30] sm:$0xf]
      %v2663 = vld [vmem:[%s2649 + $0x34] sm:$0xf]
      %v2664 = vld [vmem:[%s2649 + $0x38] sm:$0xf]
      %v2665 = vld [vmem:[%s2649 + $0x3c] sm:$0xf]
      %v2674 = vunpack.c.l.b16 %v2641
      %v2675 = vunpack.c.l.b16 %v2642
      %v2676 = vunpack.c.l.b16 %v2643
      %v2677 = vunpack.c.l.b16 %v2644
      %v2678 = vunpack.c.l.b16 %v2645
      %v2679 = vunpack.c.l.b16 %v2646
      %v2680 = vunpack.c.l.b16 %v2647
      %v2681 = vunpack.c.l.b16 %v2648
      %v2682 = vpack.c.b16 %v2675, %v2674
      %v2683 = vpack.c.b16 %v2677, %v2676
      %v2684 = vpack.c.b16 %v2679, %v2678
      %v2685 = vpack.c.b16 %v2681, %v2680
      %v2706 = vunpack.c.l.b16 %v2650
      %v2707 = vunpack.c.l.b16 %v2651
      %v2708 = vunpack.c.l.b16 %v2652
      %v2709 = vunpack.c.l.b16 %v2653
      %v2710 = vunpack.c.l.b16 %v2654
      %v2711 = vunpack.c.l.b16 %v2655
      %v2712 = vunpack.c.l.b16 %v2656
      %v2713 = vunpack.c.l.b16 %v2657
      %v2714 = vunpack.c.l.b16 %v2658
      %v2715 = vunpack.c.l.b16 %v2659
      %v2716 = vunpack.c.l.b16 %v2660
      %v2717 = vunpack.c.l.b16 %v2661
      %v2718 = vunpack.c.l.b16 %v2662
      %v2719 = vunpack.c.l.b16 %v2663
      %v2720 = vunpack.c.l.b16 %v2664
      %v2721 = vunpack.c.l.b16 %v2665
      %v2722 = vpack.c.b16 %v2707, %v2706
      %v2723 = vpack.c.b16 %v2709, %v2708
      %v2724 = vpack.c.b16 %v2711, %v2710
      %v2725 = vpack.c.b16 %v2713, %v2712
      %v2726 = vpack.c.b16 %v2715, %v2714
      %v2727 = vpack.c.b16 %v2717, %v2716
      %v2728 = vpack.c.b16 %v2719, %v2718
      %v2729 = vpack.c.b16 %v2721, %v2720
      %2738 = vmatprep.subr.bf16.mxu0 0
      %2739 = vmatpush1.bf16.msra.mxu0 %v2722
      %2740 = vmatprep.subr.bf16.mxu0 0
      %2741 = vmatpush1.bf16.msra.mxu0 %v2723
      %2742 = vmatprep.subr.bf16.mxu0 0
      %2743 = vmatpush1.bf16.msra.mxu0 %v2724
      %2744 = vmatprep.subr.bf16.mxu0 0
      %2745 = vmatpush1.bf16.msra.mxu0 %v2725
      %2746 = vmatprep.subr.bf16.mxu0 0
      %2747 = vmatpush1.bf16.msra.mxu0 %v2726
      %2748 = vmatprep.subr.bf16.mxu0 0
      %2749 = vmatpush1.bf16.msra.mxu0 %v2727
      %2750 = vmatprep.subr.bf16.mxu0 0
      %2751 = vmatpush1.bf16.msra.mxu0 %v2728
      %2752 = vmatprep.subr.bf16.mxu0 0
      %2753 = vmatpush1.bf16.msra.mxu0 %v2729
      %2754 = vmatprep.subr.bf16.mxu0 0
      %2755 = vmatpush1.bf16.msra.mxu0 0
      %2756 = vmatprep.subr.bf16.mxu0 0
      %2757 = vmatpush1.bf16.msra.mxu0 0
      %2758 = vmatprep.subr.bf16.mxu0 0
      %2759 = vmatpush1.bf16.msra.mxu0 0
      %2760 = vmatprep.subr.bf16.mxu0 0
      %2761 = vmatpush1.bf16.msra.mxu0 0
      %2762 = vmatprep.subr.bf16.mxu0 0
      %2763 = vmatpush1.bf16.msra.mxu0 0
      %2764 = vmatprep.subr.bf16.mxu0 0
      %2765 = vmatpush1.bf16.msra.mxu0 0
      %2766 = vmatprep.subr.bf16.mxu0 0
      %2767 = vmatpush1.bf16.msra.mxu0 0
      %2768 = vmatprep.subr.bf16.mxu0 0
      %2769 = vmatpush1.bf16.msra.mxu0 0
      %2770 = vmatprep.mubr.bf16.mxu0 0
      %2771 = vmatmul.mubr.bf16.gmra.mrb[0].mxu0 %v2682
      %v2772 = vpop.f32.mrb[0].mxu0
      %v2773 = vadd.f32 0.0, %v2772
      %v2774 = vpop.f32.mrb[0].mxu0
      %v2775 = vpop.f32.mrb[0].mxu0
      %v2776 = vadd.f32 0.0, %v2775
      %v2777 = vpop.f32.mrb[0].mxu0
      %2778 = vmatprep.mubr.bf16.mxu0 0
      %2779 = vmatmul.mubr.bf16.gmra.mrb[0].mxu0 %v2683
      %v2780 = vpop.f32.mrb[0].mxu0
      %v2781 = vadd.f32 0.0, %v2780
      %v2782 = vpop.f32.mrb[0].mxu0
      %v2783 = vpop.f32.mrb[0].mxu0
      %v2784 = vadd.f32 0.0, %v2783
      %v2785 = vpop.f32.mrb[0].mxu0
      %2786 = vmatprep.mubr.bf16.mxu0 0
      %2787 = vmatmul.mubr.bf16.gmra.mrb[0].mxu0 %v2684
      %v2788 = vpop.f32.mrb[0].mxu0
      %v2789 = vadd.f32 0.0, %v2788
      %v2790 = vpop.f32.mrb[0].mxu0
      %v2791 = vpop.f32.mrb[0].mxu0
      %v2792 = vadd.f32 0.0, %v2791
      %v2793 = vpop.f32.mrb[0].mxu0
      %2794 = vmatprep.mubr.bf16.mxu0 0
      %2795 = vmatmul.mubr.bf16.gmra.mrb[0].mxu0 %v2685
      %v2796 = vpop.f32.mrb[0].mxu0
      %v2797 = vadd.f32 0.0, %v2796
      %v2798 = vpop.f32.mrb[0].mxu0
      %v2799 = vpop.f32.mrb[0].mxu0
      %v2800 = vadd.f32 0.0, %v2799
      %v2801 = vpop.f32.mrb[0].mxu0
      %2802 = vdwg.mxu0
      %v2803 = vadd.f32 %v2625, %v2773
      %v2804 = vadd.f32 %v2626, %v2776
      %v2805 = vadd.f32 %v2627, %v2781
      %v2806 = vadd.f32 %v2628, %v2784
      %v2807 = vadd.f32 %v2629, %v2789
      %v2808 = vadd.f32 %v2630, %v2792
      %v2809 = vadd.f32 %v2631, %v2797
      %v2810 = vadd.f32 %v2632, %v2800
      %v2811 = vld [vmem:[%s1886 + $0x2] sm:$0xff]
      %v2812 = vld [vmem:[%s1886 + $0x12] sm:$0xff]
      %v2813 = vld [vmem:[%s1886 + $0x22] sm:$0xff]
      %v2814 = vld [vmem:[%s1886 + $0x32] sm:$0xff]
      %v2815 = vld [vmem:[%s1886 + $0x42] sm:$0xff]
      %v2816 = vld [vmem:[%s1886 + $0x52] sm:$0xff]
      %v2817 = vld [vmem:[%s1886 + $0x62] sm:$0xff]
      %v2818 = vld [vmem:[%s1886 + $0x72] sm:$0xff]
      %v2819 = vpack.c.bf16 %v2811, %v2811
      %v2820 = vpack.c.bf16 %v2812, %v2812
      %v2821 = vpack.c.bf16 %v2813, %v2813
      %v2822 = vpack.c.bf16 %v2814, %v2814
      %v2823 = vpack.c.bf16 %v2815, %v2815
      %v2824 = vpack.c.bf16 %v2816, %v2816
      %v2825 = vpack.c.bf16 %v2817, %v2817
      %v2826 = vpack.c.bf16 %v2818, %v2818
      %s2827 = scalar_lea.vmem %s6, 320
      %v2828 = vld [vmem:[%s2827] sm:$0xf]
      %v2829 = vld [vmem:[%s2827 + $0x4] sm:$0xf]
      %v2830 = vld [vmem:[%s2827 + $0x8] sm:$0xf]
      %v2831 = vld [vmem:[%s2827 + $0xc] sm:$0xf]
      %v2832 = vld [vmem:[%s2827 + $0x10] sm:$0xf]
      %v2833 = vld [vmem:[%s2827 + $0x14] sm:$0xf]
      %v2834 = vld [vmem:[%s2827 + $0x18] sm:$0xf]
      %v2835 = vld [vmem:[%s2827 + $0x1c] sm:$0xf]
      %v2836 = vld [vmem:[%s2827 + $0x20] sm:$0xf]
      %v2837 = vld [vmem:[%s2827 + $0x24] sm:$0xf]
      %v2838 = vld [vmem:[%s2827 + $0x28] sm:$0xf]
      %v2839 = vld [vmem:[%s2827 + $0x2c] sm:$0xf]
      %v2840 = vld [vmem:[%s2827 + $0x30] sm:$0xf]
      %v2841 = vld [vmem:[%s2827 + $0x34] sm:$0xf]
      %v2842 = vld [vmem:[%s2827 + $0x38] sm:$0xf]
      %v2843 = vld [vmem:[%s2827 + $0x3c] sm:$0xf]
      %v2852 = vunpack.c.l.b16 %v2819
      %v2853 = vunpack.c.l.b16 %v2820
      %v2854 = vunpack.c.l.b16 %v2821
      %v2855 = vunpack.c.l.b16 %v2822
      %v2856 = vunpack.c.l.b16 %v2823
      %v2857 = vunpack.c.l.b16 %v2824
      %v2858 = vunpack.c.l.b16 %v2825
      %v2859 = vunpack.c.l.b16 %v2826
      %v2860 = vpack.c.b16 %v2853, %v2852
      %v2861 = vpack.c.b16 %v2855, %v2854
      %v2862 = vpack.c.b16 %v2857, %v2856
      %v2863 = vpack.c.b16 %v2859, %v2858
      %v2884 = vunpack.c.l.b16 %v2828
      %v2885 = vunpack.c.l.b16 %v2829
      %v2886 = vunpack.c.l.b16 %v2830
      %v2887 = vunpack.c.l.b16 %v2831
      %v2888 = vunpack.c.l.b16 %v2832
      %v2889 = vunpack.c.l.b16 %v2833
      %v2890 = vunpack.c.l.b16 %v2834
      %v2891 = vunpack.c.l.b16 %v2835
      %v2892 = vunpack.c.l.b16 %v2836
      %v2893 = vunpack.c.l.b16 %v2837
      %v2894 = vunpack.c.l.b16 %v2838
      %v2895 = vunpack.c.l.b16 %v2839
      %v2896 = vunpack.c.l.b16 %v2840
      %v2897 = vunpack.c.l.b16 %v2841
      %v2898 = vunpack.c.l.b16 %v2842
      %v2899 = vunpack.c.l.b16 %v2843
      %v2900 = vpack.c.b16 %v2885, %v2884
      %v2901 = vpack.c.b16 %v2887, %v2886
      %v2902 = vpack.c.b16 %v2889, %v2888
      %v2903 = vpack.c.b16 %v2891, %v2890
      %v2904 = vpack.c.b16 %v2893, %v2892
      %v2905 = vpack.c.b16 %v2895, %v2894
      %v2906 = vpack.c.b16 %v2897, %v2896
      %v2907 = vpack.c.b16 %v2899, %v2898
      %2916 = vmatprep.subr.bf16.mxu0 0
      %2917 = vmatpush1.bf16.msra.mxu0 %v2900
      %2918 = vmatprep.subr.bf16.mxu0 0
      %2919 = vmatpush1.bf16.msra.mxu0 %v2901
      %2920 = vmatprep.subr.bf16.mxu0 0
      %2921 = vmatpush1.bf16.msra.mxu0 %v2902
      %2922 = vmatprep.subr.bf16.mxu0 0
      %2923 = vmatpush1.bf16.msra.mxu0 %v2903
      %2924 = vmatprep.subr.bf16.mxu0 0
      %2925 = vmatpush1.bf16.msra.mxu0 %v2904
      %2926 = vmatprep.subr.bf16.mxu0 0
      %2927 = vmatpush1.bf16.msra.mxu0 %v2905
      %2928 = vmatprep.subr.bf16.mxu0 0
      %2929 = vmatpush1.bf16.msra.mxu0 %v2906
      %2930 = vmatprep.subr.bf16.mxu0 0
      %2931 = vmatpush1.bf16.msra.mxu0 %v2907
      %2932 = vmatprep.subr.bf16.mxu0 0
      %2933 = vmatpush1.bf16.msra.mxu0 0
      %2934 = vmatprep.subr.bf16.mxu0 0
      %2935 = vmatpush1.bf16.msra.mxu0 0
      %2936 = vmatprep.subr.bf16.mxu0 0
      %2937 = vmatpush1.bf16.msra.mxu0 0
      %2938 = vmatprep.subr.bf16.mxu0 0
      %2939 = vmatpush1.bf16.msra.mxu0 0
      %2940 = vmatprep.subr.bf16.mxu0 0
      %2941 = vmatpush1.bf16.msra.mxu0 0
      %2942 = vmatprep.subr.bf16.mxu0 0
      %2943 = vmatpush1.bf16.msra.mxu0 0
      %2944 = vmatprep.subr.bf16.mxu0 0
      %2945 = vmatpush1.bf16.msra.mxu0 0
      %2946 = vmatprep.subr.bf16.mxu0 0
      %2947 = vmatpush1.bf16.msra.mxu0 0
      %2948 = vmatprep.mubr.bf16.mxu0 0
      %2949 = vmatmul.mubr.bf16.gmra.mrb[0].mxu0 %v2860
      %v2950 = vpop.f32.mrb[0].mxu0
      %v2951 = vadd.f32 0.0, %v2950
      %v2952 = vpop.f32.mrb[0].mxu0
      %v2953 = vpop.f32.mrb[0].mxu0
      %v2954 = vadd.f32 0.0, %v2953
      %v2955 = vpop.f32.mrb[0].mxu0
      %2956 = vmatprep.mubr.bf16.mxu0 0
      %2957 = vmatmul.mubr.bf16.gmra.mrb[0].mxu0 %v2861
      %v2958 = vpop.f32.mrb[0].mxu0
      %v2959 = vadd.f32 0.0, %v2958
      %v2960 = vpop.f32.mrb[0].mxu0
      %v2961 = vpop.f32.mrb[0].mxu0
      %v2962 = vadd.f32 0.0, %v2961
      %v2963 = vpop.f32.mrb[0].mxu0
      %2964 = vmatprep.mubr.bf16.mxu0 0
      %2965 = vmatmul.mubr.bf16.gmra.mrb[0].mxu0 %v2862
      %v2966 = vpop.f32.mrb[0].mxu0
      %v2967 = vadd.f32 0.0, %v2966
      %v2968 = vpop.f32.mrb[0].mxu0
      %v2969 = vpop.f32.mrb[0].mxu0
      %v2970 = vadd.f32 0.0, %v2969
      %v2971 = vpop.f32.mrb[0].mxu0
      %2972 = vmatprep.mubr.bf16.mxu0 0
      %2973 = vmatmul.mubr.bf16.gmra.mrb[0].mxu0 %v2863
      %v2974 = vpop.f32.mrb[0].mxu0
      %v2975 = vadd.f32 0.0, %v2974
      %v2976 = vpop.f32.mrb[0].mxu0
      %v2977 = vpop.f32.mrb[0].mxu0
      %v2978 = vadd.f32 0.0, %v2977
      %v2979 = vpop.f32.mrb[0].mxu0
      %2980 = vdwg.mxu0
      %v2981 = vadd.f32 %v2803, %v2951
      %v2982 = vadd.f32 %v2804, %v2954
      %v2983 = vadd.f32 %v2805, %v2959
      %v2984 = vadd.f32 %v2806, %v2962
      %v2985 = vadd.f32 %v2807, %v2967
      %v2986 = vadd.f32 %v2808, %v2970
      %v2987 = vadd.f32 %v2809, %v2975
      %v2988 = vadd.f32 %v2810, %v2978
      %s2989 = scalar_lea.vmem [#allocation2], 32
      %v2990 = vld [vmem:[%s2989] sm:$0xff]
      %v2991 = vld [vmem:[%s2989 + $0x10] sm:$0xff]
      %v2992 = vld [vmem:[%s2989 + $0x20] sm:$0xff]
      %v2993 = vld [vmem:[%s2989 + $0x30] sm:$0xff]
      %v2994 = vld [vmem:[%s2989 + $0x40] sm:$0xff]
      %v2995 = vld [vmem:[%s2989 + $0x50] sm:$0xff]
      %v2996 = vld [vmem:[%s2989 + $0x60] sm:$0xff]
      %v2997 = vld [vmem:[%s2989 + $0x70] sm:$0xff]
      %v2998 = vpack.c.bf16 %v2990, %v2990
      %v2999 = vpack.c.bf16 %v2991, %v2991
      %v3000 = vpack.c.bf16 %v2992, %v2992
      %v3001 = vpack.c.bf16 %v2993, %v2993
      %v3002 = vpack.c.bf16 %v2994, %v2994
      %v3003 = vpack.c.bf16 %v2995, %v2995
      %v3004 = vpack.c.bf16 %v2996, %v2996
      %v3005 = vpack.c.bf16 %v2997, %v2997
      %s3006 = scalar_lea.vmem %s6, 384
      %v3007 = vld [vmem:[%s3006] sm:$0xf]
      %v3008 = vld [vmem:[%s3006 + $0x4] sm:$0xf]
      %v3009 = vld [vmem:[%s3006 + $0x8] sm:$0xf]
      %v3010 = vld [vmem:[%s3006 + $0xc] sm:$0xf]
      %v3011 = vld [vmem:[%s3006 + $0x10] sm:$0xf]
      %v3012 = vld [vmem:[%s3006 + $0x14] sm:$0xf]
      %v3013 = vld [vmem:[%s3006 + $0x18] sm:$0xf]
      %v3014 = vld [vmem:[%s3006 + $0x1c] sm:$0xf]
      %v3015 = vld [vmem:[%s3006 + $0x20] sm:$0xf]
      %v3016 = vld [vmem:[%s3006 + $0x24] sm:$0xf]
      %v3017 = vld [vmem:[%s3006 + $0x28] sm:$0xf]
      %v3018 = vld [vmem:[%s3006 + $0x2c] sm:$0xf]
      %v3019 = vld [vmem:[%s3006 + $0x30] sm:$0xf]
      %v3020 = vld [vmem:[%s3006 + $0x34] sm:$0xf]
      %v3021 = vld [vmem:[%s3006 + $0x38] sm:$0xf]
      %v3022 = vld [vmem:[%s3006 + $0x3c] sm:$0xf]
      %v3031 = vunpack.c.l.b16 %v2998
      %v3032 = vunpack.c.l.b16 %v2999
      %v3033 = vunpack.c.l.b16 %v3000
      %v3034 = vunpack.c.l.b16 %v3001
      %v3035 = vunpack.c.l.b16 %v3002
      %v3036 = vunpack.c.l.b16 %v3003
      %v3037 = vunpack.c.l.b16 %v3004
      %v3038 = vunpack.c.l.b16 %v3005
      %v3039 = vpack.c.b16 %v3032, %v3031
      %v3040 = vpack.c.b16 %v3034, %v3033
      %v3041 = vpack.c.b16 %v3036, %v3035
      %v3042 = vpack.c.b16 %v3038, %v3037
      %v3063 = vunpack.c.l.b16 %v3007
      %v3064 = vunpack.c.l.b16 %v3008
      %v3065 = vunpack.c.l.b16 %v3009
      %v3066 = vunpack.c.l.b16 %v3010
      %v3067 = vunpack.c.l.b16 %v3011
      %v3068 = vunpack.c.l.b16 %v3012
      %v3069 = vunpack.c.l.b16 %v3013
      %v3070 = vunpack.c.l.b16 %v3014
      %v3071 = vunpack.c.l.b16 %v3015
      %v3072 = vunpack.c.l.b16 %v3016
      %v3073 = vunpack.c.l.b16 %v3017
      %v3074 = vunpack.c.l.b16 %v3018
      %v3075 = vunpack.c.l.b16 %v3019
      %v3076 = vunpack.c.l.b16 %v3020
      %v3077 = vunpack.c.l.b16 %v3021
      %v3078 = vunpack.c.l.b16 %v3022
      %v3079 = vpack.c.b16 %v3064, %v3063
      %v3080 = vpack.c.b16 %v3066, %v3065
      %v3081 = vpack.c.b16 %v3068, %v3067
      %v3082 = vpack.c.b16 %v3070, %v3069
      %v3083 = vpack.c.b16 %v3072, %v3071
      %v3084 = vpack.c.b16 %v3074, %v3073
      %v3085 = vpack.c.b16 %v3076, %v3075
      %v3086 = vpack.c.b16 %v3078, %v3077
      %3095 = vmatprep.subr.bf16.mxu0 0
      %3096 = vmatpush1.bf16.msra.mxu0 %v3079
      %3097 = vmatprep.subr.bf16.mxu0 0
      %3098 = vmatpush1.bf16.msra.mxu0 %v3080
      %3099 = vmatprep.subr.bf16.mxu0 0
      %3100 = vmatpush1.bf16.msra.mxu0 %v3081
      %3101 = vmatprep.subr.bf16.mxu0 0
      %3102 = vmatpush1.bf16.msra.mxu0 %v3082
      %3103 = vmatprep.subr.bf16.mxu0 0
      %3104 = vmatpush1.bf16.msra.mxu0 %v3083
      %3105 = vmatprep.subr.bf16.mxu0 0
      %3106 = vmatpush1.bf16.msra.mxu0 %v3084
      %3107 = vmatprep.subr.bf16.mxu0 0
      %3108 = vmatpush1.bf16.msra.mxu0 %v3085
      %3109 = vmatprep.subr.bf16.mxu0 0
      %3110 = vmatpush1.bf16.msra.mxu0 %v3086
      %3111 = vmatprep.subr.bf16.mxu0 0
      %3112 = vmatpush1.bf16.msra.mxu0 0
      %3113 = vmatprep.subr.bf16.mxu0 0
      %3114 = vmatpush1.bf16.msra.mxu0 0
      %3115 = vmatprep.subr.bf16.mxu0 0
      %3116 = vmatpush1.bf16.msra.mxu0 0
      %3117 = vmatprep.subr.bf16.mxu0 0
      %3118 = vmatpush1.bf16.msra.mxu0 0
      %3119 = vmatprep.subr.bf16.mxu0 0
      %3120 = vmatpush1.bf16.msra.mxu0 0
      %3121 = vmatprep.subr.bf16.mxu0 0
      %3122 = vmatpush1.bf16.msra.mxu0 0
      %3123 = vmatprep.subr.bf16.mxu0 0
      %3124 = vmatpush1.bf16.msra.mxu0 0
      %3125 = vmatprep.subr.bf16.mxu0 0
      %3126 = vmatpush1.bf16.msra.mxu0 0
      %3127 = vmatprep.mubr.bf16.mxu0 0
      %3128 = vmatmul.mubr.bf16.gmra.mrb[0].mxu0 %v3039
      %v3129 = vpop.f32.mrb[0].mxu0
      %v3130 = vadd.f32 0.0, %v3129
      %v3131 = vpop.f32.mrb[0].mxu0
      %v3132 = vpop.f32.mrb[0].mxu0
      %v3133 = vadd.f32 0.0, %v3132
      %v3134 = vpop.f32.mrb[0].mxu0
      %3135 = vmatprep.mubr.bf16.mxu0 0
      %3136 = vmatmul.mubr.bf16.gmra.mrb[0].mxu0 %v3040
      %v3137 = vpop.f32.mrb[0].mxu0
      %v3138 = vadd.f32 0.0, %v3137
      %v3139 = vpop.f32.mrb[0].mxu0
      %v3140 = vpop.f32.mrb[0].mxu0
      %v3141 = vadd.f32 0.0, %v3140
      %v3142 = vpop.f32.mrb[0].mxu0
      %3143 = vmatprep.mubr.bf16.mxu0 0
      %3144 = vmatmul.mubr.bf16.gmra.mrb[0].mxu0 %v3041
      %v3145 = vpop.f32.mrb[0].mxu0
      %v3146 = vadd.f32 0.0, %v3145
      %v3147 = vpop.f32.mrb[0].mxu0
      %v3148 = vpop.f32.mrb[0].mxu0
      %v3149 = vadd.f32 0.0, %v3148
      %v3150 = vpop.f32.mrb[0].mxu0
      %3151 = vmatprep.mubr.bf16.mxu0 0
      %3152 = vmatmul.mubr.bf16.gmra.mrb[0].mxu0 %v3042
      %v3153 = vpop.f32.mrb[0].mxu0
      %v3154 = vadd.f32 0.0, %v3153
      %v3155 = vpop.f32.mrb[0].mxu0
      %v3156 = vpop.f32.mrb[0].mxu0
      %v3157 = vadd.f32 0.0, %v3156
      %v3158 = vpop.f32.mrb[0].mxu0
      %3159 = vdwg.mxu0
      %v3160 = vadd.f32 %v2981, %v3130
      %v3161 = vadd.f32 %v2982, %v3133
      %v3162 = vadd.f32 %v2983, %v3138
      %v3163 = vadd.f32 %v2984, %v3141
      %v3164 = vadd.f32 %v2985, %v3146
      %v3165 = vadd.f32 %v2986, %v3149
      %v3166 = vadd.f32 %v2987, %v3154
      %v3167 = vadd.f32 %v2988, %v3157
      %v3168 = vld [vmem:[%s2989 + $0x1] sm:$0xff]
      %v3169 = vld [vmem:[%s2989 + $0x11] sm:$0xff]
      %v3170 = vld [vmem:[%s2989 + $0x21] sm:$0xff]
      %v3171 = vld [vmem:[%s2989 + $0x31] sm:$0xff]
      %v3172 = vld [vmem:[%s2989 + $0x41] sm:$0xff]
      %v3173 = vld [vmem:[%s2989 + $0x51] sm:$0xff]
      %v3174 = vld [vmem:[%s2989 + $0x61] sm:$0xff]
      %v3175 = vld [vmem:[%s2989 + $0x71] sm:$0xff]
      %v3176 = vpack.c.bf16 %v3168, %v3168
      %v3177 = vpack.c.bf16 %v3169, %v3169
      %v3178 = vpack.c.bf16 %v3170, %v3170
      %v3179 = vpack.c.bf16 %v3171, %v3171
      %v3180 = vpack.c.bf16 %v3172, %v3172
      %v3181 = vpack.c.bf16 %v3173, %v3173
      %v3182 = vpack.c.bf16 %v3174, %v3174
      %v3183 = vpack.c.bf16 %v3175, %v3175
      %s3184 = scalar_lea.vmem %s6, 448
      %v3185 = vld [vmem:[%s3184] sm:$0xf]
      %v3186 = vld [vmem:[%s3184 + $0x4] sm:$0xf]
      %v3187 = vld [vmem:[%s3184 + $0x8] sm:$0xf]
      %v3188 = vld [vmem:[%s3184 + $0xc] sm:$0xf]
      %v3189 = vld [vmem:[%s3184 + $0x10] sm:$0xf]
      %v3190 = vld [vmem:[%s3184 + $0x14] sm:$0xf]
      %v3191 = vld [vmem:[%s3184 + $0x18] sm:$0xf]
      %v3192 = vld [vmem:[%s3184 + $0x1c] sm:$0xf]
      %v3193 = vld [vmem:[%s3184 + $0x20] sm:$0xf]
      %v3194 = vld [vmem:[%s3184 + $0x24] sm:$0xf]
      %v3195 = vld [vmem:[%s3184 + $0x28] sm:$0xf]
      %v3196 = vld [vmem:[%s3184 + $0x2c] sm:$0xf]
      %v3197 = vld [vmem:[%s3184 + $0x30] sm:$0xf]
      %v3198 = vld [vmem:[%s3184 + $0x34] sm:$0xf]
      %v3199 = vld [vmem:[%s3184 + $0x38] sm:$0xf]
      %v3200 = vld [vmem:[%s3184 + $0x3c] sm:$0xf]
      %v3209 = vunpack.c.l.b16 %v3176
      %v3210 = vunpack.c.l.b16 %v3177
      %v3211 = vunpack.c.l.b16 %v3178
      %v3212 = vunpack.c.l.b16 %v3179
      %v3213 = vunpack.c.l.b16 %v3180
      %v3214 = vunpack.c.l.b16 %v3181
      %v3215 = vunpack.c.l.b16 %v3182
      %v3216 = vunpack.c.l.b16 %v3183
      %v3217 = vpack.c.b16 %v3210, %v3209
      %v3218 = vpack.c.b16 %v3212, %v3211
      %v3219 = vpack.c.b16 %v3214, %v3213
      %v3220 = vpack.c.b16 %v3216, %v3215
      %v3241 = vunpack.c.l.b16 %v3185
      %v3242 = vunpack.c.l.b16 %v3186
      %v3243 = vunpack.c.l.b16 %v3187
      %v3244 = vunpack.c.l.b16 %v3188
      %v3245 = vunpack.c.l.b16 %v3189
      %v3246 = vunpack.c.l.b16 %v3190
      %v3247 = vunpack.c.l.b16 %v3191
      %v3248 = vunpack.c.l.b16 %v3192
      %v3249 = vunpack.c.l.b16 %v3193
      %v3250 = vunpack.c.l.b16 %v3194
      %v3251 = vunpack.c.l.b16 %v3195
      %v3252 = vunpack.c.l.b16 %v3196
      %v3253 = vunpack.c.l.b16 %v3197
      %v3254 = vunpack.c.l.b16 %v3198
      %v3255 = vunpack.c.l.b16 %v3199
      %v3256 = vunpack.c.l.b16 %v3200
      %v3257 = vpack.c.b16 %v3242, %v3241
      %v3258 = vpack.c.b16 %v3244, %v3243
      %v3259 = vpack.c.b16 %v3246, %v3245
      %v3260 = vpack.c.b16 %v3248, %v3247
      %v3261 = vpack.c.b16 %v3250, %v3249
      %v3262 = vpack.c.b16 %v3252, %v3251
      %v3263 = vpack.c.b16 %v3254, %v3253
      %v3264 = vpack.c.b16 %v3256, %v3255
      %3273 = vmatprep.subr.bf16.mxu0 0
      %3274 = vmatpush1.bf16.msra.mxu0 %v3257
      %3275 = vmatprep.subr.bf16.mxu0 0
      %3276 = vmatpush1.bf16.msra.mxu0 %v3258
      %3277 = vmatprep.subr.bf16.mxu0 0
      %3278 = vmatpush1.bf16.msra.mxu0 %v3259
      %3279 = vmatprep.subr.bf16.mxu0 0
      %3280 = vmatpush1.bf16.msra.mxu0 %v3260
      %3281 = vmatprep.subr.bf16.mxu0 0
      %3282 = vmatpush1.bf16.msra.mxu0 %v3261
      %3283 = vmatprep.subr.bf16.mxu0 0
      %3284 = vmatpush1.bf16.msra.mxu0 %v3262
      %3285 = vmatprep.subr.bf16.mxu0 0
      %3286 = vmatpush1.bf16.msra.mxu0 %v3263
      %3287 = vmatprep.subr.bf16.mxu0 0
      %3288 = vmatpush1.bf16.msra.mxu0 %v3264
      %3289 = vmatprep.subr.bf16.mxu0 0
      %3290 = vmatpush1.bf16.msra.mxu0 0
      %3291 = vmatprep.subr.bf16.mxu0 0
      %3292 = vmatpush1.bf16.msra.mxu0 0
      %3293 = vmatprep.subr.bf16.mxu0 0
      %3294 = vmatpush1.bf16.msra.mxu0 0
      %3295 = vmatprep.subr.bf16.mxu0 0
      %3296 = vmatpush1.bf16.msra.mxu0 0
      %3297 = vmatprep.subr.bf16.mxu0 0
      %3298 = vmatpush1.bf16.msra.mxu0 0
      %3299 = vmatprep.subr.bf16.mxu0 0
      %3300 = vmatpush1.bf16.msra.mxu0 0
      %3301 = vmatprep.subr.bf16.mxu0 0
      %3302 = vmatpush1.bf16.msra.mxu0 0
      %3303 = vmatprep.subr.bf16.mxu0 0
      %3304 = vmatpush1.bf16.msra.mxu0 0
      %3305 = vmatprep.mubr.bf16.mxu0 0
      %3306 = vmatmul.mubr.bf16.gmra.mrb[0].mxu0 %v3217
      %v3307 = vpop.f32.mrb[0].mxu0
      %v3308 = vadd.f32 0.0, %v3307
      %v3309 = vpop.f32.mrb[0].mxu0
      %v3310 = vpop.f32.mrb[0].mxu0
      %v3311 = vadd.f32 0.0, %v3310
      %v3312 = vpop.f32.mrb[0].mxu0
      %3313 = vmatprep.mubr.bf16.mxu0 0
      %3314 = vmatmul.mubr.bf16.gmra.mrb[0].mxu0 %v3218
      %v3315 = vpop.f32.mrb[0].mxu0
      %v3316 = vadd.f32 0.0, %v3315
      %v3317 = vpop.f32.mrb[0].mxu0
      %v3318 = vpop.f32.mrb[0].mxu0
      %v3319 = vadd.f32 0.0, %v3318
      %v3320 = vpop.f32.mrb[0].mxu0
      %3321 = vmatprep.mubr.bf16.mxu0 0
      %3322 = vmatmul.mubr.bf16.gmra.mrb[0].mxu0 %v3219
      %v3323 = vpop.f32.mrb[0].mxu0
      %v3324 = vadd.f32 0.0, %v3323
      %v3325 = vpop.f32.mrb[0].mxu0
      %v3326 = vpop.f32.mrb[0].mxu0
      %v3327 = vadd.f32 0.0, %v3326
      %v3328 = vpop.f32.mrb[0].mxu0
      %3329 = vmatprep.mubr.bf16.mxu0 0
      %3330 = vmatmul.mubr.bf16.gmra.mrb[0].mxu0 %v3220
      %v3331 = vpop.f32.mrb[0].mxu0
      %v3332 = vadd.f32 0.0, %v3331
      %v3333 = vpop.f32.mrb[0].mxu0
      %v3334 = vpop.f32.mrb[0].mxu0
      %v3335 = vadd.f32 0.0, %v3334
      %v3336 = vpop.f32.mrb[0].mxu0
      %3337 = vdwg.mxu0
      %v3338 = vadd.f32 %v3160, %v3308
      %v3339 = vadd.f32 %v3161, %v3311
      %v3340 = vadd.f32 %v3162, %v3316
      %v3341 = vadd.f32 %v3163, %v3319
      %v3342 = vadd.f32 %v3164, %v3324
      %v3343 = vadd.f32 %v3165, %v3327
      %v3344 = vadd.f32 %v3166, %v3332
      %v3345 = vadd.f32 %v3167, %v3335
      %v3346 = vld [vmem:[%s2989 + $0x2] sm:$0xff]
      %v3347 = vld [vmem:[%s2989 + $0x12] sm:$0xff]
      %v3348 = vld [vmem:[%s2989 + $0x22] sm:$0xff]
      %v3349 = vld [vmem:[%s2989 + $0x32] sm:$0xff]
      %v3350 = vld [vmem:[%s2989 + $0x42] sm:$0xff]
      %v3351 = vld [vmem:[%s2989 + $0x52] sm:$0xff]
      %v3352 = vld [vmem:[%s2989 + $0x62] sm:$0xff]
      %v3353 = vld [vmem:[%s2989 + $0x72] sm:$0xff]
      %v3354 = vpack.c.bf16 %v3346, %v3346
      %v3355 = vpack.c.bf16 %v3347, %v3347
      %v3356 = vpack.c.bf16 %v3348, %v3348
      %v3357 = vpack.c.bf16 %v3349, %v3349
      %v3358 = vpack.c.bf16 %v3350, %v3350
      %v3359 = vpack.c.bf16 %v3351, %v3351
      %v3360 = vpack.c.bf16 %v3352, %v3352
      %v3361 = vpack.c.bf16 %v3353, %v3353
      %s3362 = scalar_lea.vmem %s6, 512
      %v3363 = vld [vmem:[%s3362] sm:$0xf]
      %v3364 = vld [vmem:[%s3362 + $0x4] sm:$0xf]
      %v3365 = vld [vmem:[%s3362 + $0x8] sm:$0xf]
      %v3366 = vld [vmem:[%s3362 + $0xc] sm:$0xf]
      %v3367 = vld [vmem:[%s3362 + $0x10] sm:$0xf]
      %v3368 = vld [vmem:[%s3362 + $0x14] sm:$0xf]
      %v3369 = vld [vmem:[%s3362 + $0x18] sm:$0xf]
      %v3370 = vld [vmem:[%s3362 + $0x1c] sm:$0xf]
      %v3371 = vld [vmem:[%s3362 + $0x20] sm:$0xf]
      %v3372 = vld [vmem:[%s3362 + $0x24] sm:$0xf]
      %v3373 = vld [vmem:[%s3362 + $0x28] sm:$0xf]
      %v3374 = vld [vmem:[%s3362 + $0x2c] sm:$0xf]
      %v3375 = vld [vmem:[%s3362 + $0x30] sm:$0xf]
      %v3376 = vld [vmem:[%s3362 + $0x34] sm:$0xf]
      %v3377 = vld [vmem:[%s3362 + $0x38] sm:$0xf]
      %v3378 = vld [vmem:[%s3362 + $0x3c] sm:$0xf]
      %v3387 = vunpack.c.l.b16 %v3354
      %v3388 = vunpack.c.l.b16 %v3355
      %v3389 = vunpack.c.l.b16 %v3356
      %v3390 = vunpack.c.l.b16 %v3357
      %v3391 = vunpack.c.l.b16 %v3358
      %v3392 = vunpack.c.l.b16 %v3359
      %v3393 = vunpack.c.l.b16 %v3360
      %v3394 = vunpack.c.l.b16 %v3361
      %v3395 = vpack.c.b16 %v3388, %v3387
      %v3396 = vpack.c.b16 %v3390, %v3389
      %v3397 = vpack.c.b16 %v3392, %v3391
      %v3398 = vpack.c.b16 %v3394, %v3393
      %v3419 = vunpack.c.l.b16 %v3363
      %v3420 = vunpack.c.l.b16 %v3364
      %v3421 = vunpack.c.l.b16 %v3365
      %v3422 = vunpack.c.l.b16 %v3366
      %v3423 = vunpack.c.l.b16 %v3367
      %v3424 = vunpack.c.l.b16 %v3368
      %v3425 = vunpack.c.l.b16 %v3369
      %v3426 = vunpack.c.l.b16 %v3370
      %v3427 = vunpack.c.l.b16 %v3371
      %v3428 = vunpack.c.l.b16 %v3372
      %v3429 = vunpack.c.l.b16 %v3373
      %v3430 = vunpack.c.l.b16 %v3374
      %v3431 = vunpack.c.l.b16 %v3375
      %v3432 = vunpack.c.l.b16 %v3376
      %v3433 = vunpack.c.l.b16 %v3377
      %v3434 = vunpack.c.l.b16 %v3378
      %v3435 = vpack.c.b16 %v3420, %v3419
      %v3436 = vpack.c.b16 %v3422, %v3421
      %v3437 = vpack.c.b16 %v3424, %v3423
      %v3438 = vpack.c.b16 %v3426, %v3425
      %v3439 = vpack.c.b16 %v3428, %v3427
      %v3440 = vpack.c.b16 %v3430, %v3429
      %v3441 = vpack.c.b16 %v3432, %v3431
      %v3442 = vpack.c.b16 %v3434, %v3433
      %3451 = vmatprep.subr.bf16.mxu0 0
      %3452 = vmatpush1.bf16.msra.mxu0 %v3435
      %3453 = vmatprep.subr.bf16.mxu0 0
      %3454 = vmatpush1.bf16.msra.mxu0 %v3436
      %3455 = vmatprep.subr.bf16.mxu0 0
      %3456 = vmatpush1.bf16.msra.mxu0 %v3437
      %3457 = vmatprep.subr.bf16.mxu0 0
      %3458 = vmatpush1.bf16.msra.mxu0 %v3438
      %3459 = vmatprep.subr.bf16.mxu0 0
      %3460 = vmatpush1.bf16.msra.mxu0 %v3439
      %3461 = vmatprep.subr.bf16.mxu0 0
      %3462 = vmatpush1.bf16.msra.mxu0 %v3440
      %3463 = vmatprep.subr.bf16.mxu0 0
      %3464 = vmatpush1.bf16.msra.mxu0 %v3441
      %3465 = vmatprep.subr.bf16.mxu0 0
      %3466 = vmatpush1.bf16.msra.mxu0 %v3442
      %3467 = vmatprep.subr.bf16.mxu0 0
      %3468 = vmatpush1.bf16.msra.mxu0 0
      %3469 = vmatprep.subr.bf16.mxu0 0
      %3470 = vmatpush1.bf16.msra.mxu0 0
      %3471 = vmatprep.subr.bf16.mxu0 0
      %3472 = vmatpush1.bf16.msra.mxu0 0
      %3473 = vmatprep.subr.bf16.mxu0 0
      %3474 = vmatpush1.bf16.msra.mxu0 0
      %3475 = vmatprep.subr.bf16.mxu0 0
      %3476 = vmatpush1.bf16.msra.mxu0 0
      %3477 = vmatprep.subr.bf16.mxu0 0
      %3478 = vmatpush1.bf16.msra.mxu0 0
      %3479 = vmatprep.subr.bf16.mxu0 0
      %3480 = vmatpush1.bf16.msra.mxu0 0
      %3481 = vmatprep.subr.bf16.mxu0 0
      %3482 = vmatpush1.bf16.msra.mxu0 0
      %3483 = vmatprep.mubr.bf16.mxu0 0
      %3484 = vmatmul.mubr.bf16.gmra.mrb[0].mxu0 %v3395
      %v3485 = vpop.f32.mrb[0].mxu0
      %v3486 = vadd.f32 0.0, %v3485
      %v3487 = vpop.f32.mrb[0].mxu0
      %v3488 = vpop.f32.mrb[0].mxu0
      %v3489 = vadd.f32 0.0, %v3488
      %v3490 = vpop.f32.mrb[0].mxu0
      %3491 = vmatprep.mubr.bf16.mxu0 0
      %3492 = vmatmul.mubr.bf16.gmra.mrb[0].mxu0 %v3396
      %v3493 = vpop.f32.mrb[0].mxu0
      %v3494 = vadd.f32 0.0, %v3493
      %v3495 = vpop.f32.mrb[0].mxu0
      %v3496 = vpop.f32.mrb[0].mxu0
      %v3497 = vadd.f32 0.0, %v3496
      %v3498 = vpop.f32.mrb[0].mxu0
      %3499 = vmatprep.mubr.bf16.mxu0 0
      %3500 = vmatmul.mubr.bf16.gmra.mrb[0].mxu0 %v3397
      %v3501 = vpop.f32.mrb[0].mxu0
      %v3502 = vadd.f32 0.0, %v3501
      %v3503 = vpop.f32.mrb[0].mxu0
      %v3504 = vpop.f32.mrb[0].mxu0
      %v3505 = vadd.f32 0.0, %v3504
      %v3506 = vpop.f32.mrb[0].mxu0
      %3507 = vmatprep.mubr.bf16.mxu0 0
      %3508 = vmatmul.mubr.bf16.gmra.mrb[0].mxu0 %v3398
      %v3509 = vpop.f32.mrb[0].mxu0
      %v3510 = vadd.f32 0.0, %v3509
      %v3511 = vpop.f32.mrb[0].mxu0
      %v3512 = vpop.f32.mrb[0].mxu0
      %v3513 = vadd.f32 0.0, %v3512
      %v3514 = vpop.f32.mrb[0].mxu0
      %3515 = vdwg.mxu0
      %v3516 = vadd.f32 %v3338, %v3486
      %v3517 = vadd.f32 %v3339, %v3489
      %v3518 = vadd.f32 %v3340, %v3494
      %v3519 = vadd.f32 %v3341, %v3497
      %v3520 = vadd.f32 %v3342, %v3502
      %v3521 = vadd.f32 %v3343, %v3505
      %v3522 = vadd.f32 %v3344, %v3510
      %v3523 = vadd.f32 %v3345, %v3513
      %v3524 = vld [vmem:[%s7] sm:$0x1]
      %v3526 = vlaneseq
      %v3527 = vshrl.u32 %v3526, 7
      %v3528 = vsub.s32 0, %v3527
      %v3529 = vrot.slane %v3524, %v3528
      %v3531 = vadd.f32 %v3516, %v3529
      %v3532 = vadd.f32 %v3517, %v3529
      %v3533 = vadd.f32 %v3518, %v3529
      %v3534 = vadd.f32 %v3519, %v3529
      %v3535 = vadd.f32 %v3520, %v3529
      %v3536 = vadd.f32 %v3521, %v3529
      %v3537 = vadd.f32 %v3522, %v3529
      %v3538 = vadd.f32 %v3523, %v3529
      %v3539 = vmax.f32 %v3531, 0.0
      %v3540 = vmax.f32 %v3532, 0.0
      %v3541 = vmax.f32 %v3533, 0.0
      %v3542 = vmax.f32 %v3534, 0.0
      %v3543 = vmax.f32 %v3535, 0.0
      %v3544 = vmax.f32 %v3536, 0.0
      %v3545 = vmax.f32 %v3537, 0.0
      %v3546 = vmax.f32 %v3538, 0.0
      %s3547 = scalar_lea.vmem [#allocation3], 16
      %3548 = vst [vmem:[%s3547 + $0x1] sm:$0xff] %v3539
      %3549 = vst [vmem:[%s3547 + $0x11] sm:$0xff] %v3540
      %3550 = vst [vmem:[%s3547 + $0x21] sm:$0xff] %v3541
      %3551 = vst [vmem:[%s3547 + $0x31] sm:$0xff] %v3542
      %3552 = vst [vmem:[%s3547 + $0x41] sm:$0xff] %v3543
      %3553 = vst [vmem:[%s3547 + $0x51] sm:$0xff] %v3544
      %3554 = vst [vmem:[%s3547 + $0x61] sm:$0xff] %v3545
      %3555 = vst [vmem:[%s3547 + $0x71] sm:$0xff] %v3546
      %3556 = vst [vmem:[#allocation3 + $0x1] sm:$0xff] %v3540
      %s3557 = scalar_lea.vmem [#allocation3], 144
      %3558 = vst [vmem:[%s3557 + $0x1] sm:$0xff] %v3545
      %v3559 = vld [vmem:[#allocation3 + $0x2] sm:$0x1]
      %v3560 = vld [vmem:[#allocation3 + $0x12] sm:$0x1]
      %v3561 = vld [vmem:[#allocation3 + $0x22] sm:$0x1]
      %v3562 = vld [vmem:[#allocation3 + $0x32] sm:$0x1]
      %v3563 = vld [vmem:[#allocation3 + $0x42] sm:$0x1]
      %v3564 = vld [vmem:[#allocation3 + $0x52] sm:$0x1]
      %v3565 = vld [vmem:[#allocation3 + $0x62] sm:$0x1]
      %v3566 = vld [vmem:[#allocation3 + $0x72] sm:$0x1]
      %v3567 = vld [vmem:[#allocation3 + $0x82] sm:$0x1]
      %v3568 = vld [vmem:[#allocation3 + $0x92] sm:$0x1]
      %3569 = vst [vmem:[#allocation3] sm:$0x1] %v3559
      %3570 = vst [vmem:[#allocation3 + $0x10] sm:$0x1] %v3560
      %3571 = vst [vmem:[#allocation3 + $0x20] sm:$0x1] %v3561
      %3572 = vst [vmem:[#allocation3 + $0x30] sm:$0x1] %v3562
      %3573 = vst [vmem:[#allocation3 + $0x40] sm:$0x1] %v3563
      %3574 = vst [vmem:[#allocation3 + $0x50] sm:$0x1] %v3564
      %3575 = vst [vmem:[#allocation3 + $0x60] sm:$0x1] %v3565
      %3576 = vst [vmem:[#allocation3 + $0x70] sm:$0x1] %v3566
      %3577 = vst [vmem:[#allocation3 + $0x80] sm:$0x1] %v3567
      %3578 = vst [vmem:[#allocation3 + $0x90] sm:$0x1] %v3568
      %v3579 = vld [vmem:[#allocation3 + $0x7] sm:$0x1]
      %v3580 = vld [vmem:[#allocation3 + $0x17] sm:$0x1]
      %v3581 = vld [vmem:[#allocation3 + $0x27] sm:$0x1]
      %v3582 = vld [vmem:[#allocation3 + $0x37] sm:$0x1]
      %v3583 = vld [vmem:[#allocation3 + $0x47] sm:$0x1]
      %v3584 = vld [vmem:[#allocation3 + $0x57] sm:$0x1]
      %v3585 = vld [vmem:[#allocation3 + $0x67] sm:$0x1]
      %v3586 = vld [vmem:[#allocation3 + $0x77] sm:$0x1]
      %v3587 = vld [vmem:[#allocation3 + $0x87] sm:$0x1]
      %v3588 = vld [vmem:[#allocation3 + $0x97] sm:$0x1]
      %3589 = vst [vmem:[#allocation3 + $0x9] sm:$0x1] %v3579
      %3590 = vst [vmem:[#allocation3 + $0x19] sm:$0x1] %v3580
      %3591 = vst [vmem:[#allocation3 + $0x29] sm:$0x1] %v3581
      %3592 = vst [vmem:[#allocation3 + $0x39] sm:$0x1] %v3582
      %3593 = vst [vmem:[#allocation3 + $0x49] sm:$0x1] %v3583
      %3594 = vst [vmem:[#allocation3 + $0x59] sm:$0x1] %v3584
      %3595 = vst [vmem:[#allocation3 + $0x69] sm:$0x1] %v3585
      %3596 = vst [vmem:[#allocation3 + $0x79] sm:$0x1] %v3586
      %3597 = vst [vmem:[#allocation3 + $0x89] sm:$0x1] %v3587
      %3598 = vst [vmem:[#allocation3 + $0x99] sm:$0x1] %v3588
      %v3599 = vld [vmem:[#allocation3] sm:$0xff]
      %v3600 = vld [vmem:[#allocation3 + $0x10] sm:$0xff]
      %v3601 = vld [vmem:[#allocation3 + $0x20] sm:$0xff]
      %v3602 = vld [vmem:[#allocation3 + $0x30] sm:$0xff]
      %v3603 = vld [vmem:[#allocation3 + $0x40] sm:$0xff]
      %v3604 = vld [vmem:[#allocation3 + $0x50] sm:$0xff]
      %v3605 = vld [vmem:[#allocation3 + $0x60] sm:$0xff]
      %v3606 = vld [vmem:[#allocation3 + $0x70] sm:$0xff]
      %v3607 = vpack.c.bf16 %v3599, %v3599
      %v3608 = vpack.c.bf16 %v3600, %v3600
      %v3609 = vpack.c.bf16 %v3601, %v3601
      %v3610 = vpack.c.bf16 %v3602, %v3602
      %v3611 = vpack.c.bf16 %v3603, %v3603
      %v3612 = vpack.c.bf16 %v3604, %v3604
      %v3613 = vpack.c.bf16 %v3605, %v3605
      %v3614 = vpack.c.bf16 %v3606, %v3606
      %v3615 = vld [vmem:[%s8] sm:$0xf]
      %v3616 = vld [vmem:[%s8 + $0x4] sm:$0xf]
      %v3617 = vld [vmem:[%s8 + $0x8] sm:$0xf]
      %v3618 = vld [vmem:[%s8 + $0xc] sm:$0xf]
      %v3619 = vld [vmem:[%s8 + $0x10] sm:$0xf]
      %v3620 = vld [vmem:[%s8 + $0x14] sm:$0xf]
      %v3621 = vld [vmem:[%s8 + $0x18] sm:$0xf]
      %v3622 = vld [vmem:[%s8 + $0x1c] sm:$0xf]
      %v3623 = vld [vmem:[%s8 + $0x20] sm:$0xf]
      %v3624 = vld [vmem:[%s8 + $0x24] sm:$0xf]
      %v3625 = vld [vmem:[%s8 + $0x28] sm:$0xf]
      %v3626 = vld [vmem:[%s8 + $0x2c] sm:$0xf]
      %v3627 = vld [vmem:[%s8 + $0x30] sm:$0xf]
      %v3628 = vld [vmem:[%s8 + $0x34] sm:$0xf]
      %v3629 = vld [vmem:[%s8 + $0x38] sm:$0xf]
      %v3630 = vld [vmem:[%s8 + $0x3c] sm:$0xf]
      %v3631 = vld [vmem:[#allocation3 + $0x1] sm:$0xff]
      %v3632 = vld [vmem:[#allocation3 + $0x11] sm:$0xff]
      %v3633 = vld [vmem:[#allocation3 + $0x21] sm:$0xff]
      %v3634 = vld [vmem:[#allocation3 + $0x31] sm:$0xff]
      %v3635 = vld [vmem:[#allocation3 + $0x41] sm:$0xff]
      %v3636 = vld [vmem:[#allocation3 + $0x51] sm:$0xff]
      %v3637 = vld [vmem:[#allocation3 + $0x61] sm:$0xff]
      %v3638 = vld [vmem:[#allocation3 + $0x71] sm:$0xff]
      %v3639 = vpack.c.bf16 %v3631, %v3631
      %v3640 = vpack.c.bf16 %v3632, %v3632
      %v3641 = vpack.c.bf16 %v3633, %v3633
      %v3642 = vpack.c.bf16 %v3634, %v3634
      %v3643 = vpack.c.bf16 %v3635, %v3635
      %v3644 = vpack.c.bf16 %v3636, %v3636
      %v3645 = vpack.c.bf16 %v3637, %v3637
      %v3646 = vpack.c.bf16 %v3638, %v3638
      %s3647 = scalar_lea.vmem %s8, 64
      %v3648 = vld [vmem:[%s3647] sm:$0xf]
      %v3649 = vld [vmem:[%s3647 + $0x4] sm:$0xf]
      %v3650 = vld [vmem:[%s3647 + $0x8] sm:$0xf]
      %v3651 = vld [vmem:[%s3647 + $0xc] sm:$0xf]
      %v3652 = vld [vmem:[%s3647 + $0x10] sm:$0xf]
      %v3653 = vld [vmem:[%s3647 + $0x14] sm:$0xf]
      %v3654 = vld [vmem:[%s3647 + $0x18] sm:$0xf]
      %v3655 = vld [vmem:[%s3647 + $0x1c] sm:$0xf]
      %v3656 = vld [vmem:[%s3647 + $0x20] sm:$0xf]
      %v3657 = vld [vmem:[%s3647 + $0x24] sm:$0xf]
      %v3658 = vld [vmem:[%s3647 + $0x28] sm:$0xf]
      %v3659 = vld [vmem:[%s3647 + $0x2c] sm:$0xf]
      %v3660 = vld [vmem:[%s3647 + $0x30] sm:$0xf]
      %v3661 = vld [vmem:[%s3647 + $0x34] sm:$0xf]
      %v3662 = vld [vmem:[%s3647 + $0x38] sm:$0xf]
      %v3663 = vld [vmem:[%s3647 + $0x3c] sm:$0xf]
      %v3672 = vunpack.c.l.b16 %v3639
      %v3673 = vunpack.c.l.b16 %v3640
      %v3674 = vunpack.c.l.b16 %v3641
      %v3675 = vunpack.c.l.b16 %v3642
      %v3676 = vunpack.c.l.b16 %v3643
      %v3677 = vunpack.c.l.b16 %v3644
      %v3678 = vunpack.c.l.b16 %v3645
      %v3679 = vunpack.c.l.b16 %v3646
      %v3680 = vpack.c.b16 %v3673, %v3672
      %v3681 = vpack.c.b16 %v3675, %v3674
      %v3682 = vpack.c.b16 %v3677, %v3676
      %v3683 = vpack.c.b16 %v3679, %v3678
      %v3704 = vunpack.c.l.b16 %v3648
      %v3705 = vunpack.c.l.b16 %v3649
      %v3706 = vunpack.c.l.b16 %v3650
      %v3707 = vunpack.c.l.b16 %v3651
      %v3708 = vunpack.c.l.b16 %v3652
      %v3709 = vunpack.c.l.b16 %v3653
      %v3710 = vunpack.c.l.b16 %v3654
      %v3711 = vunpack.c.l.b16 %v3655
      %v3712 = vunpack.c.l.b16 %v3656
      %v3713 = vunpack.c.l.b16 %v3657
      %v3714 = vunpack.c.l.b16 %v3658
      %v3715 = vunpack.c.l.b16 %v3659
      %v3716 = vunpack.c.l.b16 %v3660
      %v3717 = vunpack.c.l.b16 %v3661
      %v3718 = vunpack.c.l.b16 %v3662
      %v3719 = vunpack.c.l.b16 %v3663
      %v3720 = vpack.c.b16 %v3705, %v3704
      %v3721 = vpack.c.b16 %v3707, %v3706
      %v3722 = vpack.c.b16 %v3709, %v3708
      %v3723 = vpack.c.b16 %v3711, %v3710
      %v3724 = vpack.c.b16 %v3713, %v3712
      %v3725 = vpack.c.b16 %v3715, %v3714
      %v3726 = vpack.c.b16 %v3717, %v3716
      %v3727 = vpack.c.b16 %v3719, %v3718
      %3736 = vmatprep.subr.bf16.mxu0 0
      %3737 = vmatpush1.bf16.msra.mxu0 %v3720
      %3738 = vmatprep.subr.bf16.mxu0 0
      %3739 = vmatpush1.bf16.msra.mxu0 %v3721
      %3740 = vmatprep.subr.bf16.mxu0 0
      %3741 = vmatpush1.bf16.msra.mxu0 %v3722
      %3742 = vmatprep.subr.bf16.mxu0 0
      %3743 = vmatpush1.bf16.msra.mxu0 %v3723
      %3744 = vmatprep.subr.bf16.mxu0 0
      %3745 = vmatpush1.bf16.msra.mxu0 %v3724
      %3746 = vmatprep.subr.bf16.mxu0 0
      %3747 = vmatpush1.bf16.msra.mxu0 %v3725
      %3748 = vmatprep.subr.bf16.mxu0 0
      %3749 = vmatpush1.bf16.msra.mxu0 %v3726
      %3750 = vmatprep.subr.bf16.mxu0 0
      %3751 = vmatpush1.bf16.msra.mxu0 %v3727
      %3752 = vmatprep.subr.bf16.mxu0 0
      %3753 = vmatpush1.bf16.msra.mxu0 0
      %3754 = vmatprep.subr.bf16.mxu0 0
      %3755 = vmatpush1.bf16.msra.mxu0 0
      %3756 = vmatprep.subr.bf16.mxu0 0
      %3757 = vmatpush1.bf16.msra.mxu0 0
      %3758 = vmatprep.subr.bf16.mxu0 0
      %3759 = vmatpush1.bf16.msra.mxu0 0
      %3760 = vmatprep.subr.bf16.mxu0 0
      %3761 = vmatpush1.bf16.msra.mxu0 0
      %3762 = vmatprep.subr.bf16.mxu0 0
      %3763 = vmatpush1.bf16.msra.mxu0 0
      %3764 = vmatprep.subr.bf16.mxu0 0
      %3765 = vmatpush1.bf16.msra.mxu0 0
      %3766 = vmatprep.subr.bf16.mxu0 0
      %3767 = vmatpush1.bf16.msra.mxu0 0
      %3768 = vmatprep.mubr.bf16.mxu0 0
      %3769 = vmatmul.mubr.bf16.gmra.mrb[0].mxu0 %v3680
      %v3770 = vpop.f32.mrb[0].mxu0
      %v3771 = vadd.f32 0.0, %v3770
      %v3772 = vpop.f32.mrb[0].mxu0
      %v3773 = vpop.f32.mrb[0].mxu0
      %v3774 = vadd.f32 0.0, %v3773
      %v3775 = vpop.f32.mrb[0].mxu0
      %3776 = vmatprep.mubr.bf16.mxu0 0
      %3777 = vmatmul.mubr.bf16.gmra.mrb[0].mxu0 %v3681
      %v3778 = vpop.f32.mrb[0].mxu0
      %v3779 = vadd.f32 0.0, %v3778
      %v3780 = vpop.f32.mrb[0].mxu0
      %v3781 = vpop.f32.mrb[0].mxu0
      %v3782 = vadd.f32 0.0, %v3781
      %v3783 = vpop.f32.mrb[0].mxu0
      %3784 = vmatprep.mubr.bf16.mxu0 0
      %3785 = vmatmul.mubr.bf16.gmra.mrb[0].mxu0 %v3682
      %v3786 = vpop.f32.mrb[0].mxu0
      %v3787 = vadd.f32 0.0, %v3786
      %v3788 = vpop.f32.mrb[0].mxu0
      %v3789 = vpop.f32.mrb[0].mxu0
      %v3790 = vadd.f32 0.0, %v3789
      %v3791 = vpop.f32.mrb[0].mxu0
      %3792 = vmatprep.mubr.bf16.mxu0 0
      %3793 = vmatmul.mubr.bf16.gmra.mrb[0].mxu0 %v3683
      %v3794 = vpop.f32.mrb[0].mxu0
      %v3795 = vadd.f32 0.0, %v3794
      %v3796 = vpop.f32.mrb[0].mxu0
      %v3797 = vpop.f32.mrb[0].mxu0
      %v3798 = vadd.f32 0.0, %v3797
      %v3799 = vpop.f32.mrb[0].mxu0
      %3800 = vdwg.mxu0
      %v3809 = vunpack.c.l.b16 %v3607
      %v3810 = vunpack.c.l.b16 %v3608
      %v3811 = vunpack.c.l.b16 %v3609
      %v3812 = vunpack.c.l.b16 %v3610
      %v3813 = vunpack.c.l.b16 %v3611
      %v3814 = vunpack.c.l.b16 %v3612
      %v3815 = vunpack.c.l.b16 %v3613
      %v3816 = vunpack.c.l.b16 %v3614
      %v3817 = vpack.c.b16 %v3810, %v3809
      %v3818 = vpack.c.b16 %v3812, %v3811
      %v3819 = vpack.c.b16 %v3814, %v3813
      %v3820 = vpack.c.b16 %v3816, %v3815
      %v3841 = vunpack.c.l.b16 %v3615
      %v3842 = vunpack.c.l.b16 %v3616
      %v3843 = vunpack.c.l.b16 %v3617
      %v3844 = vunpack.c.l.b16 %v3618
      %v3845 = vunpack.c.l.b16 %v3619
      %v3846 = vunpack.c.l.b16 %v3620
      %v3847 = vunpack.c.l.b16 %v3621
      %v3848 = vunpack.c.l.b16 %v3622
      %v3849 = vunpack.c.l.b16 %v3623
      %v3850 = vunpack.c.l.b16 %v3624
      %v3851 = vunpack.c.l.b16 %v3625
      %v3852 = vunpack.c.l.b16 %v3626
      %v3853 = vunpack.c.l.b16 %v3627
      %v3854 = vunpack.c.l.b16 %v3628
      %v3855 = vunpack.c.l.b16 %v3629
      %v3856 = vunpack.c.l.b16 %v3630
      %v3857 = vpack.c.b16 %v3842, %v3841
      %v3858 = vpack.c.b16 %v3844, %v3843
      %v3859 = vpack.c.b16 %v3846, %v3845
      %v3860 = vpack.c.b16 %v3848, %v3847
      %v3861 = vpack.c.b16 %v3850, %v3849
      %v3862 = vpack.c.b16 %v3852, %v3851
      %v3863 = vpack.c.b16 %v3854, %v3853
      %v3864 = vpack.c.b16 %v3856, %v3855
      %3873 = vmatprep.subr.bf16.mxu0 0
      %3874 = vmatpush1.bf16.msra.mxu0 %v3857
      %3875 = vmatprep.subr.bf16.mxu0 0
      %3876 = vmatpush1.bf16.msra.mxu0 %v3858
      %3877 = vmatprep.subr.bf16.mxu0 0
      %3878 = vmatpush1.bf16.msra.mxu0 %v3859
      %3879 = vmatprep.subr.bf16.mxu0 0
      %3880 = vmatpush1.bf16.msra.mxu0 %v3860
      %3881 = vmatprep.subr.bf16.mxu0 0
      %3882 = vmatpush1.bf16.msra.mxu0 %v3861
      %3883 = vmatprep.subr.bf16.mxu0 0
      %3884 = vmatpush1.bf16.msra.mxu0 %v3862
      %3885 = vmatprep.subr.bf16.mxu0 0
      %3886 = vmatpush1.bf16.msra.mxu0 %v3863
      %3887 = vmatprep.subr.bf16.mxu0 0
      %3888 = vmatpush1.bf16.msra.mxu0 %v3864
      %3889 = vmatprep.subr.bf16.mxu0 0
      %3890 = vmatpush1.bf16.msra.mxu0 0
      %3891 = vmatprep.subr.bf16.mxu0 0
      %3892 = vmatpush1.bf16.msra.mxu0 0
      %3893 = vmatprep.subr.bf16.mxu0 0
      %3894 = vmatpush1.bf16.msra.mxu0 0
      %3895 = vmatprep.subr.bf16.mxu0 0
      %3896 = vmatpush1.bf16.msra.mxu0 0
      %3897 = vmatprep.subr.bf16.mxu0 0
      %3898 = vmatpush1.bf16.msra.mxu0 0
      %3899 = vmatprep.subr.bf16.mxu0 0
      %3900 = vmatpush1.bf16.msra.mxu0 0
      %3901 = vmatprep.subr.bf16.mxu0 0
      %3902 = vmatpush1.bf16.msra.mxu0 0
      %3903 = vmatprep.subr.bf16.mxu0 0
      %3904 = vmatpush1.bf16.msra.mxu0 0
      %3905 = vmatprep.mubr.bf16.mxu0 0
      %3906 = vmatmul.mubr.bf16.gmra.mrb[0].mxu0 %v3817
      %v3907 = vpop.f32.mrb[0].mxu0
      %v3908 = vadd.f32 %v3771, %v3907
      %v3909 = vpop.f32.mrb[0].mxu0
      %v3910 = vpop.f32.mrb[0].mxu0
      %v3911 = vadd.f32 %v3774, %v3910
      %v3912 = vpop.f32.mrb[0].mxu0
      %3913 = vmatprep.mubr.bf16.mxu0 0
      %3914 = vmatmul.mubr.bf16.gmra.mrb[0].mxu0 %v3818
      %v3915 = vpop.f32.mrb[0].mxu0
      %v3916 = vadd.f32 %v3779, %v3915
      %v3917 = vpop.f32.mrb[0].mxu0
      %v3918 = vpop.f32.mrb[0].mxu0
      %v3919 = vadd.f32 %v3782, %v3918
      %v3920 = vpop.f32.mrb[0].mxu0
      %3921 = vmatprep.mubr.bf16.mxu0 0
      %3922 = vmatmul.mubr.bf16.gmra.mrb[0].mxu0 %v3819
      %v3923 = vpop.f32.mrb[0].mxu0
      %v3924 = vadd.f32 %v3787, %v3923
      %v3925 = vpop.f32.mrb[0].mxu0
      %v3926 = vpop.f32.mrb[0].mxu0
      %v3927 = vadd.f32 %v3790, %v3926
      %v3928 = vpop.f32.mrb[0].mxu0
      %3929 = vmatprep.mubr.bf16.mxu0 0
      %3930 = vmatmul.mubr.bf16.gmra.mrb[0].mxu0 %v3820
      %v3931 = vpop.f32.mrb[0].mxu0
      %v3932 = vadd.f32 %v3795, %v3931
      %v3933 = vpop.f32.mrb[0].mxu0
      %v3934 = vpop.f32.mrb[0].mxu0
      %v3935 = vadd.f32 %v3798, %v3934
      %v3936 = vpop.f32.mrb[0].mxu0
      %3937 = vdwg.mxu0
      %v3938 = vld [vmem:[#allocation3 + $0x2] sm:$0xff]
      %v3939 = vld [vmem:[#allocation3 + $0x12] sm:$0xff]
      %v3940 = vld [vmem:[#allocation3 + $0x22] sm:$0xff]
      %v3941 = vld [vmem:[#allocation3 + $0x32] sm:$0xff]
      %v3942 = vld [vmem:[#allocation3 + $0x42] sm:$0xff]
      %v3943 = vld [vmem:[#allocation3 + $0x52] sm:$0xff]
      %v3944 = vld [vmem:[#allocation3 + $0x62] sm:$0xff]
      %v3945 = vld [vmem:[#allocation3 + $0x72] sm:$0xff]
      %v3946 = vpack.c.bf16 %v3938, %v3938
      %v3947 = vpack.c.bf16 %v3939, %v3939
      %v3948 = vpack.c.bf16 %v3940, %v3940
      %v3949 = vpack.c.bf16 %v3941, %v3941
      %v3950 = vpack.c.bf16 %v3942, %v3942
      %v3951 = vpack.c.bf16 %v3943, %v3943
      %v3952 = vpack.c.bf16 %v3944, %v3944
      %v3953 = vpack.c.bf16 %v3945, %v3945
      %s3954 = scalar_lea.vmem %s8, 128
      %v3955 = vld [vmem:[%s3954] sm:$0xf]
      %v3956 = vld [vmem:[%s3954 + $0x4] sm:$0xf]
      %v3957 = vld [vmem:[%s3954 + $0x8] sm:$0xf]
      %v3958 = vld [vmem:[%s3954 + $0xc] sm:$0xf]
      %v3959 = vld [vmem:[%s3954 + $0x10] sm:$0xf]
      %v3960 = vld [vmem:[%s3954 + $0x14] sm:$0xf]
      %v3961 = vld [vmem:[%s3954 + $0x18] sm:$0xf]
      %v3962 = vld [vmem:[%s3954 + $0x1c] sm:$0xf]
      %v3963 = vld [vmem:[%s3954 + $0x20] sm:$0xf]
      %v3964 = vld [vmem:[%s3954 + $0x24] sm:$0xf]
      %v3965 = vld [vmem:[%s3954 + $0x28] sm:$0xf]
      %v3966 = vld [vmem:[%s3954 + $0x2c] sm:$0xf]
      %v3967 = vld [vmem:[%s3954 + $0x30] sm:$0xf]
      %v3968 = vld [vmem:[%s3954 + $0x34] sm:$0xf]
      %v3969 = vld [vmem:[%s3954 + $0x38] sm:$0xf]
      %v3970 = vld [vmem:[%s3954 + $0x3c] sm:$0xf]
      %v3979 = vunpack.c.l.b16 %v3946
      %v3980 = vunpack.c.l.b16 %v3947
      %v3981 = vunpack.c.l.b16 %v3948
      %v3982 = vunpack.c.l.b16 %v3949
      %v3983 = vunpack.c.l.b16 %v3950
      %v3984 = vunpack.c.l.b16 %v3951
      %v3985 = vunpack.c.l.b16 %v3952
      %v3986 = vunpack.c.l.b16 %v3953
      %v3987 = vpack.c.b16 %v3980, %v3979
      %v3988 = vpack.c.b16 %v3982, %v3981
      %v3989 = vpack.c.b16 %v3984, %v3983
      %v3990 = vpack.c.b16 %v3986, %v3985
      %v4011 = vunpack.c.l.b16 %v3955
      %v4012 = vunpack.c.l.b16 %v3956
      %v4013 = vunpack.c.l.b16 %v3957
      %v4014 = vunpack.c.l.b16 %v3958
      %v4015 = vunpack.c.l.b16 %v3959
      %v4016 = vunpack.c.l.b16 %v3960
      %v4017 = vunpack.c.l.b16 %v3961
      %v4018 = vunpack.c.l.b16 %v3962
      %v4019 = vunpack.c.l.b16 %v3963
      %v4020 = vunpack.c.l.b16 %v3964
      %v4021 = vunpack.c.l.b16 %v3965
      %v4022 = vunpack.c.l.b16 %v3966
      %v4023 = vunpack.c.l.b16 %v3967
      %v4024 = vunpack.c.l.b16 %v3968
      %v4025 = vunpack.c.l.b16 %v3969
      %v4026 = vunpack.c.l.b16 %v3970
      %v4027 = vpack.c.b16 %v4012, %v4011
      %v4028 = vpack.c.b16 %v4014, %v4013
      %v4029 = vpack.c.b16 %v4016, %v4015
      %v4030 = vpack.c.b16 %v4018, %v4017
      %v4031 = vpack.c.b16 %v4020, %v4019
      %v4032 = vpack.c.b16 %v4022, %v4021
      %v4033 = vpack.c.b16 %v4024, %v4023
      %v4034 = vpack.c.b16 %v4026, %v4025
      %4043 = vmatprep.subr.bf16.mxu0 0
      %4044 = vmatpush1.bf16.msra.mxu0 %v4027
      %4045 = vmatprep.subr.bf16.mxu0 0
      %4046 = vmatpush1.bf16.msra.mxu0 %v4028
      %4047 = vmatprep.subr.bf16.mxu0 0
      %4048 = vmatpush1.bf16.msra.mxu0 %v4029
      %4049 = vmatprep.subr.bf16.mxu0 0
      %4050 = vmatpush1.bf16.msra.mxu0 %v4030
      %4051 = vmatprep.subr.bf16.mxu0 0
      %4052 = vmatpush1.bf16.msra.mxu0 %v4031
      %4053 = vmatprep.subr.bf16.mxu0 0
      %4054 = vmatpush1.bf16.msra.mxu0 %v4032
      %4055 = vmatprep.subr.bf16.mxu0 0
      %4056 = vmatpush1.bf16.msra.mxu0 %v4033
      %4057 = vmatprep.subr.bf16.mxu0 0
      %4058 = vmatpush1.bf16.msra.mxu0 %v4034
      %4059 = vmatprep.subr.bf16.mxu0 0
      %4060 = vmatpush1.bf16.msra.mxu0 0
      %4061 = vmatprep.subr.bf16.mxu0 0
      %4062 = vmatpush1.bf16.msra.mxu0 0
      %4063 = vmatprep.subr.bf16.mxu0 0
      %4064 = vmatpush1.bf16.msra.mxu0 0
      %4065 = vmatprep.subr.bf16.mxu0 0
      %4066 = vmatpush1.bf16.msra.mxu0 0
      %4067 = vmatprep.subr.bf16.mxu0 0
      %4068 = vmatpush1.bf16.msra.mxu0 0
      %4069 = vmatprep.subr.bf16.mxu0 0
      %4070 = vmatpush1.bf16.msra.mxu0 0
      %4071 = vmatprep.subr.bf16.mxu0 0
      %4072 = vmatpush1.bf16.msra.mxu0 0
      %4073 = vmatprep.subr.bf16.mxu0 0
      %4074 = vmatpush1.bf16.msra.mxu0 0
      %4075 = vmatprep.mubr.bf16.mxu0 0
      %4076 = vmatmul.mubr.bf16.gmra.mrb[0].mxu0 %v3987
      %v4077 = vpop.f32.mrb[0].mxu0
      %v4078 = vadd.f32 0.0, %v4077
      %v4079 = vpop.f32.mrb[0].mxu0
      %v4080 = vpop.f32.mrb[0].mxu0
      %v4081 = vadd.f32 0.0, %v4080
      %v4082 = vpop.f32.mrb[0].mxu0
      %4083 = vmatprep.mubr.bf16.mxu0 0
      %4084 = vmatmul.mubr.bf16.gmra.mrb[0].mxu0 %v3988
      %v4085 = vpop.f32.mrb[0].mxu0
      %v4086 = vadd.f32 0.0, %v4085
      %v4087 = vpop.f32.mrb[0].mxu0
      %v4088 = vpop.f32.mrb[0].mxu0
      %v4089 = vadd.f32 0.0, %v4088
      %v4090 = vpop.f32.mrb[0].mxu0
      %4091 = vmatprep.mubr.bf16.mxu0 0
      %4092 = vmatmul.mubr.bf16.gmra.mrb[0].mxu0 %v3989
      %v4093 = vpop.f32.mrb[0].mxu0
      %v4094 = vadd.f32 0.0, %v4093
      %v4095 = vpop.f32.mrb[0].mxu0
      %v4096 = vpop.f32.mrb[0].mxu0
      %v4097 = vadd.f32 0.0, %v4096
      %v4098 = vpop.f32.mrb[0].mxu0
      %4099 = vmatprep.mubr.bf16.mxu0 0
      %4100 = vmatmul.mubr.bf16.gmra.mrb[0].mxu0 %v3990
      %v4101 = vpop.f32.mrb[0].mxu0
      %v4102 = vadd.f32 0.0, %v4101
      %v4103 = vpop.f32.mrb[0].mxu0
      %v4104 = vpop.f32.mrb[0].mxu0
      %v4105 = vadd.f32 0.0, %v4104
      %v4106 = vpop.f32.mrb[0].mxu0
      %4107 = vdwg.mxu0
      %v4108 = vadd.f32 %v3908, %v4078
      %v4109 = vadd.f32 %v3911, %v4081
      %v4110 = vadd.f32 %v3916, %v4086
      %v4111 = vadd.f32 %v3919, %v4089
      %v4112 = vadd.f32 %v3924, %v4094
      %v4113 = vadd.f32 %v3927, %v4097
      %v4114 = vadd.f32 %v3932, %v4102
      %v4115 = vadd.f32 %v3935, %v4105
      %v4116 = vld [vmem:[%s3547] sm:$0xff]
      %v4117 = vld [vmem:[%s3547 + $0x10] sm:$0xff]
      %v4118 = vld [vmem:[%s3547 + $0x20] sm:$0xff]
      %v4119 = vld [vmem:[%s3547 + $0x30] sm:$0xff]
      %v4120 = vld [vmem:[%s3547 + $0x40] sm:$0xff]
      %v4121 = vld [vmem:[%s3547 + $0x50] sm:$0xff]
      %v4122 = vld [vmem:[%s3547 + $0x60] sm:$0xff]
      %v4123 = vld [vmem:[%s3547 + $0x70] sm:$0xff]
      %v4124 = vpack.c.bf16 %v4116, %v4116
      %v4125 = vpack.c.bf16 %v4117, %v4117
      %v4126 = vpack.c.bf16 %v4118, %v4118
      %v4127 = vpack.c.bf16 %v4119, %v4119
      %v4128 = vpack.c.bf16 %v4120, %v4120
      %v4129 = vpack.c.bf16 %v4121, %v4121
      %v4130 = vpack.c.bf16 %v4122, %v4122
      %v4131 = vpack.c.bf16 %v4123, %v4123
      %s4132 = scalar_lea.vmem %s8, 192
      %v4133 = vld [vmem:[%s4132] sm:$0xf]
      %v4134 = vld [vmem:[%s4132 + $0x4] sm:$0xf]
      %v4135 = vld [vmem:[%s4132 + $0x8] sm:$0xf]
      %v4136 = vld [vmem:[%s4132 + $0xc] sm:$0xf]
      %v4137 = vld [vmem:[%s4132 + $0x10] sm:$0xf]
      %v4138 = vld [vmem:[%s4132 + $0x14] sm:$0xf]
      %v4139 = vld [vmem:[%s4132 + $0x18] sm:$0xf]
      %v4140 = vld [vmem:[%s4132 + $0x1c] sm:$0xf]
      %v4141 = vld [vmem:[%s4132 + $0x20] sm:$0xf]
      %v4142 = vld [vmem:[%s4132 + $0x24] sm:$0xf]
      %v4143 = vld [vmem:[%s4132 + $0x28] sm:$0xf]
      %v4144 = vld [vmem:[%s4132 + $0x2c] sm:$0xf]
      %v4145 = vld [vmem:[%s4132 + $0x30] sm:$0xf]
      %v4146 = vld [vmem:[%s4132 + $0x34] sm:$0xf]
      %v4147 = vld [vmem:[%s4132 + $0x38] sm:$0xf]
      %v4148 = vld [vmem:[%s4132 + $0x3c] sm:$0xf]
      %v4157 = vunpack.c.l.b16 %v4124
      %v4158 = vunpack.c.l.b16 %v4125
      %v4159 = vunpack.c.l.b16 %v4126
      %v4160 = vunpack.c.l.b16 %v4127
      %v4161 = vunpack.c.l.b16 %v4128
      %v4162 = vunpack.c.l.b16 %v4129
      %v4163 = vunpack.c.l.b16 %v4130
      %v4164 = vunpack.c.l.b16 %v4131
      %v4165 = vpack.c.b16 %v4158, %v4157
      %v4166 = vpack.c.b16 %v4160, %v4159
      %v4167 = vpack.c.b16 %v4162, %v4161
      %v4168 = vpack.c.b16 %v4164, %v4163
      %v4189 = vunpack.c.l.b16 %v4133
      %v4190 = vunpack.c.l.b16 %v4134
      %v4191 = vunpack.c.l.b16 %v4135
      %v4192 = vunpack.c.l.b16 %v4136
      %v4193 = vunpack.c.l.b16 %v4137
      %v4194 = vunpack.c.l.b16 %v4138
      %v4195 = vunpack.c.l.b16 %v4139
      %v4196 = vunpack.c.l.b16 %v4140
      %v4197 = vunpack.c.l.b16 %v4141
      %v4198 = vunpack.c.l.b16 %v4142
      %v4199 = vunpack.c.l.b16 %v4143
      %v4200 = vunpack.c.l.b16 %v4144
      %v4201 = vunpack.c.l.b16 %v4145
      %v4202 = vunpack.c.l.b16 %v4146
      %v4203 = vunpack.c.l.b16 %v4147
      %v4204 = vunpack.c.l.b16 %v4148
      %v4205 = vpack.c.b16 %v4190, %v4189
      %v4206 = vpack.c.b16 %v4192, %v4191
      %v4207 = vpack.c.b16 %v4194, %v4193
      %v4208 = vpack.c.b16 %v4196, %v4195
      %v4209 = vpack.c.b16 %v4198, %v4197
      %v4210 = vpack.c.b16 %v4200, %v4199
      %v4211 = vpack.c.b16 %v4202, %v4201
      %v4212 = vpack.c.b16 %v4204, %v4203
      %4221 = vmatprep.subr.bf16.mxu0 0
      %4222 = vmatpush1.bf16.msra.mxu0 %v4205
      %4223 = vmatprep.subr.bf16.mxu0 0
      %4224 = vmatpush1.bf16.msra.mxu0 %v4206
      %4225 = vmatprep.subr.bf16.mxu0 0
      %4226 = vmatpush1.bf16.msra.mxu0 %v4207
      %4227 = vmatprep.subr.bf16.mxu0 0
      %4228 = vmatpush1.bf16.msra.mxu0 %v4208
      %4229 = vmatprep.subr.bf16.mxu0 0
      %4230 = vmatpush1.bf16.msra.mxu0 %v4209
      %4231 = vmatprep.subr.bf16.mxu0 0
      %4232 = vmatpush1.bf16.msra.mxu0 %v4210
      %4233 = vmatprep.subr.bf16.mxu0 0
      %4234 = vmatpush1.bf16.msra.mxu0 %v4211
      %4235 = vmatprep.subr.bf16.mxu0 0
      %4236 = vmatpush1.bf16.msra.mxu0 %v4212
      %4237 = vmatprep.subr.bf16.mxu0 0
      %4238 = vmatpush1.bf16.msra.mxu0 0
      %4239 = vmatprep.subr.bf16.mxu0 0
      %4240 = vmatpush1.bf16.msra.mxu0 0
      %4241 = vmatprep.subr.bf16.mxu0 0
      %4242 = vmatpush1.bf16.msra.mxu0 0
      %4243 = vmatprep.subr.bf16.mxu0 0
      %4244 = vmatpush1.bf16.msra.mxu0 0
      %4245 = vmatprep.subr.bf16.mxu0 0
      %4246 = vmatpush1.bf16.msra.mxu0 0
      %4247 = vmatprep.subr.bf16.mxu0 0
      %4248 = vmatpush1.bf16.msra.mxu0 0
      %4249 = vmatprep.subr.bf16.mxu0 0
      %4250 = vmatpush1.bf16.msra.mxu0 0
      %4251 = vmatprep.subr.bf16.mxu0 0
      %4252 = vmatpush1.bf16.msra.mxu0 0
      %4253 = vmatprep.mubr.bf16.mxu0 0
      %4254 = vmatmul.mubr.bf16.gmra.mrb[0].mxu0 %v4165
      %v4255 = vpop.f32.mrb[0].mxu0
      %v4256 = vadd.f32 0.0, %v4255
      %v4257 = vpop.f32.mrb[0].mxu0
      %v4258 = vpop.f32.mrb[0].mxu0
      %v4259 = vadd.f32 0.0, %v4258
      %v4260 = vpop.f32.mrb[0].mxu0
      %4261 = vmatprep.mubr.bf16.mxu0 0
      %4262 = vmatmul.mubr.bf16.gmra.mrb[0].mxu0 %v4166
      %v4263 = vpop.f32.mrb[0].mxu0
      %v4264 = vadd.f32 0.0, %v4263
      %v4265 = vpop.f32.mrb[0].mxu0
      %v4266 = vpop.f32.mrb[0].mxu0
      %v4267 = vadd.f32 0.0, %v4266
      %v4268 = vpop.f32.mrb[0].mxu0
      %4269 = vmatprep.mubr.bf16.mxu0 0
      %4270 = vmatmul.mubr.bf16.gmra.mrb[0].mxu0 %v4167
      %v4271 = vpop.f32.mrb[0].mxu0
      %v4272 = vadd.f32 0.0, %v4271
      %v4273 = vpop.f32.mrb[0].mxu0
      %v4274 = vpop.f32.mrb[0].mxu0
      %v4275 = vadd.f32 0.0, %v4274
      %v4276 = vpop.f32.mrb[0].mxu0
      %4277 = vmatprep.mubr.bf16.mxu0 0
      %4278 = vmatmul.mubr.bf16.gmra.mrb[0].mxu0 %v4168
      %v4279 = vpop.f32.mrb[0].mxu0
      %v4280 = vadd.f32 0.0, %v4279
      %v4281 = vpop.f32.mrb[0].mxu0
      %v4282 = vpop.f32.mrb[0].mxu0
      %v4283 = vadd.f32 0.0, %v4282
      %v4284 = vpop.f32.mrb[0].mxu0
      %4285 = vdwg.mxu0
      %v4286 = vadd.f32 %v4108, %v4256
      %v4287 = vadd.f32 %v4109, %v4259
      %v4288 = vadd.f32 %v4110, %v4264
      %v4289 = vadd.f32 %v4111, %v4267
      %v4290 = vadd.f32 %v4112, %v4272
      %v4291 = vadd.f32 %v4113, %v4275
      %v4292 = vadd.f32 %v4114, %v4280
      %v4293 = vadd.f32 %v4115, %v4283
      %v4294 = vld [vmem:[%s3547 + $0x1] sm:$0xff]
      %v4295 = vld [vmem:[%s3547 + $0x11] sm:$0xff]
      %v4296 = vld [vmem:[%s3547 + $0x21] sm:$0xff]
      %v4297 = vld [vmem:[%s3547 + $0x31] sm:$0xff]
      %v4298 = vld [vmem:[%s3547 + $0x41] sm:$0xff]
      %v4299 = vld [vmem:[%s3547 + $0x51] sm:$0xff]
      %v4300 = vld [vmem:[%s3547 + $0x61] sm:$0xff]
      %v4301 = vld [vmem:[%s3547 + $0x71] sm:$0xff]
      %v4302 = vpack.c.bf16 %v4294, %v4294
      %v4303 = vpack.c.bf16 %v4295, %v4295
      %v4304 = vpack.c.bf16 %v4296, %v4296
      %v4305 = vpack.c.bf16 %v4297, %v4297
      %v4306 = vpack.c.bf16 %v4298, %v4298
      %v4307 = vpack.c.bf16 %v4299, %v4299
      %v4308 = vpack.c.bf16 %v4300, %v4300
      %v4309 = vpack.c.bf16 %v4301, %v4301
      %s4310 = scalar_lea.vmem %s8, 256
      %v4311 = vld [vmem:[%s4310] sm:$0xf]
      %v4312 = vld [vmem:[%s4310 + $0x4] sm:$0xf]
      %v4313 = vld [vmem:[%s4310 + $0x8] sm:$0xf]
      %v4314 = vld [vmem:[%s4310 + $0xc] sm:$0xf]
      %v4315 = vld [vmem:[%s4310 + $0x10] sm:$0xf]
      %v4316 = vld [vmem:[%s4310 + $0x14] sm:$0xf]
      %v4317 = vld [vmem:[%s4310 + $0x18] sm:$0xf]
      %v4318 = vld [vmem:[%s4310 + $0x1c] sm:$0xf]
      %v4319 = vld [vmem:[%s4310 + $0x20] sm:$0xf]
      %v4320 = vld [vmem:[%s4310 + $0x24] sm:$0xf]
      %v4321 = vld [vmem:[%s4310 + $0x28] sm:$0xf]
      %v4322 = vld [vmem:[%s4310 + $0x2c] sm:$0xf]
      %v4323 = vld [vmem:[%s4310 + $0x30] sm:$0xf]
      %v4324 = vld [vmem:[%s4310 + $0x34] sm:$0xf]
      %v4325 = vld [vmem:[%s4310 + $0x38] sm:$0xf]
      %v4326 = vld [vmem:[%s4310 + $0x3c] sm:$0xf]
      %v4335 = vunpack.c.l.b16 %v4302
      %v4336 = vunpack.c.l.b16 %v4303
      %v4337 = vunpack.c.l.b16 %v4304
      %v4338 = vunpack.c.l.b16 %v4305
      %v4339 = vunpack.c.l.b16 %v4306
      %v4340 = vunpack.c.l.b16 %v4307
      %v4341 = vunpack.c.l.b16 %v4308
      %v4342 = vunpack.c.l.b16 %v4309
      %v4343 = vpack.c.b16 %v4336, %v4335
      %v4344 = vpack.c.b16 %v4338, %v4337
      %v4345 = vpack.c.b16 %v4340, %v4339
      %v4346 = vpack.c.b16 %v4342, %v4341
      %v4367 = vunpack.c.l.b16 %v4311
      %v4368 = vunpack.c.l.b16 %v4312
      %v4369 = vunpack.c.l.b16 %v4313
      %v4370 = vunpack.c.l.b16 %v4314
      %v4371 = vunpack.c.l.b16 %v4315
      %v4372 = vunpack.c.l.b16 %v4316
      %v4373 = vunpack.c.l.b16 %v4317
      %v4374 = vunpack.c.l.b16 %v4318
      %v4375 = vunpack.c.l.b16 %v4319
      %v4376 = vunpack.c.l.b16 %v4320
      %v4377 = vunpack.c.l.b16 %v4321
      %v4378 = vunpack.c.l.b16 %v4322
      %v4379 = vunpack.c.l.b16 %v4323
      %v4380 = vunpack.c.l.b16 %v4324
      %v4381 = vunpack.c.l.b16 %v4325
      %v4382 = vunpack.c.l.b16 %v4326
      %v4383 = vpack.c.b16 %v4368, %v4367
      %v4384 = vpack.c.b16 %v4370, %v4369
      %v4385 = vpack.c.b16 %v4372, %v4371
      %v4386 = vpack.c.b16 %v4374, %v4373
      %v4387 = vpack.c.b16 %v4376, %v4375
      %v4388 = vpack.c.b16 %v4378, %v4377
      %v4389 = vpack.c.b16 %v4380, %v4379
      %v4390 = vpack.c.b16 %v4382, %v4381
      %4399 = vmatprep.subr.bf16.mxu0 0
      %4400 = vmatpush1.bf16.msra.mxu0 %v4383
      %4401 = vmatprep.subr.bf16.mxu0 0
      %4402 = vmatpush1.bf16.msra.mxu0 %v4384
      %4403 = vmatprep.subr.bf16.mxu0 0
      %4404 = vmatpush1.bf16.msra.mxu0 %v4385
      %4405 = vmatprep.subr.bf16.mxu0 0
      %4406 = vmatpush1.bf16.msra.mxu0 %v4386
      %4407 = vmatprep.subr.bf16.mxu0 0
      %4408 = vmatpush1.bf16.msra.mxu0 %v4387
      %4409 = vmatprep.subr.bf16.mxu0 0
      %4410 = vmatpush1.bf16.msra.mxu0 %v4388
      %4411 = vmatprep.subr.bf16.mxu0 0
      %4412 = vmatpush1.bf16.msra.mxu0 %v4389
      %4413 = vmatprep.subr.bf16.mxu0 0
      %4414 = vmatpush1.bf16.msra.mxu0 %v4390
      %4415 = vmatprep.subr.bf16.mxu0 0
      %4416 = vmatpush1.bf16.msra.mxu0 0
      %4417 = vmatprep.subr.bf16.mxu0 0
      %4418 = vmatpush1.bf16.msra.mxu0 0
      %4419 = vmatprep.subr.bf16.mxu0 0
      %4420 = vmatpush1.bf16.msra.mxu0 0
      %4421 = vmatprep.subr.bf16.mxu0 0
      %4422 = vmatpush1.bf16.msra.mxu0 0
      %4423 = vmatprep.subr.bf16.mxu0 0
      %4424 = vmatpush1.bf16.msra.mxu0 0
      %4425 = vmatprep.subr.bf16.mxu0 0
      %4426 = vmatpush1.bf16.msra.mxu0 0
      %4427 = vmatprep.subr.bf16.mxu0 0
      %4428 = vmatpush1.bf16.msra.mxu0 0
      %4429 = vmatprep.subr.bf16.mxu0 0
      %4430 = vmatpush1.bf16.msra.mxu0 0
      %4431 = vmatprep.mubr.bf16.mxu0 0
      %4432 = vmatmul.mubr.bf16.gmra.mrb[0].mxu0 %v4343
      %v4433 = vpop.f32.mrb[0].mxu0
      %v4434 = vadd.f32 0.0, %v4433
      %v4435 = vpop.f32.mrb[0].mxu0
      %v4436 = vpop.f32.mrb[0].mxu0
      %v4437 = vadd.f32 0.0, %v4436
      %v4438 = vpop.f32.mrb[0].mxu0
      %4439 = vmatprep.mubr.bf16.mxu0 0
      %4440 = vmatmul.mubr.bf16.gmra.mrb[0].mxu0 %v4344
      %v4441 = vpop.f32.mrb[0].mxu0
      %v4442 = vadd.f32 0.0, %v4441
      %v4443 = vpop.f32.mrb[0].mxu0
      %v4444 = vpop.f32.mrb[0].mxu0
      %v4445 = vadd.f32 0.0, %v4444
      %v4446 = vpop.f32.mrb[0].mxu0
      %4447 = vmatprep.mubr.bf16.mxu0 0
      %4448 = vmatmul.mubr.bf16.gmra.mrb[0].mxu0 %v4345
      %v4449 = vpop.f32.mrb[0].mxu0
      %v4450 = vadd.f32 0.0, %v4449
      %v4451 = vpop.f32.mrb[0].mxu0
      %v4452 = vpop.f32.mrb[0].mxu0
      %v4453 = vadd.f32 0.0, %v4452
      %v4454 = vpop.f32.mrb[0].mxu0
      %4455 = vmatprep.mubr.bf16.mxu0 0
      %4456 = vmatmul.mubr.bf16.gmra.mrb[0].mxu0 %v4346
      %v4457 = vpop.f32.mrb[0].mxu0
      %v4458 = vadd.f32 0.0, %v4457
      %v4459 = vpop.f32.mrb[0].mxu0
      %v4460 = vpop.f32.mrb[0].mxu0
      %v4461 = vadd.f32 0.0, %v4460
      %v4462 = vpop.f32.mrb[0].mxu0
      %4463 = vdwg.mxu0
      %v4464 = vadd.f32 %v4286, %v4434
      %v4465 = vadd.f32 %v4287, %v4437
      %v4466 = vadd.f32 %v4288, %v4442
      %v4467 = vadd.f32 %v4289, %v4445
      %v4468 = vadd.f32 %v4290, %v4450
      %v4469 = vadd.f32 %v4291, %v4453
      %v4470 = vadd.f32 %v4292, %v4458
      %v4471 = vadd.f32 %v4293, %v4461
      %v4472 = vld [vmem:[%s3547 + $0x2] sm:$0xff]
      %v4473 = vld [vmem:[%s3547 + $0x12] sm:$0xff]
      %v4474 = vld [vmem:[%s3547 + $0x22] sm:$0xff]
      %v4475 = vld [vmem:[%s3547 + $0x32] sm:$0xff]
      %v4476 = vld [vmem:[%s3547 + $0x42] sm:$0xff]
      %v4477 = vld [vmem:[%s3547 + $0x52] sm:$0xff]
      %v4478 = vld [vmem:[%s3547 + $0x62] sm:$0xff]
      %v4479 = vld [vmem:[%s3547 + $0x72] sm:$0xff]
      %v4480 = vpack.c.bf16 %v4472, %v4472
      %v4481 = vpack.c.bf16 %v4473, %v4473
      %v4482 = vpack.c.bf16 %v4474, %v4474
      %v4483 = vpack.c.bf16 %v4475, %v4475
      %v4484 = vpack.c.bf16 %v4476, %v4476
      %v4485 = vpack.c.bf16 %v4477, %v4477
      %v4486 = vpack.c.bf16 %v4478, %v4478
      %v4487 = vpack.c.bf16 %v4479, %v4479
      %s4488 = scalar_lea.vmem %s8, 320
      %v4489 = vld [vmem:[%s4488] sm:$0xf]
      %v4490 = vld [vmem:[%s4488 + $0x4] sm:$0xf]
      %v4491 = vld [vmem:[%s4488 + $0x8] sm:$0xf]
      %v4492 = vld [vmem:[%s4488 + $0xc] sm:$0xf]
      %v4493 = vld [vmem:[%s4488 + $0x10] sm:$0xf]
      %v4494 = vld [vmem:[%s4488 + $0x14] sm:$0xf]
      %v4495 = vld [vmem:[%s4488 + $0x18] sm:$0xf]
      %v4496 = vld [vmem:[%s4488 + $0x1c] sm:$0xf]
      %v4497 = vld [vmem:[%s4488 + $0x20] sm:$0xf]
      %v4498 = vld [vmem:[%s4488 + $0x24] sm:$0xf]
      %v4499 = vld [vmem:[%s4488 + $0x28] sm:$0xf]
      %v4500 = vld [vmem:[%s4488 + $0x2c] sm:$0xf]
      %v4501 = vld [vmem:[%s4488 + $0x30] sm:$0xf]
      %v4502 = vld [vmem:[%s4488 + $0x34] sm:$0xf]
      %v4503 = vld [vmem:[%s4488 + $0x38] sm:$0xf]
      %v4504 = vld [vmem:[%s4488 + $0x3c] sm:$0xf]
      %v4513 = vunpack.c.l.b16 %v4480
      %v4514 = vunpack.c.l.b16 %v4481
      %v4515 = vunpack.c.l.b16 %v4482
      %v4516 = vunpack.c.l.b16 %v4483
      %v4517 = vunpack.c.l.b16 %v4484
      %v4518 = vunpack.c.l.b16 %v4485
      %v4519 = vunpack.c.l.b16 %v4486
      %v4520 = vunpack.c.l.b16 %v4487
      %v4521 = vpack.c.b16 %v4514, %v4513
      %v4522 = vpack.c.b16 %v4516, %v4515
      %v4523 = vpack.c.b16 %v4518, %v4517
      %v4524 = vpack.c.b16 %v4520, %v4519
      %v4545 = vunpack.c.l.b16 %v4489
      %v4546 = vunpack.c.l.b16 %v4490
      %v4547 = vunpack.c.l.b16 %v4491
      %v4548 = vunpack.c.l.b16 %v4492
      %v4549 = vunpack.c.l.b16 %v4493
      %v4550 = vunpack.c.l.b16 %v4494
      %v4551 = vunpack.c.l.b16 %v4495
      %v4552 = vunpack.c.l.b16 %v4496
      %v4553 = vunpack.c.l.b16 %v4497
      %v4554 = vunpack.c.l.b16 %v4498
      %v4555 = vunpack.c.l.b16 %v4499
      %v4556 = vunpack.c.l.b16 %v4500
      %v4557 = vunpack.c.l.b16 %v4501
      %v4558 = vunpack.c.l.b16 %v4502
      %v4559 = vunpack.c.l.b16 %v4503
      %v4560 = vunpack.c.l.b16 %v4504
      %v4561 = vpack.c.b16 %v4546, %v4545
      %v4562 = vpack.c.b16 %v4548, %v4547
      %v4563 = vpack.c.b16 %v4550, %v4549
      %v4564 = vpack.c.b16 %v4552, %v4551
      %v4565 = vpack.c.b16 %v4554, %v4553
      %v4566 = vpack.c.b16 %v4556, %v4555
      %v4567 = vpack.c.b16 %v4558, %v4557
      %v4568 = vpack.c.b16 %v4560, %v4559
      %4577 = vmatprep.subr.bf16.mxu0 0
      %4578 = vmatpush1.bf16.msra.mxu0 %v4561
      %4579 = vmatprep.subr.bf16.mxu0 0
      %4580 = vmatpush1.bf16.msra.mxu0 %v4562
      %4581 = vmatprep.subr.bf16.mxu0 0
      %4582 = vmatpush1.bf16.msra.mxu0 %v4563
      %4583 = vmatprep.subr.bf16.mxu0 0
      %4584 = vmatpush1.bf16.msra.mxu0 %v4564
      %4585 = vmatprep.subr.bf16.mxu0 0
      %4586 = vmatpush1.bf16.msra.mxu0 %v4565
      %4587 = vmatprep.subr.bf16.mxu0 0
      %4588 = vmatpush1.bf16.msra.mxu0 %v4566
      %4589 = vmatprep.subr.bf16.mxu0 0
      %4590 = vmatpush1.bf16.msra.mxu0 %v4567
      %4591 = vmatprep.subr.bf16.mxu0 0
      %4592 = vmatpush1.bf16.msra.mxu0 %v4568
      %4593 = vmatprep.subr.bf16.mxu0 0
      %4594 = vmatpush1.bf16.msra.mxu0 0
      %4595 = vmatprep.subr.bf16.mxu0 0
      %4596 = vmatpush1.bf16.msra.mxu0 0
      %4597 = vmatprep.subr.bf16.mxu0 0
      %4598 = vmatpush1.bf16.msra.mxu0 0
      %4599 = vmatprep.subr.bf16.mxu0 0
      %4600 = vmatpush1.bf16.msra.mxu0 0
      %4601 = vmatprep.subr.bf16.mxu0 0
      %4602 = vmatpush1.bf16.msra.mxu0 0
      %4603 = vmatprep.subr.bf16.mxu0 0
      %4604 = vmatpush1.bf16.msra.mxu0 0
      %4605 = vmatprep.subr.bf16.mxu0 0
      %4606 = vmatpush1.bf16.msra.mxu0 0
      %4607 = vmatprep.subr.bf16.mxu0 0
      %4608 = vmatpush1.bf16.msra.mxu0 0
      %4609 = vmatprep.mubr.bf16.mxu0 0
      %4610 = vmatmul.mubr.bf16.gmra.mrb[0].mxu0 %v4521
      %v4611 = vpop.f32.mrb[0].mxu0
      %v4612 = vadd.f32 0.0, %v4611
      %v4613 = vpop.f32.mrb[0].mxu0
      %v4614 = vpop.f32.mrb[0].mxu0
      %v4615 = vadd.f32 0.0, %v4614
      %v4616 = vpop.f32.mrb[0].mxu0
      %4617 = vmatprep.mubr.bf16.mxu0 0
      %4618 = vmatmul.mubr.bf16.gmra.mrb[0].mxu0 %v4522
      %v4619 = vpop.f32.mrb[0].mxu0
      %v4620 = vadd.f32 0.0, %v4619
      %v4621 = vpop.f32.mrb[0].mxu0
      %v4622 = vpop.f32.mrb[0].mxu0
      %v4623 = vadd.f32 0.0, %v4622
      %v4624 = vpop.f32.mrb[0].mxu0
      %4625 = vmatprep.mubr.bf16.mxu0 0
      %4626 = vmatmul.mubr.bf16.gmra.mrb[0].mxu0 %v4523
      %v4627 = vpop.f32.mrb[0].mxu0
      %v4628 = vadd.f32 0.0, %v4627
      %v4629 = vpop.f32.mrb[0].mxu0
      %v4630 = vpop.f32.mrb[0].mxu0
      %v4631 = vadd.f32 0.0, %v4630
      %v4632 = vpop.f32.mrb[0].mxu0
      %4633 = vmatprep.mubr.bf16.mxu0 0
      %4634 = vmatmul.mubr.bf16.gmra.mrb[0].mxu0 %v4524
      %v4635 = vpop.f32.mrb[0].mxu0
      %v4636 = vadd.f32 0.0, %v4635
      %v4637 = vpop.f32.mrb[0].mxu0
      %v4638 = vpop.f32.mrb[0].mxu0
      %v4639 = vadd.f32 0.0, %v4638
      %v4640 = vpop.f32.mrb[0].mxu0
      %4641 = vdwg.mxu0
      %v4642 = vadd.f32 %v4464, %v4612
      %v4643 = vadd.f32 %v4465, %v4615
      %v4644 = vadd.f32 %v4466, %v4620
      %v4645 = vadd.f32 %v4467, %v4623
      %v4646 = vadd.f32 %v4468, %v4628
      %v4647 = vadd.f32 %v4469, %v4631
      %v4648 = vadd.f32 %v4470, %v4636
      %v4649 = vadd.f32 %v4471, %v4639
      %s4650 = scalar_lea.vmem [#allocation3], 32
      %v4651 = vld [vmem:[%s4650] sm:$0xff]
      %v4652 = vld [vmem:[%s4650 + $0x10] sm:$0xff]
      %v4653 = vld [vmem:[%s4650 + $0x20] sm:$0xff]
      %v4654 = vld [vmem:[%s4650 + $0x30] sm:$0xff]
      %v4655 = vld [vmem:[%s4650 + $0x40] sm:$0xff]
      %v4656 = vld [vmem:[%s4650 + $0x50] sm:$0xff]
      %v4657 = vld [vmem:[%s4650 + $0x60] sm:$0xff]
      %v4658 = vld [vmem:[%s4650 + $0x70] sm:$0xff]
      %v4659 = vpack.c.bf16 %v4651, %v4651
      %v4660 = vpack.c.bf16 %v4652, %v4652
      %v4661 = vpack.c.bf16 %v4653, %v4653
      %v4662 = vpack.c.bf16 %v4654, %v4654
      %v4663 = vpack.c.bf16 %v4655, %v4655
      %v4664 = vpack.c.bf16 %v4656, %v4656
      %v4665 = vpack.c.bf16 %v4657, %v4657
      %v4666 = vpack.c.bf16 %v4658, %v4658
      %s4667 = scalar_lea.vmem %s8, 384
      %v4668 = vld [vmem:[%s4667] sm:$0xf]
      %v4669 = vld [vmem:[%s4667 + $0x4] sm:$0xf]
      %v4670 = vld [vmem:[%s4667 + $0x8] sm:$0xf]
      %v4671 = vld [vmem:[%s4667 + $0xc] sm:$0xf]
      %v4672 = vld [vmem:[%s4667 + $0x10] sm:$0xf]
      %v4673 = vld [vmem:[%s4667 + $0x14] sm:$0xf]
      %v4674 = vld [vmem:[%s4667 + $0x18] sm:$0xf]
      %v4675 = vld [vmem:[%s4667 + $0x1c] sm:$0xf]
      %v4676 = vld [vmem:[%s4667 + $0x20] sm:$0xf]
      %v4677 = vld [vmem:[%s4667 + $0x24] sm:$0xf]
      %v4678 = vld [vmem:[%s4667 + $0x28] sm:$0xf]
      %v4679 = vld [vmem:[%s4667 + $0x2c] sm:$0xf]
      %v4680 = vld [vmem:[%s4667 + $0x30] sm:$0xf]
      %v4681 = vld [vmem:[%s4667 + $0x34] sm:$0xf]
      %v4682 = vld [vmem:[%s4667 + $0x38] sm:$0xf]
      %v4683 = vld [vmem:[%s4667 + $0x3c] sm:$0xf]
      %v4692 = vunpack.c.l.b16 %v4659
      %v4693 = vunpack.c.l.b16 %v4660
      %v4694 = vunpack.c.l.b16 %v4661
      %v4695 = vunpack.c.l.b16 %v4662
      %v4696 = vunpack.c.l.b16 %v4663
      %v4697 = vunpack.c.l.b16 %v4664
      %v4698 = vunpack.c.l.b16 %v4665
      %v4699 = vunpack.c.l.b16 %v4666
      %v4700 = vpack.c.b16 %v4693, %v4692
      %v4701 = vpack.c.b16 %v4695, %v4694
      %v4702 = vpack.c.b16 %v4697, %v4696
      %v4703 = vpack.c.b16 %v4699, %v4698
      %v4724 = vunpack.c.l.b16 %v4668
      %v4725 = vunpack.c.l.b16 %v4669
      %v4726 = vunpack.c.l.b16 %v4670
      %v4727 = vunpack.c.l.b16 %v4671
      %v4728 = vunpack.c.l.b16 %v4672
      %v4729 = vunpack.c.l.b16 %v4673
      %v4730 = vunpack.c.l.b16 %v4674
      %v4731 = vunpack.c.l.b16 %v4675
      %v4732 = vunpack.c.l.b16 %v4676
      %v4733 = vunpack.c.l.b16 %v4677
      %v4734 = vunpack.c.l.b16 %v4678
      %v4735 = vunpack.c.l.b16 %v4679
      %v4736 = vunpack.c.l.b16 %v4680
      %v4737 = vunpack.c.l.b16 %v4681
      %v4738 = vunpack.c.l.b16 %v4682
      %v4739 = vunpack.c.l.b16 %v4683
      %v4740 = vpack.c.b16 %v4725, %v4724
      %v4741 = vpack.c.b16 %v4727, %v4726
      %v4742 = vpack.c.b16 %v4729, %v4728
      %v4743 = vpack.c.b16 %v4731, %v4730
      %v4744 = vpack.c.b16 %v4733, %v4732
      %v4745 = vpack.c.b16 %v4735, %v4734
      %v4746 = vpack.c.b16 %v4737, %v4736
      %v4747 = vpack.c.b16 %v4739, %v4738
      %4756 = vmatprep.subr.bf16.mxu0 0
      %4757 = vmatpush1.bf16.msra.mxu0 %v4740
      %4758 = vmatprep.subr.bf16.mxu0 0
      %4759 = vmatpush1.bf16.msra.mxu0 %v4741
      %4760 = vmatprep.subr.bf16.mxu0 0
      %4761 = vmatpush1.bf16.msra.mxu0 %v4742
      %4762 = vmatprep.subr.bf16.mxu0 0
      %4763 = vmatpush1.bf16.msra.mxu0 %v4743
      %4764 = vmatprep.subr.bf16.mxu0 0
      %4765 = vmatpush1.bf16.msra.mxu0 %v4744
      %4766 = vmatprep.subr.bf16.mxu0 0
      %4767 = vmatpush1.bf16.msra.mxu0 %v4745
      %4768 = vmatprep.subr.bf16.mxu0 0
      %4769 = vmatpush1.bf16.msra.mxu0 %v4746
      %4770 = vmatprep.subr.bf16.mxu0 0
      %4771 = vmatpush1.bf16.msra.mxu0 %v4747
      %4772 = vmatprep.subr.bf16.mxu0 0
      %4773 = vmatpush1.bf16.msra.mxu0 0
      %4774 = vmatprep.subr.bf16.mxu0 0
      %4775 = vmatpush1.bf16.msra.mxu0 0
      %4776 = vmatprep.subr.bf16.mxu0 0
      %4777 = vmatpush1.bf16.msra.mxu0 0
      %4778 = vmatprep.subr.bf16.mxu0 0
      %4779 = vmatpush1.bf16.msra.mxu0 0
      %4780 = vmatprep.subr.bf16.mxu0 0
      %4781 = vmatpush1.bf16.msra.mxu0 0
      %4782 = vmatprep.subr.bf16.mxu0 0
      %4783 = vmatpush1.bf16.msra.mxu0 0
      %4784 = vmatprep.subr.bf16.mxu0 0
      %4785 = vmatpush1.bf16.msra.mxu0 0
      %4786 = vmatprep.subr.bf16.mxu0 0
      %4787 = vmatpush1.bf16.msra.mxu0 0
      %4788 = vmatprep.mubr.bf16.mxu0 0
      %4789 = vmatmul.mubr.bf16.gmra.mrb[0].mxu0 %v4700
      %v4790 = vpop.f32.mrb[0].mxu0
      %v4791 = vadd.f32 0.0, %v4790
      %v4792 = vpop.f32.mrb[0].mxu0
      %v4793 = vpop.f32.mrb[0].mxu0
      %v4794 = vadd.f32 0.0, %v4793
      %v4795 = vpop.f32.mrb[0].mxu0
      %4796 = vmatprep.mubr.bf16.mxu0 0
      %4797 = vmatmul.mubr.bf16.gmra.mrb[0].mxu0 %v4701
      %v4798 = vpop.f32.mrb[0].mxu0
      %v4799 = vadd.f32 0.0, %v4798
      %v4800 = vpop.f32.mrb[0].mxu0
      %v4801 = vpop.f32.mrb[0].mxu0
      %v4802 = vadd.f32 0.0, %v4801
      %v4803 = vpop.f32.mrb[0].mxu0
      %4804 = vmatprep.mubr.bf16.mxu0 0
      %4805 = vmatmul.mubr.bf16.gmra.mrb[0].mxu0 %v4702
      %v4806 = vpop.f32.mrb[0].mxu0
      %v4807 = vadd.f32 0.0, %v4806
      %v4808 = vpop.f32.mrb[0].mxu0
      %v4809 = vpop.f32.mrb[0].mxu0
      %v4810 = vadd.f32 0.0, %v4809
      %v4811 = vpop.f32.mrb[0].mxu0
      %4812 = vmatprep.mubr.bf16.mxu0 0
      %4813 = vmatmul.mubr.bf16.gmra.mrb[0].mxu0 %v4703
      %v4814 = vpop.f32.mrb[0].mxu0
      %v4815 = vadd.f32 0.0, %v4814
      %v4816 = vpop.f32.mrb[0].mxu0
      %v4817 = vpop.f32.mrb[0].mxu0
      %v4818 = vadd.f32 0.0, %v4817
      %v4819 = vpop.f32.mrb[0].mxu0
      %4820 = vdwg.mxu0
      %v4821 = vadd.f32 %v4642, %v4791
      %v4822 = vadd.f32 %v4643, %v4794
      %v4823 = vadd.f32 %v4644, %v4799
      %v4824 = vadd.f32 %v4645, %v4802
      %v4825 = vadd.f32 %v4646, %v4807
      %v4826 = vadd.f32 %v4647, %v4810
      %v4827 = vadd.f32 %v4648, %v4815
      %v4828 = vadd.f32 %v4649, %v4818
      %v4829 = vld [vmem:[%s4650 + $0x1] sm:$0xff]
      %v4830 = vld [vmem:[%s4650 + $0x11] sm:$0xff]
      %v4831 = vld [vmem:[%s4650 + $0x21] sm:$0xff]
      %v4832 = vld [vmem:[%s4650 + $0x31] sm:$0xff]
      %v4833 = vld [vmem:[%s4650 + $0x41] sm:$0xff]
      %v4834 = vld [vmem:[%s4650 + $0x51] sm:$0xff]
      %v4835 = vld [vmem:[%s4650 + $0x61] sm:$0xff]
      %v4836 = vld [vmem:[%s4650 + $0x71] sm:$0xff]
      %v4837 = vpack.c.bf16 %v4829, %v4829
      %v4838 = vpack.c.bf16 %v4830, %v4830
      %v4839 = vpack.c.bf16 %v4831, %v4831
      %v4840 = vpack.c.bf16 %v4832, %v4832
      %v4841 = vpack.c.bf16 %v4833, %v4833
      %v4842 = vpack.c.bf16 %v4834, %v4834
      %v4843 = vpack.c.bf16 %v4835, %v4835
      %v4844 = vpack.c.bf16 %v4836, %v4836
      %s4845 = scalar_lea.vmem %s8, 448
      %v4846 = vld [vmem:[%s4845] sm:$0xf]
      %v4847 = vld [vmem:[%s4845 + $0x4] sm:$0xf]
      %v4848 = vld [vmem:[%s4845 + $0x8] sm:$0xf]
      %v4849 = vld [vmem:[%s4845 + $0xc] sm:$0xf]
      %v4850 = vld [vmem:[%s4845 + $0x10] sm:$0xf]
      %v4851 = vld [vmem:[%s4845 + $0x14] sm:$0xf]
      %v4852 = vld [vmem:[%s4845 + $0x18] sm:$0xf]
      %v4853 = vld [vmem:[%s4845 + $0x1c] sm:$0xf]
      %v4854 = vld [vmem:[%s4845 + $0x20] sm:$0xf]
      %v4855 = vld [vmem:[%s4845 + $0x24] sm:$0xf]
      %v4856 = vld [vmem:[%s4845 + $0x28] sm:$0xf]
      %v4857 = vld [vmem:[%s4845 + $0x2c] sm:$0xf]
      %v4858 = vld [vmem:[%s4845 + $0x30] sm:$0xf]
      %v4859 = vld [vmem:[%s4845 + $0x34] sm:$0xf]
      %v4860 = vld [vmem:[%s4845 + $0x38] sm:$0xf]
      %v4861 = vld [vmem:[%s4845 + $0x3c] sm:$0xf]
      %v4870 = vunpack.c.l.b16 %v4837
      %v4871 = vunpack.c.l.b16 %v4838
      %v4872 = vunpack.c.l.b16 %v4839
      %v4873 = vunpack.c.l.b16 %v4840
      %v4874 = vunpack.c.l.b16 %v4841
      %v4875 = vunpack.c.l.b16 %v4842
      %v4876 = vunpack.c.l.b16 %v4843
      %v4877 = vunpack.c.l.b16 %v4844
      %v4878 = vpack.c.b16 %v4871, %v4870
      %v4879 = vpack.c.b16 %v4873, %v4872
      %v4880 = vpack.c.b16 %v4875, %v4874
      %v4881 = vpack.c.b16 %v4877, %v4876
      %v4902 = vunpack.c.l.b16 %v4846
      %v4903 = vunpack.c.l.b16 %v4847
      %v4904 = vunpack.c.l.b16 %v4848
      %v4905 = vunpack.c.l.b16 %v4849
      %v4906 = vunpack.c.l.b16 %v4850
      %v4907 = vunpack.c.l.b16 %v4851
      %v4908 = vunpack.c.l.b16 %v4852
      %v4909 = vunpack.c.l.b16 %v4853
      %v4910 = vunpack.c.l.b16 %v4854
      %v4911 = vunpack.c.l.b16 %v4855
      %v4912 = vunpack.c.l.b16 %v4856
      %v4913 = vunpack.c.l.b16 %v4857
      %v4914 = vunpack.c.l.b16 %v4858
      %v4915 = vunpack.c.l.b16 %v4859
      %v4916 = vunpack.c.l.b16 %v4860
      %v4917 = vunpack.c.l.b16 %v4861
      %v4918 = vpack.c.b16 %v4903, %v4902
      %v4919 = vpack.c.b16 %v4905, %v4904
      %v4920 = vpack.c.b16 %v4907, %v4906
      %v4921 = vpack.c.b16 %v4909, %v4908
      %v4922 = vpack.c.b16 %v4911, %v4910
      %v4923 = vpack.c.b16 %v4913, %v4912
      %v4924 = vpack.c.b16 %v4915, %v4914
      %v4925 = vpack.c.b16 %v4917, %v4916
      %4934 = vmatprep.subr.bf16.mxu0 0
      %4935 = vmatpush1.bf16.msra.mxu0 %v4918
      %4936 = vmatprep.subr.bf16.mxu0 0
      %4937 = vmatpush1.bf16.msra.mxu0 %v4919
      %4938 = vmatprep.subr.bf16.mxu0 0
      %4939 = vmatpush1.bf16.msra.mxu0 %v4920
      %4940 = vmatprep.subr.bf16.mxu0 0
      %4941 = vmatpush1.bf16.msra.mxu0 %v4921
      %4942 = vmatprep.subr.bf16.mxu0 0
      %4943 = vmatpush1.bf16.msra.mxu0 %v4922
      %4944 = vmatprep.subr.bf16.mxu0 0
      %4945 = vmatpush1.bf16.msra.mxu0 %v4923
      %4946 = vmatprep.subr.bf16.mxu0 0
      %4947 = vmatpush1.bf16.msra.mxu0 %v4924
      %4948 = vmatprep.subr.bf16.mxu0 0
      %4949 = vmatpush1.bf16.msra.mxu0 %v4925
      %4950 = vmatprep.subr.bf16.mxu0 0
      %4951 = vmatpush1.bf16.msra.mxu0 0
      %4952 = vmatprep.subr.bf16.mxu0 0
      %4953 = vmatpush1.bf16.msra.mxu0 0
      %4954 = vmatprep.subr.bf16.mxu0 0
      %4955 = vmatpush1.bf16.msra.mxu0 0
      %4956 = vmatprep.subr.bf16.mxu0 0
      %4957 = vmatpush1.bf16.msra.mxu0 0
      %4958 = vmatprep.subr.bf16.mxu0 0
      %4959 = vmatpush1.bf16.msra.mxu0 0
      %4960 = vmatprep.subr.bf16.mxu0 0
      %4961 = vmatpush1.bf16.msra.mxu0 0
      %4962 = vmatprep.subr.bf16.mxu0 0
      %4963 = vmatpush1.bf16.msra.mxu0 0
      %4964 = vmatprep.subr.bf16.mxu0 0
      %4965 = vmatpush1.bf16.msra.mxu0 0
      %4966 = vmatprep.mubr.bf16.mxu0 0
      %4967 = vmatmul.mubr.bf16.gmra.mrb[0].mxu0 %v4878
      %v4968 = vpop.f32.mrb[0].mxu0
      %v4969 = vadd.f32 0.0, %v4968
      %v4970 = vpop.f32.mrb[0].mxu0
      %v4971 = vpop.f32.mrb[0].mxu0
      %v4972 = vadd.f32 0.0, %v4971
      %v4973 = vpop.f32.mrb[0].mxu0
      %4974 = vmatprep.mubr.bf16.mxu0 0
      %4975 = vmatmul.mubr.bf16.gmra.mrb[0].mxu0 %v4879
      %v4976 = vpop.f32.mrb[0].mxu0
      %v4977 = vadd.f32 0.0, %v4976
      %v4978 = vpop.f32.mrb[0].mxu0
      %v4979 = vpop.f32.mrb[0].mxu0
      %v4980 = vadd.f32 0.0, %v4979
      %v4981 = vpop.f32.mrb[0].mxu0
      %4982 = vmatprep.mubr.bf16.mxu0 0
      %4983 = vmatmul.mubr.bf16.gmra.mrb[0].mxu0 %v4880
      %v4984 = vpop.f32.mrb[0].mxu0
      %v4985 = vadd.f32 0.0, %v4984
      %v4986 = vpop.f32.mrb[0].mxu0
      %v4987 = vpop.f32.mrb[0].mxu0
      %v4988 = vadd.f32 0.0, %v4987
      %v4989 = vpop.f32.mrb[0].mxu0
      %4990 = vmatprep.mubr.bf16.mxu0 0
      %4991 = vmatmul.mubr.bf16.gmra.mrb[0].mxu0 %v4881
      %v4992 = vpop.f32.mrb[0].mxu0
      %v4993 = vadd.f32 0.0, %v4992
      %v4994 = vpop.f32.mrb[0].mxu0
      %v4995 = vpop.f32.mrb[0].mxu0
      %v4996 = vadd.f32 0.0, %v4995
      %v4997 = vpop.f32.mrb[0].mxu0
      %4998 = vdwg.mxu0
      %v4999 = vadd.f32 %v4821, %v4969
      %v5000 = vadd.f32 %v4822, %v4972
      %v5001 = vadd.f32 %v4823, %v4977
      %v5002 = vadd.f32 %v4824, %v4980
      %v5003 = vadd.f32 %v4825, %v4985
      %v5004 = vadd.f32 %v4826, %v4988
      %v5005 = vadd.f32 %v4827, %v4993
      %v5006 = vadd.f32 %v4828, %v4996
      %v5007 = vld [vmem:[%s4650 + $0x2] sm:$0xff]
      %v5008 = vld [vmem:[%s4650 + $0x12] sm:$0xff]
      %v5009 = vld [vmem:[%s4650 + $0x22] sm:$0xff]
      %v5010 = vld [vmem:[%s4650 + $0x32] sm:$0xff]
      %v5011 = vld [vmem:[%s4650 + $0x42] sm:$0xff]
      %v5012 = vld [vmem:[%s4650 + $0x52] sm:$0xff]
      %v5013 = vld [vmem:[%s4650 + $0x62] sm:$0xff]
      %v5014 = vld [vmem:[%s4650 + $0x72] sm:$0xff]
      %v5015 = vpack.c.bf16 %v5007, %v5007
      %v5016 = vpack.c.bf16 %v5008, %v5008
      %v5017 = vpack.c.bf16 %v5009, %v5009
      %v5018 = vpack.c.bf16 %v5010, %v5010
      %v5019 = vpack.c.bf16 %v5011, %v5011
      %v5020 = vpack.c.bf16 %v5012, %v5012
      %v5021 = vpack.c.bf16 %v5013, %v5013
      %v5022 = vpack.c.bf16 %v5014, %v5014
      %s5023 = scalar_lea.vmem %s8, 512
      %v5024 = vld [vmem:[%s5023] sm:$0xf]
      %v5025 = vld [vmem:[%s5023 + $0x4] sm:$0xf]
      %v5026 = vld [vmem:[%s5023 + $0x8] sm:$0xf]
      %v5027 = vld [vmem:[%s5023 + $0xc] sm:$0xf]
      %v5028 = vld [vmem:[%s5023 + $0x10] sm:$0xf]
      %v5029 = vld [vmem:[%s5023 + $0x14] sm:$0xf]
      %v5030 = vld [vmem:[%s5023 + $0x18] sm:$0xf]
      %v5031 = vld [vmem:[%s5023 + $0x1c] sm:$0xf]
      %v5032 = vld [vmem:[%s5023 + $0x20] sm:$0xf]
      %v5033 = vld [vmem:[%s5023 + $0x24] sm:$0xf]
      %v5034 = vld [vmem:[%s5023 + $0x28] sm:$0xf]
      %v5035 = vld [vmem:[%s5023 + $0x2c] sm:$0xf]
      %v5036 = vld [vmem:[%s5023 + $0x30] sm:$0xf]
      %v5037 = vld [vmem:[%s5023 + $0x34] sm:$0xf]
      %v5038 = vld [vmem:[%s5023 + $0x38] sm:$0xf]
      %v5039 = vld [vmem:[%s5023 + $0x3c] sm:$0xf]
      %v5048 = vunpack.c.l.b16 %v5015
      %v5049 = vunpack.c.l.b16 %v5016
      %v5050 = vunpack.c.l.b16 %v5017
      %v5051 = vunpack.c.l.b16 %v5018
      %v5052 = vunpack.c.l.b16 %v5019
      %v5053 = vunpack.c.l.b16 %v5020
      %v5054 = vunpack.c.l.b16 %v5021
      %v5055 = vunpack.c.l.b16 %v5022
      %v5056 = vpack.c.b16 %v5049, %v5048
      %v5057 = vpack.c.b16 %v5051, %v5050
      %v5058 = vpack.c.b16 %v5053, %v5052
      %v5059 = vpack.c.b16 %v5055, %v5054
      %v5080 = vunpack.c.l.b16 %v5024
      %v5081 = vunpack.c.l.b16 %v5025
      %v5082 = vunpack.c.l.b16 %v5026
      %v5083 = vunpack.c.l.b16 %v5027
      %v5084 = vunpack.c.l.b16 %v5028
      %v5085 = vunpack.c.l.b16 %v5029
      %v5086 = vunpack.c.l.b16 %v5030
      %v5087 = vunpack.c.l.b16 %v5031
      %v5088 = vunpack.c.l.b16 %v5032
      %v5089 = vunpack.c.l.b16 %v5033
      %v5090 = vunpack.c.l.b16 %v5034
      %v5091 = vunpack.c.l.b16 %v5035
      %v5092 = vunpack.c.l.b16 %v5036
      %v5093 = vunpack.c.l.b16 %v5037
      %v5094 = vunpack.c.l.b16 %v5038
      %v5095 = vunpack.c.l.b16 %v5039
      %v5096 = vpack.c.b16 %v5081, %v5080
      %v5097 = vpack.c.b16 %v5083, %v5082
      %v5098 = vpack.c.b16 %v5085, %v5084
      %v5099 = vpack.c.b16 %v5087, %v5086
      %v5100 = vpack.c.b16 %v5089, %v5088
      %v5101 = vpack.c.b16 %v5091, %v5090
      %v5102 = vpack.c.b16 %v5093, %v5092
      %v5103 = vpack.c.b16 %v5095, %v5094
      %5112 = vmatprep.subr.bf16.mxu0 0
      %5113 = vmatpush1.bf16.msra.mxu0 %v5096
      %5114 = vmatprep.subr.bf16.mxu0 0
      %5115 = vmatpush1.bf16.msra.mxu0 %v5097
      %5116 = vmatprep.subr.bf16.mxu0 0
      %5117 = vmatpush1.bf16.msra.mxu0 %v5098
      %5118 = vmatprep.subr.bf16.mxu0 0
      %5119 = vmatpush1.bf16.msra.mxu0 %v5099
      %5120 = vmatprep.subr.bf16.mxu0 0
      %5121 = vmatpush1.bf16.msra.mxu0 %v5100
      %5122 = vmatprep.subr.bf16.mxu0 0
      %5123 = vmatpush1.bf16.msra.mxu0 %v5101
      %5124 = vmatprep.subr.bf16.mxu0 0
      %5125 = vmatpush1.bf16.msra.mxu0 %v5102
      %5126 = vmatprep.subr.bf16.mxu0 0
      %5127 = vmatpush1.bf16.msra.mxu0 %v5103
      %5128 = vmatprep.subr.bf16.mxu0 0
      %5129 = vmatpush1.bf16.msra.mxu0 0
      %5130 = vmatprep.subr.bf16.mxu0 0
      %5131 = vmatpush1.bf16.msra.mxu0 0
      %5132 = vmatprep.subr.bf16.mxu0 0
      %5133 = vmatpush1.bf16.msra.mxu0 0
      %5134 = vmatprep.subr.bf16.mxu0 0
      %5135 = vmatpush1.bf16.msra.mxu0 0
      %5136 = vmatprep.subr.bf16.mxu0 0
      %5137 = vmatpush1.bf16.msra.mxu0 0
      %5138 = vmatprep.subr.bf16.mxu0 0
      %5139 = vmatpush1.bf16.msra.mxu0 0
      %5140 = vmatprep.subr.bf16.mxu0 0
      %5141 = vmatpush1.bf16.msra.mxu0 0
      %5142 = vmatprep.subr.bf16.mxu0 0
      %5143 = vmatpush1.bf16.msra.mxu0 0
      %5144 = vmatprep.mubr.bf16.mxu0 0
      %5145 = vmatmul.mubr.bf16.gmra.mrb[0].mxu0 %v5056
      %v5146 = vpop.f32.mrb[0].mxu0
      %v5147 = vadd.f32 0.0, %v5146
      %v5148 = vpop.f32.mrb[0].mxu0
      %v5149 = vpop.f32.mrb[0].mxu0
      %v5150 = vadd.f32 0.0, %v5149
      %v5151 = vpop.f32.mrb[0].mxu0
      %5152 = vmatprep.mubr.bf16.mxu0 0
      %5153 = vmatmul.mubr.bf16.gmra.mrb[0].mxu0 %v5057
      %v5154 = vpop.f32.mrb[0].mxu0
      %v5155 = vadd.f32 0.0, %v5154
      %v5156 = vpop.f32.mrb[0].mxu0
      %v5157 = vpop.f32.mrb[0].mxu0
      %v5158 = vadd.f32 0.0, %v5157
      %v5159 = vpop.f32.mrb[0].mxu0
      %5160 = vmatprep.mubr.bf16.mxu0 0
      %5161 = vmatmul.mubr.bf16.gmra.mrb[0].mxu0 %v5058
      %v5162 = vpop.f32.mrb[0].mxu0
      %v5163 = vadd.f32 0.0, %v5162
      %v5164 = vpop.f32.mrb[0].mxu0
      %v5165 = vpop.f32.mrb[0].mxu0
      %v5166 = vadd.f32 0.0, %v5165
      %v5167 = vpop.f32.mrb[0].mxu0
      %5168 = vmatprep.mubr.bf16.mxu0 0
      %5169 = vmatmul.mubr.bf16.gmra.mrb[0].mxu0 %v5059
      %v5170 = vpop.f32.mrb[0].mxu0
      %v5171 = vadd.f32 0.0, %v5170
      %v5172 = vpop.f32.mrb[0].mxu0
      %v5173 = vpop.f32.mrb[0].mxu0
      %v5174 = vadd.f32 0.0, %v5173
      %v5175 = vpop.f32.mrb[0].mxu0
      %5176 = vdwg.mxu0
      %v5177 = vadd.f32 %v4999, %v5147
      %v5178 = vadd.f32 %v5000, %v5150
      %v5179 = vadd.f32 %v5001, %v5155
      %v5180 = vadd.f32 %v5002, %v5158
      %v5181 = vadd.f32 %v5003, %v5163
      %v5182 = vadd.f32 %v5004, %v5166
      %v5183 = vadd.f32 %v5005, %v5171
      %v5184 = vadd.f32 %v5006, %v5174
      %v5185 = vld [vmem:[%s9] sm:$0x1]
      %v5187 = vlaneseq
      %v5188 = vshrl.u32 %v5187, 7
      %v5189 = vsub.s32 0, %v5188
      %v5190 = vrot.slane %v5185, %v5189
      %v5192 = vadd.f32 %v5177, %v5190
      %v5193 = vadd.f32 %v5178, %v5190
      %v5194 = vadd.f32 %v5179, %v5190
      %v5195 = vadd.f32 %v5180, %v5190
      %v5196 = vadd.f32 %v5181, %v5190
      %v5197 = vadd.f32 %v5182, %v5190
      %v5198 = vadd.f32 %v5183, %v5190
      %v5199 = vadd.f32 %v5184, %v5190
      %v5200 = vmax.f32 %v5192, 0.0
      %v5201 = vmax.f32 %v5193, 0.0
      %v5202 = vmax.f32 %v5194, 0.0
      %v5203 = vmax.f32 %v5195, 0.0
      %v5204 = vmax.f32 %v5196, 0.0
      %v5205 = vmax.f32 %v5197, 0.0
      %v5206 = vmax.f32 %v5198, 0.0
      %v5207 = vmax.f32 %v5199, 0.0
      %v5208 = vadd.f32 %v5200, %v5201
      %v5209 = vadd.f32 %v5208, %v5202
      %v5210 = vadd.f32 %v5209, %v5203
      %v5211 = vadd.f32 %v5210, %v5204
      %v5212 = vadd.f32 %v5211, %v5205
      %v5213 = vadd.f32 %v5212, %v5206
      %v5214 = vadd.f32 %v5213, %v5207
      %v5215 = vrot.slane %v5214, 4
      %v5216 = vadd.f32 %v5214, %v5215
      %v5217 = vrot.slane %v5216, 2
      %v5218 = vadd.f32 %v5216, %v5217
      %v5219 = vrot.slane %v5218, 1
      %v5220 = vadd.f32 %v5218, %v5219
      %v5221 = vrcp.pop 64.0
      %v5222 = vmul.f32 %v5220, %v5221
      %v5223 = vsub.f32 %v5200, %v5222
      %v5224 = vsub.f32 %v5201, %v5222
      %v5225 = vsub.f32 %v5202, %v5222
      %v5226 = vsub.f32 %v5203, %v5222
      %v5227 = vsub.f32 %v5204, %v5222
      %v5228 = vsub.f32 %v5205, %v5222
      %v5229 = vsub.f32 %v5206, %v5222
      %v5230 = vsub.f32 %v5207, %v5222
      %v5231 = vmul.f32 %v5223, %v5223
      %v5232 = vmul.f32 %v5224, %v5224
      %v5233 = vmul.f32 %v5225, %v5225
      %v5234 = vmul.f32 %v5226, %v5226
      %v5235 = vmul.f32 %v5227, %v5227
      %v5236 = vmul.f32 %v5228, %v5228
      %v5237 = vmul.f32 %v5229, %v5229
      %v5238 = vmul.f32 %v5230, %v5230
      %v5239 = vadd.f32 %v5231, %v5232
      %v5240 = vadd.f32 %v5239, %v5233
      %v5241 = vadd.f32 %v5240, %v5234
      %v5242 = vadd.f32 %v5241, %v5235
      %v5243 = vadd.f32 %v5242, %v5236
      %v5244 = vadd.f32 %v5243, %v5237
      %v5245 = vadd.f32 %v5244, %v5238
      %v5246 = vrot.slane %v5245, 4
      %v5247 = vadd.f32 %v5245, %v5246
      %v5248 = vrot.slane %v5247, 2
      %v5249 = vadd.f32 %v5247, %v5248
      %v5250 = vrot.slane %v5249, 1
      %v5251 = vadd.f32 %v5249, %v5250
      %v5252 = vmul.f32 %v5251, %v5221
      %v5253 = vadd.f32 %v5252, 1e-05
      %v5254 = vrsqrt.pop %v5253
      %v5255 = vmul.f32 %v5223, %v5254
      %v5256 = vmul.f32 %v5224, %v5254
      %v5257 = vmul.f32 %v5225, %v5254
      %v5258 = vmul.f32 %v5226, %v5254
      %v5259 = vmul.f32 %v5227, %v5254
      %v5260 = vmul.f32 %v5228, %v5254
      %v5261 = vmul.f32 %v5229, %v5254
      %v5262 = vmul.f32 %v5230, %v5254
      %v5263 = vld [vmem:[%s10] sm:$0x1]
      %v5265 = vlaneseq
      %v5266 = vshrl.u32 %v5265, 7
      %v5267 = vsub.s32 0, %v5266
      %v5268 = vrot.slane %v5263, %v5267
      %v5270 = vmul.f32 %v5255, %v5268
      %v5271 = vmul.f32 %v5256, %v5268
      %v5272 = vmul.f32 %v5257, %v5268
      %v5273 = vmul.f32 %v5258, %v5268
      %v5274 = vmul.f32 %v5259, %v5268
      %v5275 = vmul.f32 %v5260, %v5268
      %v5276 = vmul.f32 %v5261, %v5268
      %v5277 = vmul.f32 %v5262, %v5268
      %v5278 = vld [vmem:[%s11] sm:$0x1]
      %v5280 = vlaneseq
      %v5281 = vshrl.u32 %v5280, 7
      %v5282 = vsub.s32 0, %v5281
      %v5283 = vrot.slane %v5278, %v5282
      %v5285 = vadd.f32 %v5270, %v5283
      %v5286 = vadd.f32 %v5271, %v5283
      %v5287 = vadd.f32 %v5272, %v5283
      %v5288 = vadd.f32 %v5273, %v5283
      %v5289 = vadd.f32 %v5274, %v5283
      %v5290 = vadd.f32 %v5275, %v5283
      %v5291 = vadd.f32 %v5276, %v5283
      %v5292 = vadd.f32 %v5277, %v5283
      %5293 = vst [vmem:[%s473] sm:$0xff] %v5285
      %5294 = vst [vmem:[%s473 + $0x8] sm:$0xff] %v5286
      %5295 = vst [vmem:[%s473 + $0x10] sm:$0xff] %v5287
      %5296 = vst [vmem:[%s473 + $0x18] sm:$0xff] %v5288
      %5297 = vst [vmem:[%s473 + $0x20] sm:$0xff] %v5289
      %5298 = vst [vmem:[%s473 + $0x28] sm:$0xff] %v5290
      %5299 = vst [vmem:[%s473 + $0x30] sm:$0xff] %v5291
      %5300 = vst [vmem:[%s473 + $0x38] sm:$0xff] %v5292
      %p5301 = scmp.lt.s32.totalorder %s23, 1
      %s5302 = scalar_select %p5301, %s23, 1
      %s5303 = smul.addr %s5302, 8
      %s5304 = smul.addr %s5303, 8
      %s5305 = scalar_lea.vmem %s12, %s5304
      // Predicated region
      $region69: #{down_forward.1} parent=67 // pred_check
        %p5306 = pneg %p313
      $region70: #{down_forward.1} parent=67 // pred_check_branch
        %5308 = sbr.rel (%p5306) target = $region72
      $region71: #{down_forward.1} parent=67 // pred_region
        _
      $region72: #{down_forward.1} parent=67 // pred_fallthru
        _
    $region68: #{down_forward.1} parent=5 // pred_fallthru
      _
    %p5309 = scmp.le.s32.totalorder 2, %s18
    // Predicated region
    $region73: #{down_forward.1} parent=5 // pred_check
      %p5310 = pneg %p5309
    $region74: #{down_forward.1} parent=5 // pred_check_branch
      %5312 = sbr.rel (%p5310) target = $region76
    $region75: #{down_forward.1} parent=5 // pred_region
      %s5313 = ssub.s32 %s18, 2
      // Predicated region
      $region77: #{down_forward.1} parent=75 // pred_check
        %p5314 = pneg %p319
      $region78: #{down_forward.1} parent=75 // pred_check_branch
        %5316 = sbr.rel (%p5314) target = $region80
      $region79: #{down_forward.1} parent=75 // pred_region
        %p5317 = scmp.lt.s32.totalorder %s24, 1
        %s5318 = scalar_select %p5317, %s24, 1
        %s5319 = smul.addr %s5318, 8
        %s5320 = smul.addr %s5319, 8
        %s5321 = scalar_lea.vmem %s12, %s5320
      $region80: #{down_forward.1} parent=75 // pred_fallthru
        _
    $region76: #{down_forward.1} parent=5 // pred_fallthru
      _
  $region6: #{down_forward.1} parent=0 // loop_footer
    %s22 = sadd.s32 1, %s18
  $region7: #{down_forward.1} parent=0 // loop_footer_branch
    %17 = sbr.rel target = $region3
  $region8: #{down_forward.1} parent=0 // loop_exit
    _

</llo_original>
